<compile_context>
chip_gen: v7x
topology: tpu7x:2x2x1
jax: 0.10.0
libtpu: 0.0.40
codegen_flags: <defaults>
</compile_context>

<pallas_src>
import math

import jax
import jax.numpy as jnp
from jax.experimental import pallas as pl
from jax.experimental.pallas import tpu as pltpu

# ----------------------------- model dims (small) -----------------------------
B, T = 2, 16                 # batch, sequence length
HEADS = 8                    # head_cnt = 8 (hard-coded in RealFormer.__init__)
EMB_S = 8                    # args.hidden_size // head_cnt
EMB = HEADS * EMB_S          # args.hidden_size = 64
FF = 4 * EMB                 # feed-forward hidden = 256
N_LAYERS = 2                 # args.n_layers
VOCAB = 100                  # synthetic vocab for the embedding glue
N_VIZ = 4                    # number of visual tokens written into the sequence
LN_EPS = 1e-5                # torch.nn.LayerNorm default eps
BT = B * T                   # batch folded into rows
HT = HEADS * T               # packed (head, query) row dimension for scores
NEG_BIG = -1e30


# ----------------------------- in-kernel helpers ------------------------------
def _erf(x):
    # Abramowitz & Stegun 7.1.26 rational approximation (|err| <= 1.5e-7, ~f32-exact).
    # Used for exact (erf-based) GELU, matching torch.nn.GELU() default.
    a1, a2, a3, a4, a5 = 0.254829592, -0.284496736, 1.421413741, -1.453152027, 1.061405429
    p = 0.3275911
    s = jnp.where(x >= 0.0, 1.0, -1.0)
    ax = jnp.abs(x)
    t = 1.0 / (1.0 + p * ax)
    poly = ((((a5 * t + a4) * t + a3) * t + a2) * t + a1) * t
    return s * (1.0 - poly * jnp.exp(-ax * ax))


def _gelu_exact(x):
    return 0.5 * x * (1.0 + _erf(x * (1.0 / math.sqrt(2.0))))


def _layer_norm(x, gamma2d, beta2d):
    mu = jnp.mean(x, axis=-1, keepdims=True)
    var = jnp.mean(jnp.square(x - mu), axis=-1, keepdims=True)
    return (x - mu) * jax.lax.rsqrt(var + LN_EPS) * gamma2d + beta2d


# ------------------------------ the fused Pallas kernel ------------------------------
def fused_realformer_kernel(
        x0_ref, addmask_ref, grep_ref, grepT_ref, maskbd_ref,
        wkqv_ref, wproj_ref, g1_ref, b1_ref,
        wff1_ref, bff1_ref, wff2_ref, bff2_ref,
        g2_ref, b2_ref,
        xo_ref,
        prev_scr, ctx_scr):
    # one grid step == one ResEncoderBlock layer; state carried in VMEM across layers
    layer = pl.program_id(0)

    @pl.when(layer == 0)
    def _():
        xo_ref[...] = x0_ref[...]                      # hidden states resident in out block
        prev_scr[...] = jnp.zeros_like(prev_scr)       # prev=None == zeros (RealFormer)

    x = xo_ref[...]                                    # (BT, EMB)
    grep = grep_ref[...]                               # (HT, T)   row-replication matrix
    grepT = grepT_ref[...]                             # (T, HT)   head-collapse matrix
    maskbd = maskbd_ref[...]                           # (HT, EMB) per-head block mask (0/1)

    # shared-per-head KQV projection: one block-diagonal matmul (no per-head loop)
    kqv = jnp.dot(x, wkqv_ref[0], preferred_element_type=jnp.float32)   # (BT, 3*EMB)
    K = kqv[:, 0:EMB]
    Q = kqv[:, EMB:2 * EMB]
    V = kqv[:, 2 * EMB:3 * EMB]

    inv_sqrt_e = 1.0 / math.sqrt(EMB_S)

    for b in range(B):                                 # B = 2, statically unrolled
        rows = slice(b * T, (b + 1) * T)
        q_b = Q[rows]                                  # (T, EMB)
        k_b = K[rows]
        v_b = V[rows]

        # Expand Q to the packed (head, query) layout: row h*T+q keeps only head h's
        # 8 feature columns (exact 0/1 weights -> bit-identical to per-head slicing).
        q_bd = jnp.dot(grep, q_b, preferred_element_type=jnp.float32) * maskbd   # (HT, EMB)

        # QK^T as an NT dot_general (contract last dims) -> (HT, T); no transposes.
        s = jax.lax.dot_general(q_bd, k_b, (((1,), (1,)), ((), ())),
                                preferred_element_type=jnp.float32) * inv_sqrt_e

        # RealFormer residual scores: scores += prev; prev captured BEFORE masking.
        s = s + prev_scr[b]
        prev_scr[b] = s

        # additive key mask (0 / -1e30), precomputed on the host, broadcast over rows
        s = s + addmask_ref[b]                          # (1, T) broadcast

        m = jnp.max(s, axis=-1, keepdims=True)
        p = jnp.exp(s - m)
        attn = p / jnp.sum(p, axis=-1, keepdims=True)   # softmax over keys
        # dropout dp1: identity (eval mode)

        # attention applied to V for all heads at once, then head-collapse via one matmul
        cfull = jnp.dot(attn, v_b, preferred_element_type=jnp.float32)            # (HT, EMB)
        ctx_b = jnp.dot(grepT, cfull * maskbd, preferred_element_type=jnp.float32)  # (T, EMB)
        ctx_scr[rows, :] = ctx_b                        # static, sublane-aligned store

    ctx = ctx_scr[...]                                  # (BT, EMB) == per-head concat layout

    # x = ln1(x + mha(x))   (wproj pre-transposed on the host)
    res = jnp.dot(ctx, wproj_ref[0], preferred_element_type=jnp.float32)
    x1 = _layer_norm(x + res, g1_ref[0], b1_ref[0])

    # ff = Linear -> GELU -> Linear (dropout dp2: identity in eval mode)
    h1 = jnp.dot(x1, wff1_ref[0], preferred_element_type=jnp.float32) + bff1_ref[0]
    h1 = _gelu_exact(h1)
    h2 = jnp.dot(h1, wff2_ref[0], preferred_element_type=jnp.float32) + bff2_ref[0]

    # x = ln2(x + ff(x)) -> carried to the next layer in the resident output block
    xo_ref[...] = _layer_norm(x1 + h2, g2_ref[0], b2_ref[0])


# ------------------------------- kernel wrapper --------------------------------
def fused_realformer(x0, addmask, consts, stacked):
    """Runs all N_LAYERS ResEncoderBlocks in one pallas_call. Returns final hidden states (BT, EMB)."""
    const_order = ("grep", "grepT", "maskbd")
    weight_order = ("wkqv_bd", "wprojT", "g1", "b1", "wff1T", "bff1", "wff2T", "bff2", "g2", "b2")
    const_args = [consts[k] for k in const_order]
    weight_args = [stacked[k] for k in weight_order]

    in_specs = [
        pl.BlockSpec((BT, EMB), lambda l: (0, 0)),          # initial hidden states (resident)
        pl.BlockSpec((B, 1, T), lambda l: (0, 0, 0)),       # additive key mask (resident)
    ]
    for c in const_args:                                    # attention expansion constants
        in_specs.append(pl.BlockSpec(c.shape, lambda l, nd=c.ndim: (0,) * nd))
    for w in weight_args:                                   # stacked per-layer weights:
        in_specs.append(pl.BlockSpec((1,) + w.shape[1:],    # layer axis indexed by the grid ->
                                     lambda l, nd=w.ndim: (l,) + (0,) * (nd - 1)))  # prefetched

    out_specs = pl.BlockSpec((BT, EMB), lambda l: (0, 0))   # resident across the layer axis
    out_shape = jax.ShapeDtypeStruct((BT, EMB), jnp.float32)

    fn = pl.pallas_call(
        fused_realformer_kernel,
        out_shape=out_shape,
        grid_spec=pltpu.PrefetchScalarGridSpec(
            num_scalar_prefetch=0,
            grid=(N_LAYERS,),
            in_specs=in_specs,
            out_specs=out_specs,
            scratch_shapes=[
                pltpu.VMEM((B, HT, T), jnp.float32),        # residual scores "prev" (VMEM-only)
                pltpu.VMEM((BT, EMB), jnp.float32),         # context assembly buffer
            ],
        ),
        compiler_params=pltpu.CompilerParams(dimension_semantics=("arbitrary",)),
    )
    return fn(x0, addmask, *const_args, *weight_args)


# ----------------------- host-side constant / weight packing -----------------------
def build_attention_constants():
    eye_h = jnp.eye(HEADS, dtype=jnp.float32)
    grep = jnp.tile(jnp.eye(T, dtype=jnp.float32), (HEADS, 1))            # (HT, T)
    grepT = grep.T                                                        # (T, HT)
    maskbd = jnp.kron(eye_h, jnp.ones((T, EMB_S), jnp.float32))           # (HT, EMB)
    return dict(grep=grep, grepT=grepT, maskbd=maskbd)


def stack_layer_params(layer_params):
    """Stack per-layer params with a leading layer axis; pre-transpose / block-diagonalize."""
    eye_h = jnp.eye(HEADS, dtype=jnp.float32)

    def kqv_block_diag(wkqv):
        # wkqv: (3*EMB_S, EMB_S); wkqv.T columns ordered [k | q | v], shared across heads.
        wt = wkqv.T                                                       # (EMB_S, 3*EMB_S)
        blocks = [jnp.kron(eye_h, wt[:, i * EMB_S:(i + 1) * EMB_S]) for i in range(3)]
        return jnp.concatenate(blocks, axis=1)                            # (EMB, 3*EMB)

    def stack(fn, key):
        return jnp.stack([fn(p[key]) for p in layer_params], axis=0)

    ident = lambda w: w
    return dict(
        wkqv_bd=stack(kqv_block_diag, "wkqv"),     # (L, EMB, 3*EMB)
        wprojT=stack(lambda w: w.T, "wproj"),      # (L, EMB, EMB)
        g1=stack(ident, "g1"), b1=stack(ident, "b1"),
        wff1T=stack(lambda w: w.T, "wff1"),        # (L, EMB, FF)
        bff1=stack(ident, "bff1"),
        wff2T=stack(lambda w: w.T, "wff2"),        # (L, FF, EMB)
        bff2=stack(ident, "bff2"),
        g2=stack(ident, "g2"), b2=stack(ident, "b2"),
    )


# --------------------------- deterministic parameters --------------------------
def init_layer_params(key):
    ks = jax.random.split(key, 6)

    def lin_w(k, out_f, in_f):
        lim = 1.0 / math.sqrt(in_f)
        return jax.random.uniform(k, (out_f, in_f), jnp.float32, -lim, lim)

    return dict(
        wkqv=lin_w(ks[0], 3 * EMB_S, EMB_S),        # nn.Linear(emb_s, 3*emb_s, bias=False)
        wproj=lin_w(ks[1], EMB, EMB),               # nn.Linear(emb, emb, bias=False)
        g1=jnp.ones((1, EMB), jnp.float32),
        b1=jnp.zeros((1, EMB), jnp.float32),
        wff1=lin_w(ks[2], FF, EMB),                 # nn.Linear(emb, 4*emb)
        bff1=jax.random.uniform(ks[3], (1, FF), jnp.float32,
                                -1.0 / math.sqrt(EMB), 1.0 / math.sqrt(EMB)),
        wff2=lin_w(ks[4], EMB, FF),                 # nn.Linear(4*emb, emb)
        bff2=jax.random.uniform(ks[5], (1, EMB), jnp.float32,
                                -1.0 / math.sqrt(FF), 1.0 / math.sqrt(FF)),
        g2=jnp.ones((1, EMB), jnp.float32),
        b2=jnp.zeros((1, EMB), jnp.float32),
    )


def init_embed_params(key):
    k0, k1, k2, k3 = jax.random.split(key, 4)
    word = 0.02 * jax.random.normal(k0, (VOCAB, EMB), jnp.float32)
    ttype = 0.02 * jax.random.normal(k1, (2, EMB), jnp.float32)
    pos = 0.02 * jax.random.normal(k2, (T, EMB), jnp.float32)
    gamma = jnp.ones((EMB,), jnp.float32)
    beta = jnp.zeros((EMB,), jnp.float32)
    vis_w = 0.02 * jax.random.normal(k3, (N_VIZ, 3 * 16 * 16, EMB), jnp.float32)
    return (word, ttype, pos, gamma, beta), vis_w


# -------------------------------- glue (plain JAX) ------------------------------
def prepare_input(embed_params, vis_w, img, input_ids, token_type_ids):
    # TODO(synk): the real model uses pretrained HuggingFace BERT embeddings and a pretrained
    # image backbone (get_transfer); replaced here with deterministic synthetic stand-ins of
    # the same shape/structure (word+type+position embeddings + LayerNorm; visual features
    # overwrite the first N_VIZ sequence positions, mirroring `h[i][n] = v[i]`).
    word, ttype, pos, gamma, beta = embed_params
    h = word[input_ids] + ttype[token_type_ids] + pos[None, :, :]
    mu = h.mean(-1, keepdims=True)
    var = jnp.square(h - mu).mean(-1, keepdims=True)
    h = (h - mu) / jnp.sqrt(var + 1e-12) * gamma + beta             # BERT embedding LN eps=1e-12

    img_flat = img.reshape(B, -1)                                   # NCHW flattened
    vizs = jnp.einsum('bf,nfe->bne', img_flat, vis_w)               # (B, N_VIZ, EMB)
    h = h.at[:, :N_VIZ, :].set(vizs)
    return h


@jax.jit
def realformer_forward(embed_params, vis_w, consts, stacked, img, input_ids, token_type_ids, mask):
    h = prepare_input(embed_params, vis_w, img, input_ids, token_type_ids)
    x0 = h.reshape(BT, EMB)                                         # batch folded into rows
    addmask = jnp.where(mask > 0.0, 0.0, NEG_BIG).astype(jnp.float32).reshape(B, 1, T)
    out = fused_realformer(x0, addmask, consts, stacked)            # all layers in one call
    return out.reshape(B, T, EMB)


# -------------------------------------- main ------------------------------------
if __name__ == "__main__":
    root = jax.random.PRNGKey(0)
    keys = jax.random.split(root, 4 + N_LAYERS)
    k_emb, k_img, k_ids, k_unused = keys[0], keys[1], keys[2], keys[3]
    layer_keys = keys[4:]

    embed_params, vis_w = init_embed_params(k_emb)
    layer_params = [init_layer_params(k) for k in layer_keys]
    stacked = stack_layer_params(layer_params)
    consts = build_attention_constants()

    img = jax.random.normal(k_img, (B, 3, 16, 16), jnp.float32)     # NCHW, like PyTorch
    input_ids = jax.random.randint(k_ids, (B, T), 0, VOCAB)
    token_type_ids = jnp.zeros((B, T), jnp.int32)
    mask = jnp.ones((B, T), jnp.float32).at[1, T - 4:].set(0.0)     # batch 1 has 4 padded keys

    out = realformer_forward(embed_params, vis_w, consts, stacked,
                             img, input_ids, token_type_ids, mask)
    out = jax.block_until_ready(out)
    assert out.shape == (B, T, EMB) and bool(jnp.all(jnp.isfinite(out)))
    print("KERNEL_OK")
</pallas_src>

<mosaic_0001>
module attributes {stable_mosaic.version = 11 : i64} {
  func.func @fused_realformer_kernel(%arg0: i32, %arg1: memref<32x64xf32, #tpu.memory_space<vmem>>, %arg2: memref<2x1x16xf32, #tpu.memory_space<vmem>>, %arg3: memref<128x16xf32, #tpu.memory_space<vmem>>, %arg4: memref<16x128xf32, #tpu.memory_space<vmem>>, %arg5: memref<128x64xf32, #tpu.memory_space<vmem>>, %arg6: memref<1x64x192xf32, #tpu.memory_space<vmem>>, %arg7: memref<1x64x64xf32, #tpu.memory_space<vmem>>, %arg8: memref<1x1x64xf32, #tpu.memory_space<vmem>>, %arg9: memref<1x1x64xf32, #tpu.memory_space<vmem>>, %arg10: memref<1x64x256xf32, #tpu.memory_space<vmem>>, %arg11: memref<1x1x256xf32, #tpu.memory_space<vmem>>, %arg12: memref<1x256x64xf32, #tpu.memory_space<vmem>>, %arg13: memref<1x1x64xf32, #tpu.memory_space<vmem>>, %arg14: memref<1x1x64xf32, #tpu.memory_space<vmem>>, %arg15: memref<1x1x64xf32, #tpu.memory_space<vmem>>, %arg16: memref<32x64xf32, #tpu.memory_space<vmem>>, %arg17: memref<2x128x16xf32, #tpu.memory_space<vmem>>, %arg18: memref<32x64xf32, #tpu.memory_space<vmem>>) attributes {dimension_semantics = [#tpu.dimension_semantics<arbitrary>], iteration_bounds = array<i64: 2>, scalar_prefetch = 0 : i64, scratch_operands = 2 : i64, tpu.core_type = #tpu.core_type<tc>, window_params = [{pipeline_mode = #tpu.pipeline_mode<synchronous>, transform_indices = @transform_0, window_bounds = array<i64: 32, 64>}, {pipeline_mode = #tpu.pipeline_mode<synchronous>, transform_indices = @transform_1, window_bounds = array<i64: 2, 1, 16>}, {pipeline_mode = #tpu.pipeline_mode<synchronous>, transform_indices = @transform_2, window_bounds = array<i64: 128, 16>}, {pipeline_mode = #tpu.pipeline_mode<synchronous>, transform_indices = @transform_3, window_bounds = array<i64: 16, 128>}, {pipeline_mode = #tpu.pipeline_mode<synchronous>, transform_indices = @transform_4, window_bounds = array<i64: 128, 64>}, {transform_indices = @transform_5, window_bounds = array<i64: 1, 64, 192>}, {transform_indices = @transform_6, window_bounds = array<i64: 1, 64, 64>}, {transform_indices = @transform_7, window_bounds = array<i64: 1, 1, 64>}, {transform_indices = @transform_8, window_bounds = array<i64: 1, 1, 64>}, {transform_indices = @transform_9, window_bounds = array<i64: 1, 64, 256>}, {transform_indices = @transform_10, window_bounds = array<i64: 1, 1, 256>}, {transform_indices = @transform_11, window_bounds = array<i64: 1, 256, 64>}, {transform_indices = @transform_12, window_bounds = array<i64: 1, 1, 64>}, {transform_indices = @transform_13, window_bounds = array<i64: 1, 1, 64>}, {transform_indices = @transform_14, window_bounds = array<i64: 1, 1, 64>}, {pipeline_mode = #tpu.pipeline_mode<synchronous>, transform_indices = @transform_15, window_bounds = array<i64: 32, 64>}]} {
    %c0_i32 = arith.constant 0 : i32
    %0 = arith.cmpi eq, %arg0, %c0_i32 : i32
    %1 = arith.extui %0 : i1 to i32
    %c0_i32_0 = arith.constant 0 : i32
    %2 = arith.cmpi ne, %1, %c0_i32_0 : i32
    scf.if %2 {
      %c0_105 = arith.constant 0 : index
      %c0_106 = arith.constant 0 : index
      %189 = vector.load %arg1[%c0_105, %c0_106] : memref<32x64xf32, #tpu.memory_space<vmem>>, vector<32x64xf32>
      %c0_107 = arith.constant 0 : index
      %c0_108 = arith.constant 0 : index
      %190 = vector.load %arg16[%c0_107, %c0_108] : memref<32x64xf32, #tpu.memory_space<vmem>>, vector<32x64xf32>
      tpu.vector_store %arg16[%c0_107, %c0_108], %189 {strides = array<i32>} : memref<32x64xf32, #tpu.memory_space<vmem>>, vector<32x64xf32>,
      %cst_109 = arith.constant 0.000000e+00 : f32
      %191 = vector.broadcast %cst_109 : f32 to vector<2x128x16xf32>
      %c0_110 = arith.constant 0 : index
      %c0_111 = arith.constant 0 : index
      %c0_112 = arith.constant 0 : index
      %192 = vector.load %arg17[%c0_110, %c0_111, %c0_112] : memref<2x128x16xf32, #tpu.memory_space<vmem>>, vector<2x128x16xf32>
      tpu.vector_store %arg17[%c0_110, %c0_111, %c0_112], %191 {strides = array<i32>} : memref<2x128x16xf32, #tpu.memory_space<vmem>>, vector<2x128x16xf32>,
    } else {
    }
    %c0 = arith.constant 0 : index
    %c0_1 = arith.constant 0 : index
    %3 = vector.load %arg16[%c0, %c0_1] : memref<32x64xf32, #tpu.memory_space<vmem>>, vector<32x64xf32>
    %c0_2 = arith.constant 0 : index
    %c0_3 = arith.constant 0 : index
    %4 = vector.load %arg3[%c0_2, %c0_3] : memref<128x16xf32, #tpu.memory_space<vmem>>, vector<128x16xf32>
    %c0_4 = arith.constant 0 : index
    %c0_5 = arith.constant 0 : index
    %5 = vector.load %arg4[%c0_4, %c0_5] : memref<16x128xf32, #tpu.memory_space<vmem>>, vector<16x128xf32>
    %c0_6 = arith.constant 0 : index
    %c0_7 = arith.constant 0 : index
    %6 = vector.load %arg5[%c0_6, %c0_7] : memref<128x64xf32, #tpu.memory_space<vmem>>, vector<128x64xf32>
    %c0_8 = arith.constant 0 : index
    %c0_9 = arith.constant 0 : index
    %c0_10 = arith.constant 0 : index
    %7 = vector.load %arg6[%c0_8, %c0_9, %c0_10] : memref<1x64x192xf32, #tpu.memory_space<vmem>>, vector<1x64x192xf32>
    %8 = vector.shape_cast %7 : vector<1x64x192xf32> to vector<64x192xf32>
    %cst = arith.constant dense<0.000000e+00> : vector<32x192xf32>
    %9 = tpu.matmul %3, %8, %cst {dimension_numbers = #tpu.dot_dimension_numbers<[1], [0], [0], [1], [0, 0, 1, 1], [], []>} : vector<32x64xf32>, vector<64x192xf32>, vector<32x192xf32> -> vector<32x192xf32>
    %10 = vector.extract_strided_slice %9 {offsets = [0, 0], sizes = [32, 64], strides = [1, 1]} : vector<32x192xf32> to vector<32x64xf32>
    %11 = vector.extract_strided_slice %9 {offsets = [0, 64], sizes = [32, 64], strides = [1, 1]} : vector<32x192xf32> to vector<32x64xf32>
    %12 = vector.extract_strided_slice %9 {offsets = [0, 128], sizes = [32, 64], strides = [1, 1]} : vector<32x192xf32> to vector<32x64xf32>
    %13 = vector.extract_strided_slice %11 {offsets = [0, 0], sizes = [16, 64], strides = [1, 1]} : vector<32x64xf32> to vector<16x64xf32>
    %14 = vector.extract_strided_slice %10 {offsets = [0, 0], sizes = [16, 64], strides = [1, 1]} : vector<32x64xf32> to vector<16x64xf32>
    %15 = vector.extract_strided_slice %12 {offsets = [0, 0], sizes = [16, 64], strides = [1, 1]} : vector<32x64xf32> to vector<16x64xf32>
    %cst_11 = arith.constant dense<0.000000e+00> : vector<128x64xf32>
    %16 = tpu.matmul %4, %13, %cst_11 {dimension_numbers = #tpu.dot_dimension_numbers<[1], [0], [0], [1], [0, 0, 1, 1], [], []>} : vector<128x16xf32>, vector<16x64xf32>, vector<128x64xf32> -> vector<128x64xf32>
    %17 = arith.mulf %16, %6 : vector<128x64xf32>
    %cst_12 = arith.constant dense<0.000000e+00> : vector<128x16xf32>
    %18 = tpu.matmul %17, %14, %cst_12 {dimension_numbers = #tpu.dot_dimension_numbers<[1], [1], [0], [0], [0, 0, 1, 0], [], []>} : vector<128x64xf32>, vector<16x64xf32>, vector<128x16xf32> -> vector<128x16xf32>
    %cst_13 = arith.constant 0.353553385 : f32
    %19 = vector.broadcast %cst_13 : f32 to vector<128x16xf32>
    %20 = arith.mulf %18, %19 : vector<128x16xf32>
    %c0_14 = arith.constant 0 : index
    %c0_15 = arith.constant 0 : index
    %c0_16 = arith.constant 0 : index
    %21 = vector.load %arg17[%c0_14, %c0_15, %c0_16] : memref<2x128x16xf32, #tpu.memory_space<vmem>>, vector<1x128x16xf32>
    %22 = vector.shape_cast %21 : vector<1x128x16xf32> to vector<128x16xf32>
    %23 = arith.addf %20, %22 : vector<128x16xf32>
    %c0_17 = arith.constant 0 : index
    %c0_18 = arith.constant 0 : index
    %c0_19 = arith.constant 0 : index
    %24 = vector.load %arg17[%c0_17, %c0_18, %c0_19] : memref<2x128x16xf32, #tpu.memory_space<vmem>>, vector<1x128x16xf32>
    %25 = vector.shape_cast %24 : vector<1x128x16xf32> to vector<128x16xf32>
    %26 = vector.shape_cast %23 : vector<128x16xf32> to vector<1x128x16xf32>
    tpu.vector_store %arg17[%c0_17, %c0_18, %c0_19], %26 {strides = array<i32>} : memref<2x128x16xf32, #tpu.memory_space<vmem>>, vector<1x128x16xf32>,
    %c0_20 = arith.constant 0 : index
    %c0_21 = arith.constant 0 : index
    %c0_22 = arith.constant 0 : index
    %27 = vector.load %arg2[%c0_20, %c0_21, %c0_22] : memref<2x1x16xf32, #tpu.memory_space<vmem>>, vector<1x1x16xf32>
    %28 = vector.shape_cast %27 : vector<1x1x16xf32> to vector<1x16xf32>
    %29 = vector.broadcast %28 : vector<1x16xf32> to vector<128x16xf32>
    %30 = arith.addf %23, %29 : vector<128x16xf32>
    %cst_23 = arith.constant dense<0xFF800000> : vector<128xf32>
    %31 = vector.multi_reduction <maximumf>, %30, %cst_23 [1] : vector<128x16xf32> to vector<128xf32>
    %32 = vector.shape_cast %31 : vector<128xf32> to vector<128x1xf32>
    %33 = vector.broadcast %32 : vector<128x1xf32> to vector<128x16xf32>
    %34 = arith.subf %30, %33 : vector<128x16xf32>
    %35 = math.exp %34 : vector<128x16xf32>
    %cst_24 = arith.constant dense<0.000000e+00> : vector<128xf32>
    %36 = vector.multi_reduction <add>, %35, %cst_24 [1] : vector<128x16xf32> to vector<128xf32>
    %37 = vector.shape_cast %36 : vector<128xf32> to vector<128x1xf32>
    %38 = vector.broadcast %37 : vector<128x1xf32> to vector<128x16xf32>
    %39 = arith.divf %35, %38 : vector<128x16xf32>
    %cst_25 = arith.constant dense<0.000000e+00> : vector<128x64xf32>
    %40 = tpu.matmul %39, %15, %cst_25 {dimension_numbers = #tpu.dot_dimension_numbers<[1], [0], [0], [1], [0, 0, 1, 1], [], []>} : vector<128x16xf32>, vector<16x64xf32>, vector<128x64xf32> -> vector<128x64xf32>
    %41 = arith.mulf %40, %6 : vector<128x64xf32>
    %cst_26 = arith.constant dense<0.000000e+00> : vector<16x64xf32>
    %42 = tpu.matmul %5, %41, %cst_26 {dimension_numbers = #tpu.dot_dimension_numbers<[1], [0], [0], [1], [0, 0, 1, 1], [], []>} : vector<16x128xf32>, vector<128x64xf32>, vector<16x64xf32> -> vector<16x64xf32>
    %c0_27 = arith.constant 0 : index
    %c0_28 = arith.constant 0 : index
    %43 = vector.load %arg18[%c0_27, %c0_28] : memref<32x64xf32, #tpu.memory_space<vmem>>, vector<16x64xf32>
    tpu.vector_store %arg18[%c0_27, %c0_28], %42 {strides = array<i32>} : memref<32x64xf32, #tpu.memory_space<vmem>>, vector<16x64xf32>,
    %44 = vector.extract_strided_slice %11 {offsets = [16, 0], sizes = [16, 64], strides = [1, 1]} : vector<32x64xf32> to vector<16x64xf32>
    %45 = vector.extract_strided_slice %10 {offsets = [16, 0], sizes = [16, 64], strides = [1, 1]} : vector<32x64xf32> to vector<16x64xf32>
    %46 = vector.extract_strided_slice %12 {offsets = [16, 0], sizes = [16, 64], strides = [1, 1]} : vector<32x64xf32> to vector<16x64xf32>
    %cst_29 = arith.constant dense<0.000000e+00> : vector<128x64xf32>
    %47 = tpu.matmul %4, %44, %cst_29 {dimension_numbers = #tpu.dot_dimension_numbers<[1], [0], [0], [1], [0, 0, 1, 1], [], []>} : vector<128x16xf32>, vector<16x64xf32>, vector<128x64xf32> -> vector<128x64xf32>
    %48 = arith.mulf %47, %6 : vector<128x64xf32>
    %cst_30 = arith.constant dense<0.000000e+00> : vector<128x16xf32>
    %49 = tpu.matmul %48, %45, %cst_30 {dimension_numbers = #tpu.dot_dimension_numbers<[1], [1], [0], [0], [0, 0, 1, 0], [], []>} : vector<128x64xf32>, vector<16x64xf32>, vector<128x16xf32> -> vector<128x16xf32>
    %cst_31 = arith.constant 0.353553385 : f32
    %50 = vector.broadcast %cst_31 : f32 to vector<128x16xf32>
    %51 = arith.mulf %49, %50 : vector<128x16xf32>
    %c1 = arith.constant 1 : index
    %c0_32 = arith.constant 0 : index
    %c0_33 = arith.constant 0 : index
    %52 = vector.load %arg17[%c1, %c0_32, %c0_33] : memref<2x128x16xf32, #tpu.memory_space<vmem>>, vector<1x128x16xf32>
    %53 = vector.shape_cast %52 : vector<1x128x16xf32> to vector<128x16xf32>
    %54 = arith.addf %51, %53 : vector<128x16xf32>
    %c1_34 = arith.constant 1 : index
    %c0_35 = arith.constant 0 : index
    %c0_36 = arith.constant 0 : index
    %55 = vector.load %arg17[%c1_34, %c0_35, %c0_36] : memref<2x128x16xf32, #tpu.memory_space<vmem>>, vector<1x128x16xf32>
    %56 = vector.shape_cast %55 : vector<1x128x16xf32> to vector<128x16xf32>
    %57 = vector.shape_cast %54 : vector<128x16xf32> to vector<1x128x16xf32>
    tpu.vector_store %arg17[%c1_34, %c0_35, %c0_36], %57 {strides = array<i32>} : memref<2x128x16xf32, #tpu.memory_space<vmem>>, vector<1x128x16xf32>,
    %c1_37 = arith.constant 1 : index
    %c0_38 = arith.constant 0 : index
    %c0_39 = arith.constant 0 : index
    %58 = vector.load %arg2[%c1_37, %c0_38, %c0_39] : memref<2x1x16xf32, #tpu.memory_space<vmem>>, vector<1x1x16xf32>
    %59 = vector.shape_cast %58 : vector<1x1x16xf32> to vector<1x16xf32>
    %60 = vector.broadcast %59 : vector<1x16xf32> to vector<128x16xf32>
    %61 = arith.addf %54, %60 : vector<128x16xf32>
    %cst_40 = arith.constant dense<0xFF800000> : vector<128xf32>
    %62 = vector.multi_reduction <maximumf>, %61, %cst_40 [1] : vector<128x16xf32> to vector<128xf32>
    %63 = vector.shape_cast %62 : vector<128xf32> to vector<128x1xf32>
    %64 = vector.broadcast %63 : vector<128x1xf32> to vector<128x16xf32>
    %65 = arith.subf %61, %64 : vector<128x16xf32>
    %66 = math.exp %65 : vector<128x16xf32>
    %cst_41 = arith.constant dense<0.000000e+00> : vector<128xf32>
    %67 = vector.multi_reduction <add>, %66, %cst_41 [1] : vector<128x16xf32> to vector<128xf32>
    %68 = vector.shape_cast %67 : vector<128xf32> to vector<128x1xf32>
    %69 = vector.broadcast %68 : vector<128x1xf32> to vector<128x16xf32>
    %70 = arith.divf %66, %69 : vector<128x16xf32>
    %cst_42 = arith.constant dense<0.000000e+00> : vector<128x64xf32>
    %71 = tpu.matmul %70, %46, %cst_42 {dimension_numbers = #tpu.dot_dimension_numbers<[1], [0], [0], [1], [0, 0, 1, 1], [], []>} : vector<128x16xf32>, vector<16x64xf32>, vector<128x64xf32> -> vector<128x64xf32>
    %72 = arith.mulf %71, %6 : vector<128x64xf32>
    %cst_43 = arith.constant dense<0.000000e+00> : vector<16x64xf32>
    %73 = tpu.matmul %5, %72, %cst_43 {dimension_numbers = #tpu.dot_dimension_numbers<[1], [0], [0], [1], [0, 0, 1, 1], [], []>} : vector<16x128xf32>, vector<128x64xf32>, vector<16x64xf32> -> vector<16x64xf32>
    %c16 = arith.constant 16 : index
    %c0_44 = arith.constant 0 : index
    %74 = vector.load %arg18[%c16, %c0_44] : memref<32x64xf32, #tpu.memory_space<vmem>>, vector<16x64xf32>
    tpu.vector_store %arg18[%c16, %c0_44], %73 {strides = array<i32>} : memref<32x64xf32, #tpu.memory_space<vmem>>, vector<16x64xf32>,
    %c0_45 = arith.constant 0 : index
    %c0_46 = arith.constant 0 : index
    %75 = vector.load %arg18[%c0_45, %c0_46] : memref<32x64xf32, #tpu.memory_space<vmem>>, vector<32x64xf32>
    %c0_47 = arith.constant 0 : index
    %c0_48 = arith.constant 0 : index
    %c0_49 = arith.constant 0 : index
    %76 = vector.load %arg7[%c0_47, %c0_48, %c0_49] : memref<1x64x64xf32, #tpu.memory_space<vmem>>, vector<1x64x64xf32>
    %77 = vector.shape_cast %76 : vector<1x64x64xf32> to vector<64x64xf32>
    %cst_50 = arith.constant dense<0.000000e+00> : vector<32x64xf32>
    %78 = tpu.matmul %75, %77, %cst_50 {dimension_numbers = #tpu.dot_dimension_numbers<[1], [0], [0], [1], [0, 0, 1, 1], [], []>} : vector<32x64xf32>, vector<64x64xf32>, vector<32x64xf32> -> vector<32x64xf32>
    %79 = arith.addf %3, %78 : vector<32x64xf32>
    %c0_51 = arith.constant 0 : index
    %c0_52 = arith.constant 0 : index
    %c0_53 = arith.constant 0 : index
    %80 = vector.load %arg8[%c0_51, %c0_52, %c0_53] : memref<1x1x64xf32, #tpu.memory_space<vmem>>, vector<1x1x64xf32>
    %81 = vector.shape_cast %80 : vector<1x1x64xf32> to vector<1x64xf32>
    %c0_54 = arith.constant 0 : index
    %c0_55 = arith.constant 0 : index
    %c0_56 = arith.constant 0 : index
    %82 = vector.load %arg9[%c0_54, %c0_55, %c0_56] : memref<1x1x64xf32, #tpu.memory_space<vmem>>, vector<1x1x64xf32>
    %83 = vector.shape_cast %82 : vector<1x1x64xf32> to vector<1x64xf32>
    %cst_57 = arith.constant dense<0.000000e+00> : vector<32xf32>
    %84 = vector.multi_reduction <add>, %79, %cst_57 [1] : vector<32x64xf32> to vector<32xf32>
    %85 = vector.shape_cast %84 : vector<32xf32> to vector<32x1xf32>
    %cst_58 = arith.constant 6.400000e+01 : f32
    %86 = vector.broadcast %cst_58 : f32 to vector<32x1xf32>
    %87 = arith.divf %85, %86 : vector<32x1xf32>
    %88 = vector.broadcast %87 : vector<32x1xf32> to vector<32x64xf32>
    %89 = arith.subf %79, %88 : vector<32x64xf32>
    %90 = arith.mulf %89, %89 : vector<32x64xf32>
    %cst_59 = arith.constant dense<0.000000e+00> : vector<32xf32>
    %91 = vector.multi_reduction <add>, %90, %cst_59 [1] : vector<32x64xf32> to vector<32xf32>
    %92 = vector.shape_cast %91 : vector<32xf32> to vector<32x1xf32>
    %cst_60 = arith.constant 6.400000e+01 : f32
    %93 = vector.broadcast %cst_60 : f32 to vector<32x1xf32>
    %94 = arith.divf %92, %93 : vector<32x1xf32>
    %95 = vector.broadcast %87 : vector<32x1xf32> to vector<32x64xf32>
    %96 = arith.subf %79, %95 : vector<32x64xf32>
    %cst_61 = arith.constant 9.99999974E-6 : f32
    %97 = vector.broadcast %cst_61 : f32 to vector<32x1xf32>
    %98 = arith.addf %94, %97 : vector<32x1xf32>
    %99 = math.rsqrt %98 : vector<32x1xf32>
    %100 = vector.broadcast %99 : vector<32x1xf32> to vector<32x64xf32>
    %101 = arith.mulf %96, %100 : vector<32x64xf32>
    %102 = vector.broadcast %81 : vector<1x64xf32> to vector<32x64xf32>
    %103 = arith.mulf %101, %102 : vector<32x64xf32>
    %104 = vector.broadcast %83 : vector<1x64xf32> to vector<32x64xf32>
    %105 = arith.addf %103, %104 : vector<32x64xf32>
    %c0_62 = arith.constant 0 : index
    %c0_63 = arith.constant 0 : index
    %c0_64 = arith.constant 0 : index
    %106 = vector.load %arg10[%c0_62, %c0_63, %c0_64] : memref<1x64x256xf32, #tpu.memory_space<vmem>>, vector<1x64x256xf32>
    %107 = vector.shape_cast %106 : vector<1x64x256xf32> to vector<64x256xf32>
    %cst_65 = arith.constant dense<0.000000e+00> : vector<32x256xf32>
    %108 = tpu.matmul %105, %107, %cst_65 {dimension_numbers = #tpu.dot_dimension_numbers<[1], [0], [0], [1], [0, 0, 1, 1], [], []>} : vector<32x64xf32>, vector<64x256xf32>, vector<32x256xf32> -> vector<32x256xf32>
    %c0_66 = arith.constant 0 : index
    %c0_67 = arith.constant 0 : index
    %c0_68 = arith.constant 0 : index
    %109 = vector.load %arg11[%c0_66, %c0_67, %c0_68] : memref<1x1x256xf32, #tpu.memory_space<vmem>>, vector<1x1x256xf32>
    %110 = vector.shape_cast %109 : vector<1x1x256xf32> to vector<1x256xf32>
    %111 = vector.broadcast %110 : vector<1x256xf32> to vector<32x256xf32>
    %112 = arith.addf %108, %111 : vector<32x256xf32>
    %cst_69 = arith.constant 5.000000e-01 : f32
    %113 = vector.broadcast %cst_69 : f32 to vector<32x256xf32>
    %114 = arith.mulf %113, %112 : vector<32x256xf32>
    %cst_70 = arith.constant 0.707106769 : f32
    %115 = vector.broadcast %cst_70 : f32 to vector<32x256xf32>
    %116 = arith.mulf %112, %115 : vector<32x256xf32>
    %cst_71 = arith.constant 0.000000e+00 : f32
    %117 = vector.broadcast %cst_71 : f32 to vector<32x256xf32>
    %118 = arith.cmpf oge, %116, %117 : vector<32x256xf32>
    %cst_72 = arith.constant 1.000000e+00 : f32
    %cst_73 = arith.constant -1.000000e+00 : f32
    %119 = vector.broadcast %cst_72 : f32 to vector<32x256xf32>
    %120 = vector.broadcast %cst_73 : f32 to vector<32x256xf32>
    %121 = arith.select %118, %119, %120 : vector<32x256xi1>, vector<32x256xf32>
    %122 = math.absf %116 : vector<32x256xf32>
    %cst_74 = arith.constant 0.327591091 : f32
    %123 = vector.broadcast %cst_74 : f32 to vector<32x256xf32>
    %124 = arith.mulf %123, %122 : vector<32x256xf32>
    %cst_75 = arith.constant 1.000000e+00 : f32
    %125 = vector.broadcast %cst_75 : f32 to vector<32x256xf32>
    %126 = arith.addf %125, %124 : vector<32x256xf32>
    %cst_76 = arith.constant 1.000000e+00 : f32
    %127 = vector.broadcast %cst_76 : f32 to vector<32x256xf32>
    %128 = arith.divf %127, %126 : vector<32x256xf32>
    %cst_77 = arith.constant 1.06140542 : f32
    %129 = vector.broadcast %cst_77 : f32 to vector<32x256xf32>
    %130 = arith.mulf %129, %128 : vector<32x256xf32>
    %cst_78 = arith.constant -1.45315206 : f32
    %131 = vector.broadcast %cst_78 : f32 to vector<32x256xf32>
    %132 = arith.addf %130, %131 : vector<32x256xf32>
    %133 = arith.mulf %132, %128 : vector<32x256xf32>
    %cst_79 = arith.constant 1.42141378 : f32
    %134 = vector.broadcast %cst_79 : f32 to vector<32x256xf32>
    %135 = arith.addf %133, %134 : vector<32x256xf32>
    %136 = arith.mulf %135, %128 : vector<32x256xf32>
    %cst_80 = arith.constant -0.284496725 : f32
    %137 = vector.broadcast %cst_80 : f32 to vector<32x256xf32>
    %138 = arith.addf %136, %137 : vector<32x256xf32>
    %139 = arith.mulf %138, %128 : vector<32x256xf32>
    %cst_81 = arith.constant 0.254829586 : f32
    %140 = vector.broadcast %cst_81 : f32 to vector<32x256xf32>
    %141 = arith.addf %139, %140 : vector<32x256xf32>
    %142 = arith.mulf %141, %128 : vector<32x256xf32>
    %cst_82 = arith.constant 0.000000e+00 : f32
    %143 = vector.broadcast %cst_82 : f32 to vector<32x256xf32>
    %144 = arith.subf %143, %122 : vector<32x256xf32>
    %145 = arith.mulf %144, %122 : vector<32x256xf32>
    %146 = math.exp %145 : vector<32x256xf32>
    %147 = arith.mulf %142, %146 : vector<32x256xf32>
    %cst_83 = arith.constant 1.000000e+00 : f32
    %148 = vector.broadcast %cst_83 : f32 to vector<32x256xf32>
    %149 = arith.subf %148, %147 : vector<32x256xf32>
    %150 = arith.mulf %121, %149 : vector<32x256xf32>
    %cst_84 = arith.constant 1.000000e+00 : f32
    %151 = vector.broadcast %cst_84 : f32 to vector<32x256xf32>
    %152 = arith.addf %151, %150 : vector<32x256xf32>
    %153 = arith.mulf %114, %152 : vector<32x256xf32>
    %c0_85 = arith.constant 0 : index
    %c0_86 = arith.constant 0 : index
    %c0_87 = arith.constant 0 : index
    %154 = vector.load %arg12[%c0_85, %c0_86, %c0_87] : memref<1x256x64xf32, #tpu.memory_space<vmem>>, vector<1x256x64xf32>
    %155 = vector.shape_cast %154 : vector<1x256x64xf32> to vector<256x64xf32>
    %cst_88 = arith.constant dense<0.000000e+00> : vector<32x64xf32>
    %156 = tpu.matmul %153, %155, %cst_88 {dimension_numbers = #tpu.dot_dimension_numbers<[1], [0], [0], [1], [0, 0, 1, 1], [], []>} : vector<32x256xf32>, vector<256x64xf32>, vector<32x64xf32> -> vector<32x64xf32>
    %c0_89 = arith.constant 0 : index
    %c0_90 = arith.constant 0 : index
    %c0_91 = arith.constant 0 : index
    %157 = vector.load %arg13[%c0_89, %c0_90, %c0_91] : memref<1x1x64xf32, #tpu.memory_space<vmem>>, vector<1x1x64xf32>
    %158 = vector.shape_cast %157 : vector<1x1x64xf32> to vector<1x64xf32>
    %159 = vector.broadcast %158 : vector<1x64xf32> to vector<32x64xf32>
    %160 = arith.addf %156, %159 : vector<32x64xf32>
    %161 = arith.addf %105, %160 : vector<32x64xf32>
    %c0_92 = arith.constant 0 : index
    %c0_93 = arith.constant 0 : index
    %c0_94 = arith.constant 0 : index
    %162 = vector.load %arg14[%c0_92, %c0_93, %c0_94] : memref<1x1x64xf32, #tpu.memory_space<vmem>>, vector<1x1x64xf32>
    %163 = vector.shape_cast %162 : vector<1x1x64xf32> to vector<1x64xf32>
    %c0_95 = arith.constant 0 : index
    %c0_96 = arith.constant 0 : index
    %c0_97 = arith.constant 0 : index
    %164 = vector.load %arg15[%c0_95, %c0_96, %c0_97] : memref<1x1x64xf32, #tpu.memory_space<vmem>>, vector<1x1x64xf32>
    %165 = vector.shape_cast %164 : vector<1x1x64xf32> to vector<1x64xf32>
    %cst_98 = arith.constant dense<0.000000e+00> : vector<32xf32>
    %166 = vector.multi_reduction <add>, %161, %cst_98 [1] : vector<32x64xf32> to vector<32xf32>
    %167 = vector.shape_cast %166 : vector<32xf32> to vector<32x1xf32>
    %cst_99 = arith.constant 6.400000e+01 : f32
    %168 = vector.broadcast %cst_99 : f32 to vector<32x1xf32>
    %169 = arith.divf %167, %168 : vector<32x1xf32>
    %170 = vector.broadcast %169 : vector<32x1xf32> to vector<32x64xf32>
    %171 = arith.subf %161, %170 : vector<32x64xf32>
    %172 = arith.mulf %171, %171 : vector<32x64xf32>
    %cst_100 = arith.constant dense<0.000000e+00> : vector<32xf32>
    %173 = vector.multi_reduction <add>, %172, %cst_100 [1] : vector<32x64xf32> to vector<32xf32>
    %174 = vector.shape_cast %173 : vector<32xf32> to vector<32x1xf32>
    %cst_101 = arith.constant 6.400000e+01 : f32
    %175 = vector.broadcast %cst_101 : f32 to vector<32x1xf32>
    %176 = arith.divf %174, %175 : vector<32x1xf32>
    %177 = vector.broadcast %169 : vector<32x1xf32> to vector<32x64xf32>
    %178 = arith.subf %161, %177 : vector<32x64xf32>
    %cst_102 = arith.constant 9.99999974E-6 : f32
    %179 = vector.broadcast %cst_102 : f32 to vector<32x1xf32>
    %180 = arith.addf %176, %179 : vector<32x1xf32>
    %181 = math.rsqrt %180 : vector<32x1xf32>
    %182 = vector.broadcast %181 : vector<32x1xf32> to vector<32x64xf32>
    %183 = arith.mulf %178, %182 : vector<32x64xf32>
    %184 = vector.broadcast %163 : vector<1x64xf32> to vector<32x64xf32>
    %185 = arith.mulf %183, %184 : vector<32x64xf32>
    %186 = vector.broadcast %165 : vector<1x64xf32> to vector<32x64xf32>
    %187 = arith.addf %185, %186 : vector<32x64xf32>
    %c0_103 = arith.constant 0 : index
    %c0_104 = arith.constant 0 : index
    %188 = vector.load %arg16[%c0_103, %c0_104] : memref<32x64xf32, #tpu.memory_space<vmem>>, vector<32x64xf32>
    tpu.vector_store %arg16[%c0_103, %c0_104], %187 {strides = array<i32>} : memref<32x64xf32, #tpu.memory_space<vmem>>, vector<32x64xf32>,
    return
  }
  func.func @transform_0(%arg0: i32) -> (i32, i32) {
    %c0_i32 = arith.constant 0 : i32
    %c0_i32_0 = arith.constant 0 : i32
    %c0_i32_1 = arith.constant 0 : i32
    return %c0_i32, %c0_i32_0 : i32, i32
  }
  func.func @transform_1(%arg0: i32) -> (i32, i32, i32) {
    %c0_i32 = arith.constant 0 : i32
    %c0_i32_0 = arith.constant 0 : i32
    %c0_i32_1 = arith.constant 0 : i32
    %c0_i32_2 = arith.constant 0 : i32
    return %c0_i32, %c0_i32_0, %c0_i32_1 : i32, i32, i32
  }
  func.func @transform_2(%arg0: i32) -> (i32, i32) {
    %c0_i32 = arith.constant 0 : i32
    %c0_i32_0 = arith.constant 0 : i32
    %c0_i32_1 = arith.constant 0 : i32
    return %c0_i32, %c0_i32_0 : i32, i32
  }
  func.func @transform_3(%arg0: i32) -> (i32, i32) {
    %c0_i32 = arith.constant 0 : i32
    %c0_i32_0 = arith.constant 0 : i32
    %c0_i32_1 = arith.constant 0 : i32
    return %c0_i32, %c0_i32_0 : i32, i32
  }
  func.func @transform_4(%arg0: i32) -> (i32, i32) {
    %c0_i32 = arith.constant 0 : i32
    %c0_i32_0 = arith.constant 0 : i32
    %c0_i32_1 = arith.constant 0 : i32
    return %c0_i32, %c0_i32_0 : i32, i32
  }
  func.func @transform_5(%arg0: i32) -> (i32, i32, i32) {
    %c0_i32 = arith.constant 0 : i32
    %c0_i32_0 = arith.constant 0 : i32
    %c0_i32_1 = arith.constant 0 : i32
    return %arg0, %c0_i32, %c0_i32_0 : i32, i32, i32
  }
  func.func @transform_6(%arg0: i32) -> (i32, i32, i32) {
    %c0_i32 = arith.constant 0 : i32
    %c0_i32_0 = arith.constant 0 : i32
    %c0_i32_1 = arith.constant 0 : i32
    return %arg0, %c0_i32, %c0_i32_0 : i32, i32, i32
  }
  func.func @transform_7(%arg0: i32) -> (i32, i32, i32) {
    %c0_i32 = arith.constant 0 : i32
    %c0_i32_0 = arith.constant 0 : i32
    %c0_i32_1 = arith.constant 0 : i32
    return %arg0, %c0_i32, %c0_i32_0 : i32, i32, i32
  }
  func.func @transform_8(%arg0: i32) -> (i32, i32, i32) {
    %c0_i32 = arith.constant 0 : i32
    %c0_i32_0 = arith.constant 0 : i32
    %c0_i32_1 = arith.constant 0 : i32
    return %arg0, %c0_i32, %c0_i32_0 : i32, i32, i32
  }
  func.func @transform_9(%arg0: i32) -> (i32, i32, i32) {
    %c0_i32 = arith.constant 0 : i32
    %c0_i32_0 = arith.constant 0 : i32
    %c0_i32_1 = arith.constant 0 : i32
    return %arg0, %c0_i32, %c0_i32_0 : i32, i32, i32
  }
  func.func @transform_10(%arg0: i32) -> (i32, i32, i32) {
    %c0_i32 = arith.constant 0 : i32
    %c0_i32_0 = arith.constant 0 : i32
    %c0_i32_1 = arith.constant 0 : i32
    return %arg0, %c0_i32, %c0_i32_0 : i32, i32, i32
  }
  func.func @transform_11(%arg0: i32) -> (i32, i32, i32) {
    %c0_i32 = arith.constant 0 : i32
    %c0_i32_0 = arith.constant 0 : i32
    %c0_i32_1 = arith.constant 0 : i32
    return %arg0, %c0_i32, %c0_i32_0 : i32, i32, i32
  }
  func.func @transform_12(%arg0: i32) -> (i32, i32, i32) {
    %c0_i32 = arith.constant 0 : i32
    %c0_i32_0 = arith.constant 0 : i32
    %c0_i32_1 = arith.constant 0 : i32
    return %arg0, %c0_i32, %c0_i32_0 : i32, i32, i32
  }
  func.func @transform_13(%arg0: i32) -> (i32, i32, i32) {
    %c0_i32 = arith.constant 0 : i32
    %c0_i32_0 = arith.constant 0 : i32
    %c0_i32_1 = arith.constant 0 : i32
    return %arg0, %c0_i32, %c0_i32_0 : i32, i32, i32
  }
  func.func @transform_14(%arg0: i32) -> (i32, i32, i32) {
    %c0_i32 = arith.constant 0 : i32
    %c0_i32_0 = arith.constant 0 : i32
    %c0_i32_1 = arith.constant 0 : i32
    return %arg0, %c0_i32, %c0_i32_0 : i32, i32, i32
  }
  func.func @transform_15(%arg0: i32) -> (i32, i32) {
    %c0_i32 = arith.constant 0 : i32
    %c0_i32_0 = arith.constant 0 : i32
    %c0_i32_1 = arith.constant 0 : i32
    return %c0_i32, %c0_i32_0 : i32, i32
  }
}

</mosaic_0001>

<llo_original>
// kernel: realformer_forward.1
$region0: #{realformer_forward.1}
  #allocation0 [shape = 'u32[]', space=smem, size = 0x4, offset = 0x4, fixed_abs, tag = 'smem constant byte address 0x4 - core index']
  #allocation1 [shape = 'u32[144,128]{1,0:T(1,128)}', space=vmem, size = 0x12000, scoped, tag = 'internal scratch']
  #allocation2 [shape = 'f32[2,128,16]{2,1,0:T(8,128)}', space=vmem, size = 0x20000, scoped, tag = 'scratch operand']
  #allocation3 [shape = 'f32[32,64]{1,0:T(8,128)}', space=vmem, size = 0x4000, scoped, tag = 'scratch operand']
  %s0 = inlined_call_operand.vmem [shape: f32[32,64], index: 0, kind: input, shape index: {}]
  %s1 = inlined_call_operand.vmem [shape: f32[2,1,16], index: 1, kind: input, shape index: {}]
  %s2 = inlined_call_operand.vmem [shape: f32[128,16], index: 2, kind: input, shape index: {}]
  %s3 = inlined_call_operand.vmem [shape: f32[16,128], index: 3, kind: input, shape index: {}]
  %s4 = inlined_call_operand.vmem [shape: f32[128,64], index: 4, kind: input, shape index: {}]
  %s5 = inlined_call_operand.vmem [shape: f32[2,64,192], index: 5, kind: input, shape index: {}]
  %s6 = inlined_call_operand.vmem [shape: f32[2,64,64], index: 6, kind: input, shape index: {}]
  %s7 = inlined_call_operand.vmem [shape: f32[2,1,64], index: 7, kind: input, shape index: {}]
  %s8 = inlined_call_operand.vmem [shape: f32[2,1,64], index: 8, kind: input, shape index: {}]
  %s9 = inlined_call_operand.vmem [shape: f32[2,64,256], index: 9, kind: input, shape index: {}]
  %s10 = inlined_call_operand.vmem [shape: f32[2,1,256], index: 10, kind: input, shape index: {}]
  %s11 = inlined_call_operand.vmem [shape: f32[2,256,64], index: 11, kind: input, shape index: {}]
  %s12 = inlined_call_operand.vmem [shape: f32[2,1,64], index: 12, kind: input, shape index: {}]
  %s13 = inlined_call_operand.vmem [shape: f32[2,1,64], index: 13, kind: input, shape index: {}]
  %s14 = inlined_call_operand.vmem [shape: f32[2,1,64], index: 14, kind: input, shape index: {}]
  %s15 = inlined_call_operand.hbm [shape: f32[32,64], index: 15, kind: output, shape index: {}]
  %s16 = sld [smem:[#allocation0]]
  $region97: #{realformer_forward.1} parent=0
    _
  %s18 = ssub.s32 1, %s16
  %s19 = scalar_select 0, %s18, %s16
  $region1: #{realformer_forward.1} parent=0
    #allocation4 [shape = 'u8[16384]{0}', space=vmem, size = 0x4000, scoped, tag = 'output window, operand 0, single buffered']
    #allocation5 [shape = 's32[2]{0}', space=sflag, size = 0x8, scoped, tag = 'scoped memory for realformer_forward.1']
    %20 = vsyncpa [#allocation5], 0
    loop: start=0, step=1, limit=4
    $region2: #{realformer_forward.1} parent=1 // loop_pre_header
      _
    $region3: #{realformer_forward.1} parent=1 // loop_header
      %s22 = sphi 0, %s26
      %p23 = scmp.ge.s32.totalorder %s22, 4
      %s30 = sphi 0, %s30
      %s32 = sphi 0, %s30
      %s33 = sphi 0, %s32
      %s47 = sphi 0, %s33
      %s51 = sphi 0, %s51
      %s53 = sphi 0, %s51
      %s54 = sphi 0, %s53
      %s68 = sphi 0, %s54
      %s72 = sphi 0, %s72
      %s74 = sphi 0, %s72
      %s75 = sphi 0, %s74
      %s89 = sphi 0, %s75
      %s93 = sphi 0, %s93
      %s95 = sphi 0, %s93
      %s96 = sphi 0, %s95
      %s110 = sphi 0, %s96
      %s114 = sphi 0, %s114
      %s116 = sphi 0, %s114
      %s117 = sphi 0, %s116
      %s131 = sphi 0, %s117
      %s137 = sphi 0, %s139
      %s140 = sphi 0, %s137
      %s141 = sphi 0, %s140
      %s157 = sphi 0, %s141
      %s163 = sphi 0, %s165
      %s166 = sphi 0, %s163
      %s167 = sphi 0, %s166
      %s183 = sphi 0, %s167
      %s189 = sphi 0, %s191
      %s192 = sphi 0, %s189
      %s193 = sphi 0, %s192
      %s209 = sphi 0, %s193
      %s215 = sphi 0, %s217
      %s218 = sphi 0, %s215
      %s219 = sphi 0, %s218
      %s235 = sphi 0, %s219
      %s241 = sphi 0, %s243
      %s244 = sphi 0, %s241
      %s245 = sphi 0, %s244
      %s261 = sphi 0, %s245
      %s267 = sphi 0, %s269
      %s270 = sphi 0, %s267
      %s271 = sphi 0, %s270
      %s287 = sphi 0, %s271
      %s293 = sphi 0, %s295
      %s296 = sphi 0, %s293
      %s297 = sphi 0, %s296
      %s313 = sphi 0, %s297
      %s319 = sphi 0, %s321
      %s322 = sphi 0, %s319
      %s323 = sphi 0, %s322
      %s339 = sphi 0, %s323
      %s345 = sphi 0, %s347
      %s348 = sphi 0, %s345
      %s349 = sphi 0, %s348
      %s365 = sphi 0, %s349
      %s371 = sphi 0, %s373
      %s374 = sphi 0, %s371
      %s375 = sphi 0, %s374
      %s391 = sphi 0, %s375
      %s395 = sphi 0, %s395
      %s397 = sphi 0, %s395
      %s398 = sphi 0, %s397
      %s412 = sphi 0, %s398
    $region4: #{realformer_forward.1} parent=1 // loop_header_branch
      %25 = sbr.rel (%p23) target = $region8
    $region5: #{realformer_forward.1} parent=1 // loop_body
      %s27 = ssub.s32 %s22, 1
      %s28 = ssub.s32 %s22, 2
      %s29 = sadd.s32 %s22, 1
      %s31 = sadd.s32 %s30, 1
      %p34 = scmp.eq.s32.totalorder %s22, 1
      %p35 = scmp.ne.s32.totalorder %s30, %s32
      %p36 = scmp.eq.s32.totalorder %s22, 0
      %p37 = por %p35, %p36
      %p38 = scmp.ne.s32.totalorder %s30, %s32
      %p39 = scmp.eq.s32.totalorder %s27, 1
      %p40 = por %p38, %p39
      %p41 = scmp.ne.s32.totalorder %s32, %s33
      %p42 = scmp.eq.s32.totalorder %s27, 0
      %p43 = por %p41, %p42
      %p44 = scmp.ne.s32.totalorder %s32, %s33
      %p45 = scmp.eq.s32.totalorder %s28, 1
      %p46 = por %p44, %p45
      %p48 = scmp.ne.s32.totalorder %s33, %s47
      %p49 = scmp.eq.s32.totalorder %s28, 0
      %p50 = por %p48, %p49
      %s52 = sadd.s32 %s51, 1
      %p55 = scmp.eq.s32.totalorder %s22, 1
      %p56 = scmp.ne.s32.totalorder %s51, %s53
      %p57 = scmp.eq.s32.totalorder %s22, 0
      %p58 = por %p56, %p57
      %p59 = scmp.ne.s32.totalorder %s51, %s53
      %p60 = scmp.eq.s32.totalorder %s27, 1
      %p61 = por %p59, %p60
      %p62 = scmp.ne.s32.totalorder %s53, %s54
      %p63 = scmp.eq.s32.totalorder %s27, 0
      %p64 = por %p62, %p63
      %p65 = scmp.ne.s32.totalorder %s53, %s54
      %p66 = scmp.eq.s32.totalorder %s28, 1
      %p67 = por %p65, %p66
      %p69 = scmp.ne.s32.totalorder %s54, %s68
      %p70 = scmp.eq.s32.totalorder %s28, 0
      %p71 = por %p69, %p70
      %s73 = sadd.s32 %s72, 1
      %p76 = scmp.eq.s32.totalorder %s22, 1
      %p77 = scmp.ne.s32.totalorder %s72, %s74
      %p78 = scmp.eq.s32.totalorder %s22, 0
      %p79 = por %p77, %p78
      %p80 = scmp.ne.s32.totalorder %s72, %s74
      %p81 = scmp.eq.s32.totalorder %s27, 1
      %p82 = por %p80, %p81
      %p83 = scmp.ne.s32.totalorder %s74, %s75
      %p84 = scmp.eq.s32.totalorder %s27, 0
      %p85 = por %p83, %p84
      %p86 = scmp.ne.s32.totalorder %s74, %s75
      %p87 = scmp.eq.s32.totalorder %s28, 1
      %p88 = por %p86, %p87
      %p90 = scmp.ne.s32.totalorder %s75, %s89
      %p91 = scmp.eq.s32.totalorder %s28, 0
      %p92 = por %p90, %p91
      %s94 = sadd.s32 %s93, 1
      %p97 = scmp.eq.s32.totalorder %s22, 1
      %p98 = scmp.ne.s32.totalorder %s93, %s95
      %p99 = scmp.eq.s32.totalorder %s22, 0
      %p100 = por %p98, %p99
      %p101 = scmp.ne.s32.totalorder %s93, %s95
      %p102 = scmp.eq.s32.totalorder %s27, 1
      %p103 = por %p101, %p102
      %p104 = scmp.ne.s32.totalorder %s95, %s96
      %p105 = scmp.eq.s32.totalorder %s27, 0
      %p106 = por %p104, %p105
      %p107 = scmp.ne.s32.totalorder %s95, %s96
      %p108 = scmp.eq.s32.totalorder %s28, 1
      %p109 = por %p107, %p108
      %p111 = scmp.ne.s32.totalorder %s96, %s110
      %p112 = scmp.eq.s32.totalorder %s28, 0
      %p113 = por %p111, %p112
      %s115 = sadd.s32 %s114, 1
      %p118 = scmp.eq.s32.totalorder %s22, 1
      %p119 = scmp.ne.s32.totalorder %s114, %s116
      %p120 = scmp.eq.s32.totalorder %s22, 0
      %p121 = por %p119, %p120
      %p122 = scmp.ne.s32.totalorder %s114, %s116
      %p123 = scmp.eq.s32.totalorder %s27, 1
      %p124 = por %p122, %p123
      %p125 = scmp.ne.s32.totalorder %s116, %s117
      %p126 = scmp.eq.s32.totalorder %s27, 0
      %p127 = por %p125, %p126
      %p128 = scmp.ne.s32.totalorder %s116, %s117
      %p129 = scmp.eq.s32.totalorder %s28, 1
      %p130 = por %p128, %p129
      %p132 = scmp.ne.s32.totalorder %s117, %s131
      %p133 = scmp.eq.s32.totalorder %s28, 0
      %p134 = por %p132, %p133
      %s135 = ssub.s32 %s22, %s29
      %p136 = scmp.eq.s32.totalorder %s135, 0
      %s138 = sadd.s32 %s137, 1
      %s139 = scalar_select %p136, %s137, %s138
      %p142 = pneg %p136
      %p143 = scmp.eq.s32.totalorder %s22, 1
      %p144 = por %p142, %p143
      %p145 = scmp.ne.s32.totalorder %s137, %s140
      %p146 = scmp.eq.s32.totalorder %s22, 0
      %p147 = por %p145, %p146
      %p148 = scmp.ne.s32.totalorder %s137, %s140
      %p149 = scmp.eq.s32.totalorder %s27, 1
      %p150 = por %p148, %p149
      %p151 = scmp.ne.s32.totalorder %s140, %s141
      %p152 = scmp.eq.s32.totalorder %s27, 0
      %p153 = por %p151, %p152
      %p154 = scmp.ne.s32.totalorder %s140, %s141
      %p155 = scmp.eq.s32.totalorder %s28, 1
      %p156 = por %p154, %p155
      %p158 = scmp.ne.s32.totalorder %s141, %s157
      %p159 = scmp.eq.s32.totalorder %s28, 0
      %p160 = por %p158, %p159
      %s161 = ssub.s32 %s22, %s29
      %p162 = scmp.eq.s32.totalorder %s161, 0
      %s164 = sadd.s32 %s163, 1
      %s165 = scalar_select %p162, %s163, %s164
      %p168 = pneg %p162
      %p169 = scmp.eq.s32.totalorder %s22, 1
      %p170 = por %p168, %p169
      %p171 = scmp.ne.s32.totalorder %s163, %s166
      %p172 = scmp.eq.s32.totalorder %s22, 0
      %p173 = por %p171, %p172
      %p174 = scmp.ne.s32.totalorder %s163, %s166
      %p175 = scmp.eq.s32.totalorder %s27, 1
      %p176 = por %p174, %p175
      %p177 = scmp.ne.s32.totalorder %s166, %s167
      %p178 = scmp.eq.s32.totalorder %s27, 0
      %p179 = por %p177, %p178
      %p180 = scmp.ne.s32.totalorder %s166, %s167
      %p181 = scmp.eq.s32.totalorder %s28, 1
      %p182 = por %p180, %p181
      %p184 = scmp.ne.s32.totalorder %s167, %s183
      %p185 = scmp.eq.s32.totalorder %s28, 0
      %p186 = por %p184, %p185
      %s187 = ssub.s32 %s22, %s29
      %p188 = scmp.eq.s32.totalorder %s187, 0
      %s190 = sadd.s32 %s189, 1
      %s191 = scalar_select %p188, %s189, %s190
      %p194 = pneg %p188
      %p195 = scmp.eq.s32.totalorder %s22, 1
      %p196 = por %p194, %p195
      %p197 = scmp.ne.s32.totalorder %s189, %s192
      %p198 = scmp.eq.s32.totalorder %s22, 0
      %p199 = por %p197, %p198
      %p200 = scmp.ne.s32.totalorder %s189, %s192
      %p201 = scmp.eq.s32.totalorder %s27, 1
      %p202 = por %p200, %p201
      %p203 = scmp.ne.s32.totalorder %s192, %s193
      %p204 = scmp.eq.s32.totalorder %s27, 0
      %p205 = por %p203, %p204
      %p206 = scmp.ne.s32.totalorder %s192, %s193
      %p207 = scmp.eq.s32.totalorder %s28, 1
      %p208 = por %p206, %p207
      %p210 = scmp.ne.s32.totalorder %s193, %s209
      %p211 = scmp.eq.s32.totalorder %s28, 0
      %p212 = por %p210, %p211
      %s213 = ssub.s32 %s22, %s29
      %p214 = scmp.eq.s32.totalorder %s213, 0
      %s216 = sadd.s32 %s215, 1
      %s217 = scalar_select %p214, %s215, %s216
      %p220 = pneg %p214
      %p221 = scmp.eq.s32.totalorder %s22, 1
      %p222 = por %p220, %p221
      %p223 = scmp.ne.s32.totalorder %s215, %s218
      %p224 = scmp.eq.s32.totalorder %s22, 0
      %p225 = por %p223, %p224
      %p226 = scmp.ne.s32.totalorder %s215, %s218
      %p227 = scmp.eq.s32.totalorder %s27, 1
      %p228 = por %p226, %p227
      %p229 = scmp.ne.s32.totalorder %s218, %s219
      %p230 = scmp.eq.s32.totalorder %s27, 0
      %p231 = por %p229, %p230
      %p232 = scmp.ne.s32.totalorder %s218, %s219
      %p233 = scmp.eq.s32.totalorder %s28, 1
      %p234 = por %p232, %p233
      %p236 = scmp.ne.s32.totalorder %s219, %s235
      %p237 = scmp.eq.s32.totalorder %s28, 0
      %p238 = por %p236, %p237
      %s239 = ssub.s32 %s22, %s29
      %p240 = scmp.eq.s32.totalorder %s239, 0
      %s242 = sadd.s32 %s241, 1
      %s243 = scalar_select %p240, %s241, %s242
      %p246 = pneg %p240
      %p247 = scmp.eq.s32.totalorder %s22, 1
      %p248 = por %p246, %p247
      %p249 = scmp.ne.s32.totalorder %s241, %s244
      %p250 = scmp.eq.s32.totalorder %s22, 0
      %p251 = por %p249, %p250
      %p252 = scmp.ne.s32.totalorder %s241, %s244
      %p253 = scmp.eq.s32.totalorder %s27, 1
      %p254 = por %p252, %p253
      %p255 = scmp.ne.s32.totalorder %s244, %s245
      %p256 = scmp.eq.s32.totalorder %s27, 0
      %p257 = por %p255, %p256
      %p258 = scmp.ne.s32.totalorder %s244, %s245
      %p259 = scmp.eq.s32.totalorder %s28, 1
      %p260 = por %p258, %p259
      %p262 = scmp.ne.s32.totalorder %s245, %s261
      %p263 = scmp.eq.s32.totalorder %s28, 0
      %p264 = por %p262, %p263
      %s265 = ssub.s32 %s22, %s29
      %p266 = scmp.eq.s32.totalorder %s265, 0
      %s268 = sadd.s32 %s267, 1
      %s269 = scalar_select %p266, %s267, %s268
      %p272 = pneg %p266
      %p273 = scmp.eq.s32.totalorder %s22, 1
      %p274 = por %p272, %p273
      %p275 = scmp.ne.s32.totalorder %s267, %s270
      %p276 = scmp.eq.s32.totalorder %s22, 0
      %p277 = por %p275, %p276
      %p278 = scmp.ne.s32.totalorder %s267, %s270
      %p279 = scmp.eq.s32.totalorder %s27, 1
      %p280 = por %p278, %p279
      %p281 = scmp.ne.s32.totalorder %s270, %s271
      %p282 = scmp.eq.s32.totalorder %s27, 0
      %p283 = por %p281, %p282
      %p284 = scmp.ne.s32.totalorder %s270, %s271
      %p285 = scmp.eq.s32.totalorder %s28, 1
      %p286 = por %p284, %p285
      %p288 = scmp.ne.s32.totalorder %s271, %s287
      %p289 = scmp.eq.s32.totalorder %s28, 0
      %p290 = por %p288, %p289
      %s291 = ssub.s32 %s22, %s29
      %p292 = scmp.eq.s32.totalorder %s291, 0
      %s294 = sadd.s32 %s293, 1
      %s295 = scalar_select %p292, %s293, %s294
      %p298 = pneg %p292
      %p299 = scmp.eq.s32.totalorder %s22, 1
      %p300 = por %p298, %p299
      %p301 = scmp.ne.s32.totalorder %s293, %s296
      %p302 = scmp.eq.s32.totalorder %s22, 0
      %p303 = por %p301, %p302
      %p304 = scmp.ne.s32.totalorder %s293, %s296
      %p305 = scmp.eq.s32.totalorder %s27, 1
      %p306 = por %p304, %p305
      %p307 = scmp.ne.s32.totalorder %s296, %s297
      %p308 = scmp.eq.s32.totalorder %s27, 0
      %p309 = por %p307, %p308
      %p310 = scmp.ne.s32.totalorder %s296, %s297
      %p311 = scmp.eq.s32.totalorder %s28, 1
      %p312 = por %p310, %p311
      %p314 = scmp.ne.s32.totalorder %s297, %s313
      %p315 = scmp.eq.s32.totalorder %s28, 0
      %p316 = por %p314, %p315
      %s317 = ssub.s32 %s22, %s29
      %p318 = scmp.eq.s32.totalorder %s317, 0
      %s320 = sadd.s32 %s319, 1
      %s321 = scalar_select %p318, %s319, %s320
      %p324 = pneg %p318
      %p325 = scmp.eq.s32.totalorder %s22, 1
      %p326 = por %p324, %p325
      %p327 = scmp.ne.s32.totalorder %s319, %s322
      %p328 = scmp.eq.s32.totalorder %s22, 0
      %p329 = por %p327, %p328
      %p330 = scmp.ne.s32.totalorder %s319, %s322
      %p331 = scmp.eq.s32.totalorder %s27, 1
      %p332 = por %p330, %p331
      %p333 = scmp.ne.s32.totalorder %s322, %s323
      %p334 = scmp.eq.s32.totalorder %s27, 0
      %p335 = por %p333, %p334
      %p336 = scmp.ne.s32.totalorder %s322, %s323
      %p337 = scmp.eq.s32.totalorder %s28, 1
      %p338 = por %p336, %p337
      %p340 = scmp.ne.s32.totalorder %s323, %s339
      %p341 = scmp.eq.s32.totalorder %s28, 0
      %p342 = por %p340, %p341
      %s343 = ssub.s32 %s22, %s29
      %p344 = scmp.eq.s32.totalorder %s343, 0
      %s346 = sadd.s32 %s345, 1
      %s347 = scalar_select %p344, %s345, %s346
      %p350 = pneg %p344
      %p351 = scmp.eq.s32.totalorder %s22, 1
      %p352 = por %p350, %p351
      %p353 = scmp.ne.s32.totalorder %s345, %s348
      %p354 = scmp.eq.s32.totalorder %s22, 0
      %p355 = por %p353, %p354
      %p356 = scmp.ne.s32.totalorder %s345, %s348
      %p357 = scmp.eq.s32.totalorder %s27, 1
      %p358 = por %p356, %p357
      %p359 = scmp.ne.s32.totalorder %s348, %s349
      %p360 = scmp.eq.s32.totalorder %s27, 0
      %p361 = por %p359, %p360
      %p362 = scmp.ne.s32.totalorder %s348, %s349
      %p363 = scmp.eq.s32.totalorder %s28, 1
      %p364 = por %p362, %p363
      %p366 = scmp.ne.s32.totalorder %s349, %s365
      %p367 = scmp.eq.s32.totalorder %s28, 0
      %p368 = por %p366, %p367
      %s369 = ssub.s32 %s22, %s29
      %p370 = scmp.eq.s32.totalorder %s369, 0
      %s372 = sadd.s32 %s371, 1
      %s373 = scalar_select %p370, %s371, %s372
      %p376 = pneg %p370
      %p377 = scmp.eq.s32.totalorder %s22, 1
      %p378 = por %p376, %p377
      %p379 = scmp.ne.s32.totalorder %s371, %s374
      %p380 = scmp.eq.s32.totalorder %s22, 0
      %p381 = por %p379, %p380
      %p382 = scmp.ne.s32.totalorder %s371, %s374
      %p383 = scmp.eq.s32.totalorder %s27, 1
      %p384 = por %p382, %p383
      %p385 = scmp.ne.s32.totalorder %s374, %s375
      %p386 = scmp.eq.s32.totalorder %s27, 0
      %p387 = por %p385, %p386
      %p388 = scmp.ne.s32.totalorder %s374, %s375
      %p389 = scmp.eq.s32.totalorder %s28, 1
      %p390 = por %p388, %p389
      %p392 = scmp.ne.s32.totalorder %s375, %s391
      %p393 = scmp.eq.s32.totalorder %s28, 0
      %p394 = por %p392, %p393
      %s396 = sadd.s32 %s395, 1
      %p399 = scmp.eq.s32.totalorder %s22, 1
      %p400 = scmp.ne.s32.totalorder %s395, %s397
      %p401 = scmp.eq.s32.totalorder %s22, 0
      %p402 = por %p400, %p401
      %p403 = scmp.ne.s32.totalorder %s395, %s397
      %p404 = scmp.eq.s32.totalorder %s27, 1
      %p405 = por %p403, %p404
      %p406 = scmp.ne.s32.totalorder %s397, %s398
      %p407 = scmp.eq.s32.totalorder %s27, 0
      %p408 = por %p406, %p407
      %p409 = scmp.ne.s32.totalorder %s397, %s398
      %p410 = scmp.eq.s32.totalorder %s28, 1
      %p411 = por %p409, %p410
      %p413 = scmp.ne.s32.totalorder %s398, %s412
      %p414 = scmp.eq.s32.totalorder %s28, 0
      %p415 = por %p413, %p414
      %p416 = scmp.le.s32.totalorder 1, %s22
      %p417 = scmp.lt.s32.totalorder %s22, 3
      %p418 = pnand %p416, %p417
      %p419 = pneg %p418
      // Predicated region
      $region9: #{realformer_forward.1} parent=5 // pred_check
        _
      $region10: #{realformer_forward.1} parent=5 // pred_check_branch
        %421 = sbr.rel (%p418) target = $region12
      $region11: #{realformer_forward.1} parent=5 // pred_region
        %s422 = ssub.s32 %s22, 1
        // Predicated region
        $region13: #{realformer_forward.1} parent=11 // pred_check
          %p423 = pneg %p43
        $region14: #{realformer_forward.1} parent=11 // pred_check_branch
          %425 = sbr.rel (%p423) target = $region16
        $region15: #{realformer_forward.1} parent=11 // pred_region
          _
        $region16: #{realformer_forward.1} parent=11 // pred_fallthru
          _
        // Predicated region
        $region17: #{realformer_forward.1} parent=11 // pred_check
          %p426 = pneg %p64
        $region18: #{realformer_forward.1} parent=11 // pred_check_branch
          %428 = sbr.rel (%p426) target = $region20
        $region19: #{realformer_forward.1} parent=11 // pred_region
          _
        $region20: #{realformer_forward.1} parent=11 // pred_fallthru
          _
        // Predicated region
        $region21: #{realformer_forward.1} parent=11 // pred_check
          %p429 = pneg %p85
        $region22: #{realformer_forward.1} parent=11 // pred_check_branch
          %431 = sbr.rel (%p429) target = $region24
        $region23: #{realformer_forward.1} parent=11 // pred_region
          _
        $region24: #{realformer_forward.1} parent=11 // pred_fallthru
          _
        // Predicated region
        $region25: #{realformer_forward.1} parent=11 // pred_check
          %p432 = pneg %p106
        $region26: #{realformer_forward.1} parent=11 // pred_check_branch
          %434 = sbr.rel (%p432) target = $region28
        $region27: #{realformer_forward.1} parent=11 // pred_region
          _
        $region28: #{realformer_forward.1} parent=11 // pred_fallthru
          _
        // Predicated region
        $region29: #{realformer_forward.1} parent=11 // pred_check
          %p435 = pneg %p127
        $region30: #{realformer_forward.1} parent=11 // pred_check_branch
          %437 = sbr.rel (%p435) target = $region32
        $region31: #{realformer_forward.1} parent=11 // pred_region
          _
        $region32: #{realformer_forward.1} parent=11 // pred_fallthru
          _
      $region12: #{realformer_forward.1} parent=5 // pred_fallthru
        _
      %p438 = scmp.lt.s32.totalorder %s22, 2
      // Predicated region
      $region33: #{realformer_forward.1} parent=5 // pred_check
        %p439 = pneg %p438
      $region34: #{realformer_forward.1} parent=5 // pred_check_branch
        %441 = sbr.rel (%p439) target = $region36
      $region35: #{realformer_forward.1} parent=5 // pred_region
        // Predicated region
        $region37: #{realformer_forward.1} parent=35 // pred_check
          %p442 = pneg %p147
        $region38: #{realformer_forward.1} parent=35 // pred_check_branch
          %444 = sbr.rel (%p442) target = $region40
        $region39: #{realformer_forward.1} parent=35 // pred_region
          %p445 = scmp.lt.s32.totalorder %s22, 1
          %s446 = scalar_select %p445, %s22, 1
          %s447 = smul.addr %s446, 16
          %s448 = smul.addr %s447, 8
          %s449 = scalar_lea.vmem %s5, %s448
        $region40: #{realformer_forward.1} parent=35 // pred_fallthru
          _
        // Predicated region
        $region41: #{realformer_forward.1} parent=35 // pred_check
          %p450 = pneg %p173
        $region42: #{realformer_forward.1} parent=35 // pred_check_branch
          %452 = sbr.rel (%p450) target = $region44
        $region43: #{realformer_forward.1} parent=35 // pred_region
          %p453 = scmp.lt.s32.totalorder %s22, 1
          %s454 = scalar_select %p453, %s22, 1
          %s455 = smul.addr %s454, 8
          %s456 = smul.addr %s455, 8
          %s457 = scalar_lea.vmem %s6, %s456
        $region44: #{realformer_forward.1} parent=35 // pred_fallthru
          _
        // Predicated region
        $region45: #{realformer_forward.1} parent=35 // pred_check
          %p458 = pneg %p199
        $region46: #{realformer_forward.1} parent=35 // pred_check_branch
          %460 = sbr.rel (%p458) target = $region48
        $region47: #{realformer_forward.1} parent=35 // pred_region
          %p461 = scmp.lt.s32.totalorder %s22, 1
          %s462 = scalar_select %p461, %s22, 1
          %s463 = scalar_lea.vmem %s7, %s462
        $region48: #{realformer_forward.1} parent=35 // pred_fallthru
          _
        // Predicated region
        $region49: #{realformer_forward.1} parent=35 // pred_check
          %p464 = pneg %p225
        $region50: #{realformer_forward.1} parent=35 // pred_check_branch
          %466 = sbr.rel (%p464) target = $region52
        $region51: #{realformer_forward.1} parent=35 // pred_region
          %p467 = scmp.lt.s32.totalorder %s22, 1
          %s468 = scalar_select %p467, %s22, 1
          %s469 = scalar_lea.vmem %s8, %s468
        $region52: #{realformer_forward.1} parent=35 // pred_fallthru
          _
        // Predicated region
        $region53: #{realformer_forward.1} parent=35 // pred_check
          %p470 = pneg %p251
        $region54: #{realformer_forward.1} parent=35 // pred_check_branch
          %472 = sbr.rel (%p470) target = $region56
        $region55: #{realformer_forward.1} parent=35 // pred_region
          %p473 = scmp.lt.s32.totalorder %s22, 1
          %s474 = scalar_select %p473, %s22, 1
          %s475 = smul.addr %s474, 16
          %s476 = smul.addr %s475, 8
          %s477 = scalar_lea.vmem %s9, %s476
        $region56: #{realformer_forward.1} parent=35 // pred_fallthru
          _
        // Predicated region
        $region57: #{realformer_forward.1} parent=35 // pred_check
          %p478 = pneg %p277
        $region58: #{realformer_forward.1} parent=35 // pred_check_branch
          %480 = sbr.rel (%p478) target = $region60
        $region59: #{realformer_forward.1} parent=35 // pred_region
          %p481 = scmp.lt.s32.totalorder %s22, 1
          %s482 = scalar_select %p481, %s22, 1
          %s483 = smul.addr %s482, 2
          %s484 = scalar_lea.vmem %s10, %s483
        $region60: #{realformer_forward.1} parent=35 // pred_fallthru
          _
        // Predicated region
        $region61: #{realformer_forward.1} parent=35 // pred_check
          %p485 = pneg %p303
        $region62: #{realformer_forward.1} parent=35 // pred_check_branch
          %487 = sbr.rel (%p485) target = $region64
        $region63: #{realformer_forward.1} parent=35 // pred_region
          %p488 = scmp.lt.s32.totalorder %s22, 1
          %s489 = scalar_select %p488, %s22, 1
          %s490 = smul.addr %s489, 32
          %s491 = smul.addr %s490, 8
          %s492 = scalar_lea.vmem %s11, %s491
        $region64: #{realformer_forward.1} parent=35 // pred_fallthru
          _
        // Predicated region
        $region65: #{realformer_forward.1} parent=35 // pred_check
          %p493 = pneg %p329
        $region66: #{realformer_forward.1} parent=35 // pred_check_branch
          %495 = sbr.rel (%p493) target = $region68
        $region67: #{realformer_forward.1} parent=35 // pred_region
          %p496 = scmp.lt.s32.totalorder %s22, 1
          %s497 = scalar_select %p496, %s22, 1
          %s498 = scalar_lea.vmem %s12, %s497
        $region68: #{realformer_forward.1} parent=35 // pred_fallthru
          _
        // Predicated region
        $region69: #{realformer_forward.1} parent=35 // pred_check
          %p499 = pneg %p355
        $region70: #{realformer_forward.1} parent=35 // pred_check_branch
          %501 = sbr.rel (%p499) target = $region72
        $region71: #{realformer_forward.1} parent=35 // pred_region
          %p502 = scmp.lt.s32.totalorder %s22, 1
          %s503 = scalar_select %p502, %s22, 1
          %s504 = scalar_lea.vmem %s13, %s503
        $region72: #{realformer_forward.1} parent=35 // pred_fallthru
          _
        // Predicated region
        $region73: #{realformer_forward.1} parent=35 // pred_check
          %p505 = pneg %p381
        $region74: #{realformer_forward.1} parent=35 // pred_check_branch
          %507 = sbr.rel (%p505) target = $region76
        $region75: #{realformer_forward.1} parent=35 // pred_region
          %p508 = scmp.lt.s32.totalorder %s22, 1
          %s509 = scalar_select %p508, %s22, 1
          %s510 = scalar_lea.vmem %s14, %s509
        $region76: #{realformer_forward.1} parent=35 // pred_fallthru
          _
      $region36: #{realformer_forward.1} parent=5 // pred_fallthru
        _
      %p511 = scmp.le.s32.totalorder 1, %s22
      %p512 = scmp.lt.s32.totalorder %s22, 3
      %p513 = pnand %p511, %p512
      %p514 = pneg %p513
      // Predicated region
      $region77: #{realformer_forward.1} parent=5 // pred_check
        _
      $region78: #{realformer_forward.1} parent=5 // pred_check_branch
        %516 = sbr.rel (%p513) target = $region80
      $region79: #{realformer_forward.1} parent=5 // pred_region
        %s517 = ssub.s32 %s22, 1
        %p518 = pneg %p43
        %p519 = pneg %p40
        %p520 = pneg %p64
        %p521 = pneg %p61
        %p522 = pneg %p85
        %p523 = pneg %p82
        %p524 = pneg %p106
        %p525 = pneg %p103
        %p526 = pneg %p127
        %p527 = pneg %p124
        %p528 = scmp.lt.s32.totalorder %s27, 1
        %s529 = scalar_select %p528, %s27, 1
        %s530 = smul.addr %s529, 16
        %s531 = smul.addr %s530, 8
        %s532 = scalar_lea.vmem %s5, %s531
        %p533 = pneg %p153
        %p534 = pneg %p150
        %p535 = scmp.lt.s32.totalorder %s27, 1
        %s536 = scalar_select %p535, %s27, 1
        %s537 = smul.addr %s536, 8
        %s538 = smul.addr %s537, 8
        %s539 = scalar_lea.vmem %s6, %s538
        %p540 = pneg %p179
        %p541 = pneg %p176
        %p542 = scmp.lt.s32.totalorder %s27, 1
        %s543 = scalar_select %p542, %s27, 1
        %s544 = scalar_lea.vmem %s7, %s543
        %p545 = pneg %p205
        %p546 = pneg %p202
        %p547 = scmp.lt.s32.totalorder %s27, 1
        %s548 = scalar_select %p547, %s27, 1
        %s549 = scalar_lea.vmem %s8, %s548
        %p550 = pneg %p231
        %p551 = pneg %p228
        %p552 = scmp.lt.s32.totalorder %s27, 1
        %s553 = scalar_select %p552, %s27, 1
        %s554 = smul.addr %s553, 16
        %s555 = smul.addr %s554, 8
        %s556 = scalar_lea.vmem %s9, %s555
        %p557 = pneg %p257
        %p558 = pneg %p254
        %p559 = scmp.lt.s32.totalorder %s27, 1
        %s560 = scalar_select %p559, %s27, 1
        %s561 = smul.addr %s560, 2
        %s562 = scalar_lea.vmem %s10, %s561
        %p563 = pneg %p283
        %p564 = pneg %p280
        %p565 = scmp.lt.s32.totalorder %s27, 1
        %s566 = scalar_select %p565, %s27, 1
        %s567 = smul.addr %s566, 32
        %s568 = smul.addr %s567, 8
        %s569 = scalar_lea.vmem %s11, %s568
        %p570 = pneg %p309
        %p571 = pneg %p306
        %p572 = scmp.lt.s32.totalorder %s27, 1
        %s573 = scalar_select %p572, %s27, 1
        %s574 = scalar_lea.vmem %s12, %s573
        %p575 = pneg %p335
        %p576 = pneg %p332
        %p577 = scmp.lt.s32.totalorder %s27, 1
        %s578 = scalar_select %p577, %s27, 1
        %s579 = scalar_lea.vmem %s13, %s578
        %p580 = pneg %p361
        %p581 = pneg %p358
        %p582 = scmp.lt.s32.totalorder %s27, 1
        %s583 = scalar_select %p582, %s27, 1
        %s584 = scalar_lea.vmem %s14, %s583
        %p585 = pneg %p387
        %p586 = pneg %p384
        %p587 = pneg %p408
        %p588 = pneg %p405
        %p589 = scmp.lt.s32.totalorder %s27, 1
        %s590 = scalar_select %p589, %s27, 1
        %s591 = smul.addr %s590, 16
        %s592 = smul.addr %s591, 8
        %s593 = scalar_lea.vmem %s5, %s592
        %p594 = scmp.lt.s32.totalorder %s27, 1
        %s595 = scalar_select %p594, %s27, 1
        %s596 = smul.addr %s595, 8
        %s597 = smul.addr %s596, 8
        %s598 = scalar_lea.vmem %s6, %s597
        %p599 = scmp.lt.s32.totalorder %s27, 1
        %s600 = scalar_select %p599, %s27, 1
        %s601 = scalar_lea.vmem %s7, %s600
        %p602 = scmp.lt.s32.totalorder %s27, 1
        %s603 = scalar_select %p602, %s27, 1
        %s604 = scalar_lea.vmem %s8, %s603
        %p605 = scmp.lt.s32.totalorder %s27, 1
        %s606 = scalar_select %p605, %s27, 1
        %s607 = smul.addr %s606, 16
        %s608 = smul.addr %s607, 8
        %s609 = scalar_lea.vmem %s9, %s608
        %p610 = scmp.lt.s32.totalorder %s27, 1
        %s611 = scalar_select %p610, %s27, 1
        %s612 = smul.addr %s611, 2
        %s613 = scalar_lea.vmem %s10, %s612
        %p614 = scmp.lt.s32.totalorder %s27, 1
        %s615 = scalar_select %p614, %s27, 1
        %s616 = smul.addr %s615, 32
        %s617 = smul.addr %s616, 8
        %s618 = scalar_lea.vmem %s11, %s617
        %p619 = scmp.lt.s32.totalorder %s27, 1
        %s620 = scalar_select %p619, %s27, 1
        %s621 = scalar_lea.vmem %s12, %s620
        %p622 = scmp.lt.s32.totalorder %s27, 1
        %s623 = scalar_select %p622, %s27, 1
        %s624 = scalar_lea.vmem %s13, %s623
        %p625 = scmp.lt.s32.totalorder %s27, 1
        %s626 = scalar_select %p625, %s27, 1
        %s627 = scalar_lea.vmem %s14, %s626
        %p628 = scmp.eq.s32.totalorder %s27, 0
        // Predicated region
        $region81: #{realformer_forward.1} parent=79 // pred_check
          %p629 = pneg %p628
        $region82: #{realformer_forward.1} parent=79 // pred_check_branch
          %631 = sbr.rel (%p629) target = $region84
        $region83: #{realformer_forward.1} parent=79 // pred_region
          %v632 = vld [vmem:[%s0] sm:$0xff]
          %v633 = vld [vmem:[%s0 + $0x8] sm:$0xff]
          %v634 = vld [vmem:[%s0 + $0x10] sm:$0xff]
          %v635 = vld [vmem:[%s0 + $0x18] sm:$0xff]
          %vm636 = vcmask 523264
          %637 = vst.msk [vmem:[#allocation4] sm:$0xff] %vm636, %v632
          %638 = vst.msk [vmem:[#allocation4 + $0x8] sm:$0xff] %vm636, %v633
          %639 = vst.msk [vmem:[#allocation4 + $0x10] sm:$0xff] %vm636, %v634
          %640 = vst.msk [vmem:[#allocation4 + $0x18] sm:$0xff] %vm636, %v635
          %vm641 = vcmask 130048
          %642 = vst.msk [vmem:[#allocation2] sm:$0xff] %vm641, 0.0
          %643 = vst.msk [vmem:[#allocation2 + $0x8] sm:$0xff] %vm641, 0.0
          %644 = vst.msk [vmem:[#allocation2 + $0x10] sm:$0xff] %vm641, 0.0
          %645 = vst.msk [vmem:[#allocation2 + $0x18] sm:$0xff] %vm641, 0.0
          %646 = vst.msk [vmem:[#allocation2 + $0x20] sm:$0xff] %vm641, 0.0
          %647 = vst.msk [vmem:[#allocation2 + $0x28] sm:$0xff] %vm641, 0.0
          %648 = vst.msk [vmem:[#allocation2 + $0x30] sm:$0xff] %vm641, 0.0
          %649 = vst.msk [vmem:[#allocation2 + $0x38] sm:$0xff] %vm641, 0.0
          %650 = vst.msk [vmem:[#allocation2 + $0x40] sm:$0xff] %vm641, 0.0
          %651 = vst.msk [vmem:[#allocation2 + $0x48] sm:$0xff] %vm641, 0.0
          %652 = vst.msk [vmem:[#allocation2 + $0x50] sm:$0xff] %vm641, 0.0
          %653 = vst.msk [vmem:[#allocation2 + $0x58] sm:$0xff] %vm641, 0.0
          %654 = vst.msk [vmem:[#allocation2 + $0x60] sm:$0xff] %vm641, 0.0
          %655 = vst.msk [vmem:[#allocation2 + $0x68] sm:$0xff] %vm641, 0.0
          %656 = vst.msk [vmem:[#allocation2 + $0x70] sm:$0xff] %vm641, 0.0
          %657 = vst.msk [vmem:[#allocation2 + $0x78] sm:$0xff] %vm641, 0.0
          %658 = vst.msk [vmem:[#allocation2 + $0x80] sm:$0xff] %vm641, 0.0
          %659 = vst.msk [vmem:[#allocation2 + $0x88] sm:$0xff] %vm641, 0.0
          %660 = vst.msk [vmem:[#allocation2 + $0x90] sm:$0xff] %vm641, 0.0
          %661 = vst.msk [vmem:[#allocation2 + $0x98] sm:$0xff] %vm641, 0.0
          %662 = vst.msk [vmem:[#allocation2 + $0xa0] sm:$0xff] %vm641, 0.0
          %663 = vst.msk [vmem:[#allocation2 + $0xa8] sm:$0xff] %vm641, 0.0
          %664 = vst.msk [vmem:[#allocation2 + $0xb0] sm:$0xff] %vm641, 0.0
          %665 = vst.msk [vmem:[#allocation2 + $0xb8] sm:$0xff] %vm641, 0.0
          %666 = vst.msk [vmem:[#allocation2 + $0xc0] sm:$0xff] %vm641, 0.0
          %667 = vst.msk [vmem:[#allocation2 + $0xc8] sm:$0xff] %vm641, 0.0
          %668 = vst.msk [vmem:[#allocation2 + $0xd0] sm:$0xff] %vm641, 0.0
          %669 = vst.msk [vmem:[#allocation2 + $0xd8] sm:$0xff] %vm641, 0.0
          %670 = vst.msk [vmem:[#allocation2 + $0xe0] sm:$0xff] %vm641, 0.0
          %671 = vst.msk [vmem:[#allocation2 + $0xe8] sm:$0xff] %vm641, 0.0
          %672 = vst.msk [vmem:[#allocation2 + $0xf0] sm:$0xff] %vm641, 0.0
          %673 = vst.msk [vmem:[#allocation2 + $0xf8] sm:$0xff] %vm641, 0.0
        $region84: #{realformer_forward.1} parent=79 // pred_fallthru
          _
        %v674 = vld [vmem:[#allocation4] sm:$0xff]
        %v675 = vld [vmem:[#allocation4 + $0x8] sm:$0xff]
        %v676 = vld [vmem:[#allocation4 + $0x10] sm:$0xff]
        %v677 = vld [vmem:[#allocation4 + $0x18] sm:$0xff]
        %v678 = vld [vmem:[%s2] sm:$0xff]
        %v679 = vld [vmem:[%s2 + $0x8] sm:$0xff]
        %v680 = vld [vmem:[%s2 + $0x10] sm:$0xff]
        %v681 = vld [vmem:[%s2 + $0x18] sm:$0xff]
        %v682 = vld [vmem:[%s2 + $0x20] sm:$0xff]
        %v683 = vld [vmem:[%s2 + $0x28] sm:$0xff]
        %v684 = vld [vmem:[%s2 + $0x30] sm:$0xff]
        %v685 = vld [vmem:[%s2 + $0x38] sm:$0xff]
        %v686 = vld [vmem:[%s2 + $0x40] sm:$0xff]
        %v687 = vld [vmem:[%s2 + $0x48] sm:$0xff]
        %v688 = vld [vmem:[%s2 + $0x50] sm:$0xff]
        %v689 = vld [vmem:[%s2 + $0x58] sm:$0xff]
        %v690 = vld [vmem:[%s2 + $0x60] sm:$0xff]
        %v691 = vld [vmem:[%s2 + $0x68] sm:$0xff]
        %v692 = vld [vmem:[%s2 + $0x70] sm:$0xff]
        %v693 = vld [vmem:[%s2 + $0x78] sm:$0xff]
        %v694 = vld [vmem:[%s3] sm:$0xff]
        %v695 = vld [vmem:[%s3 + $0x8] sm:$0xff]
        %v696 = vld [vmem:[%s4] sm:$0xff]
        %v697 = vld [vmem:[%s4 + $0x8] sm:$0xff]
        %v698 = vld [vmem:[%s4 + $0x10] sm:$0xff]
        %v699 = vld [vmem:[%s4 + $0x18] sm:$0xff]
        %v700 = vld [vmem:[%s4 + $0x20] sm:$0xff]
        %v701 = vld [vmem:[%s4 + $0x28] sm:$0xff]
        %v702 = vld [vmem:[%s4 + $0x30] sm:$0xff]
        %v703 = vld [vmem:[%s4 + $0x38] sm:$0xff]
        %v704 = vld [vmem:[%s4 + $0x40] sm:$0xff]
        %v705 = vld [vmem:[%s4 + $0x48] sm:$0xff]
        %v706 = vld [vmem:[%s4 + $0x50] sm:$0xff]
        %v707 = vld [vmem:[%s4 + $0x58] sm:$0xff]
        %v708 = vld [vmem:[%s4 + $0x60] sm:$0xff]
        %v709 = vld [vmem:[%s4 + $0x68] sm:$0xff]
        %v710 = vld [vmem:[%s4 + $0x70] sm:$0xff]
        %v711 = vld [vmem:[%s4 + $0x78] sm:$0xff]
        %v712 = vld [vmem:[%s593] sm:$0xff]
        %v713 = vld [vmem:[%s593 + $0x8] sm:$0xff]
        %v714 = vld [vmem:[%s593 + $0x10] sm:$0xff]
        %v715 = vld [vmem:[%s593 + $0x18] sm:$0xff]
        %v716 = vld [vmem:[%s593 + $0x20] sm:$0xff]
        %v717 = vld [vmem:[%s593 + $0x28] sm:$0xff]
        %v718 = vld [vmem:[%s593 + $0x30] sm:$0xff]
        %v719 = vld [vmem:[%s593 + $0x38] sm:$0xff]
        %v720 = vld [vmem:[%s593 + $0x40] sm:$0xff]
        %v721 = vld [vmem:[%s593 + $0x48] sm:$0xff]
        %v722 = vld [vmem:[%s593 + $0x50] sm:$0xff]
        %v723 = vld [vmem:[%s593 + $0x58] sm:$0xff]
        %v724 = vld [vmem:[%s593 + $0x60] sm:$0xff]
        %v725 = vld [vmem:[%s593 + $0x68] sm:$0xff]
        %v726 = vld [vmem:[%s593 + $0x70] sm:$0xff]
        %v727 = vld [vmem:[%s593 + $0x78] sm:$0xff]
        %vm728 = vcmask 523264
        %v730 = vsel %vm728, %v674, 0
        %v733 = vsel %vm728, %v675, 0
        %v736 = vsel %vm728, %v676, 0
        %v739 = vsel %vm728, %v677, 0
        %741 = vmatprep.subr.mxu0 %v713
        %742 = vmatpush1.msra.mxu0 %v712
        %743 = vmatprep.subr.mxu0 %v715
        %744 = vmatpush1.msra.mxu0 %v714
        %745 = vmatprep.subr.mxu0 %v717
        %746 = vmatpush1.msra.mxu0 %v716
        %747 = vmatprep.subr.mxu0 %v719
        %748 = vmatpush1.msra.mxu0 %v718
        %749 = vmatprep.subr.mxu0 %v721
        %750 = vmatpush1.msra.mxu0 %v720
        %751 = vmatprep.subr.mxu0 %v723
        %752 = vmatpush1.msra.mxu0 %v722
        %753 = vmatprep.subr.mxu0 %v725
        %754 = vmatpush1.msra.mxu0 %v724
        %755 = vmatprep.subr.mxu0 %v727
        %756 = vmatpush1.msra.mxu0 %v726
        %757 = vmatprep.subr.mxu0 0.0
        %758 = vmatpush1.msra.mxu0 0.0
        %759 = vmatprep.subr.mxu0 0.0
        %760 = vmatpush1.msra.mxu0 0.0
        %761 = vmatprep.subr.mxu0 0.0
        %762 = vmatpush1.msra.mxu0 0.0
        %763 = vmatprep.subr.mxu0 0.0
        %764 = vmatpush1.msra.mxu0 0.0
        %765 = vmatprep.subr.mxu0 0.0
        %766 = vmatpush1.msra.mxu0 0.0
        %767 = vmatprep.subr.mxu0 0.0
        %768 = vmatpush1.msra.mxu0 0.0
        %769 = vmatprep.subr.mxu0 0.0
        %770 = vmatpush1.msra.mxu0 0.0
        %771 = vmatprep.subr.mxu0 0.0
        %772 = vmatpush1.msra.mxu0 0.0
        %773 = vmatprep.subr.mxu0 0.0
        %774 = vmatpush1.msra.mxu0 0.0
        %775 = vmatprep.subr.mxu0 0.0
        %776 = vmatpush1.msra.mxu0 0.0
        %777 = vmatprep.subr.mxu0 0.0
        %778 = vmatpush1.msra.mxu0 0.0
        %779 = vmatprep.subr.mxu0 0.0
        %780 = vmatpush1.msra.mxu0 0.0
        %781 = vmatprep.subr.mxu0 0.0
        %782 = vmatpush1.msra.mxu0 0.0
        %783 = vmatprep.subr.mxu0 0.0
        %784 = vmatpush1.msra.mxu0 0.0
        %785 = vmatprep.subr.mxu0 0.0
        %786 = vmatpush1.msra.mxu0 0.0
        %787 = vmatprep.subr.mxu0 0.0
        %788 = vmatpush1.msra.mxu0 0.0
        %789 = vmatprep.subr.mxu0 0.0
        %790 = vmatpush1.msra.mxu0 0.0
        %791 = vmatprep.subr.mxu0 0.0
        %792 = vmatpush1.msra.mxu0 0.0
        %793 = vmatprep.subr.mxu0 0.0
        %794 = vmatpush1.msra.mxu0 0.0
        %795 = vmatprep.subr.mxu0 0.0
        %796 = vmatpush1.msra.mxu0 0.0
        %797 = vmatprep.subr.mxu0 0.0
        %798 = vmatpush1.msra.mxu0 0.0
        %799 = vmatprep.subr.mxu0 0.0
        %800 = vmatpush1.msra.mxu0 0.0
        %801 = vmatprep.subr.mxu0 0.0
        %802 = vmatpush1.msra.mxu0 0.0
        %803 = vmatprep.subr.mxu0 0.0
        %804 = vmatpush1.msra.mxu0 0.0
        %805 = vmatprep.mubr.f32.mxu0 0.0
        %806 = vmatmul.mubr.f32.gmra.mrb[0].mxu0 %v730
        %v807 = vpop.f32.mrb[0].mxu0
        %v808 = vadd.f32 0.0, %v807
        %v809 = vpop.f32.mrb[0].mxu0
        %v810 = vadd.f32 0.0, %v809
        %811 = vmatprep.mubr.f32.mxu0 0.0
        %812 = vmatmul.mubr.f32.gmra.mrb[0].mxu0 %v733
        %v813 = vpop.f32.mrb[0].mxu0
        %v814 = vadd.f32 0.0, %v813
        %v815 = vpop.f32.mrb[0].mxu0
        %v816 = vadd.f32 0.0, %v815
        %817 = vmatprep.mubr.f32.mxu0 0.0
        %818 = vmatmul.mubr.f32.gmra.mrb[0].mxu0 %v736
        %v819 = vpop.f32.mrb[0].mxu0
        %v820 = vadd.f32 0.0, %v819
        %v821 = vpop.f32.mrb[0].mxu0
        %v822 = vadd.f32 0.0, %v821
        %823 = vmatprep.mubr.f32.mxu0 0.0
        %824 = vmatmul.mubr.f32.gmra.mrb[0].mxu0 %v739
        %v825 = vpop.f32.mrb[0].mxu0
        %v826 = vadd.f32 0.0, %v825
        %v827 = vpop.f32.mrb[0].mxu0
        %v828 = vadd.f32 0.0, %v827
        %829 = vdwg.mxu0
        %832 = vrot.lane.b32.xlu0 %v808, 64
        %v833 = vpop.permute.xlu0 %832
        %834 = vrot.lane.b32.xlu0 %v814, 64
        %v835 = vpop.permute.xlu0 %834
        %vm838 = vcmask 130048
        %v840 = vsel %vm838, %v678, 0
        %v843 = vsel %vm838, %v679, 0
        %v846 = vsel %vm838, %v680, 0
        %v849 = vsel %vm838, %v681, 0
        %v852 = vsel %vm838, %v682, 0
        %v855 = vsel %vm838, %v683, 0
        %v858 = vsel %vm838, %v684, 0
        %v861 = vsel %vm838, %v685, 0
        %v864 = vsel %vm838, %v686, 0
        %v867 = vsel %vm838, %v687, 0
        %v870 = vsel %vm838, %v688, 0
        %v873 = vsel %vm838, %v689, 0
        %v876 = vsel %vm838, %v690, 0
        %v879 = vsel %vm838, %v691, 0
        %v882 = vsel %vm838, %v692, 0
        %v885 = vsel %vm838, %v693, 0
        %887 = vmatprep.subr.mxu0 0.0
        %888 = vmatpush1.msra.mxu0 %v833
        %889 = vmatprep.subr.mxu0 0.0
        %890 = vmatpush1.msra.mxu0 %v835
        %891 = vmatprep.subr.mxu0 0.0
        %892 = vmatpush1.msra.mxu0 0.0
        %893 = vmatprep.subr.mxu0 0.0
        %894 = vmatpush1.msra.mxu0 0.0
        %895 = vmatprep.subr.mxu0 0.0
        %896 = vmatpush1.msra.mxu0 0.0
        %897 = vmatprep.subr.mxu0 0.0
        %898 = vmatpush1.msra.mxu0 0.0
        %899 = vmatprep.subr.mxu0 0.0
        %900 = vmatpush1.msra.mxu0 0.0
        %901 = vmatprep.subr.mxu0 0.0
        %902 = vmatpush1.msra.mxu0 0.0
        %903 = vmatprep.subr.mxu0 0.0
        %904 = vmatpush1.msra.mxu0 0.0
        %905 = vmatprep.subr.mxu0 0.0
        %906 = vmatpush1.msra.mxu0 0.0
        %907 = vmatprep.subr.mxu0 0.0
        %908 = vmatpush1.msra.mxu0 0.0
        %909 = vmatprep.subr.mxu0 0.0
        %910 = vmatpush1.msra.mxu0 0.0
        %911 = vmatprep.subr.mxu0 0.0
        %912 = vmatpush1.msra.mxu0 0.0
        %913 = vmatprep.subr.mxu0 0.0
        %914 = vmatpush1.msra.mxu0 0.0
        %915 = vmatprep.subr.mxu0 0.0
        %916 = vmatpush1.msra.mxu0 0.0
        %917 = vmatprep.subr.mxu0 0.0
        %918 = vmatpush1.msra.mxu0 0.0
        %919 = vmatprep.subr.mxu0 0.0
        %920 = vmatpush1.msra.mxu0 0.0
        %921 = vmatprep.subr.mxu0 0.0
        %922 = vmatpush1.msra.mxu0 0.0
        %923 = vmatprep.subr.mxu0 0.0
        %924 = vmatpush1.msra.mxu0 0.0
        %925 = vmatprep.subr.mxu0 0.0
        %926 = vmatpush1.msra.mxu0 0.0
        %927 = vmatprep.subr.mxu0 0.0
        %928 = vmatpush1.msra.mxu0 0.0
        %929 = vmatprep.subr.mxu0 0.0
        %930 = vmatpush1.msra.mxu0 0.0
        %931 = vmatprep.subr.mxu0 0.0
        %932 = vmatpush1.msra.mxu0 0.0
        %933 = vmatprep.subr.mxu0 0.0
        %934 = vmatpush1.msra.mxu0 0.0
        %935 = vmatprep.subr.mxu0 0.0
        %936 = vmatpush1.msra.mxu0 0.0
        %937 = vmatprep.subr.mxu0 0.0
        %938 = vmatpush1.msra.mxu0 0.0
        %939 = vmatprep.subr.mxu0 0.0
        %940 = vmatpush1.msra.mxu0 0.0
        %941 = vmatprep.subr.mxu0 0.0
        %942 = vmatpush1.msra.mxu0 0.0
        %943 = vmatprep.subr.mxu0 0.0
        %944 = vmatpush1.msra.mxu0 0.0
        %945 = vmatprep.subr.mxu0 0.0
        %946 = vmatpush1.msra.mxu0 0.0
        %947 = vmatprep.subr.mxu0 0.0
        %948 = vmatpush1.msra.mxu0 0.0
        %949 = vmatprep.subr.mxu0 0.0
        %950 = vmatpush1.msra.mxu0 0.0
        %951 = vmatprep.mubr.f32.mxu0 0.0
        %952 = vmatmul.mubr.f32.gmra.mrb[0].mxu0 %v840
        %v953 = vpop.f32.mrb[0].mxu0
        %v954 = vadd.f32 0.0, %v953
        %v955 = vpop.f32.mrb[0].mxu0
        %956 = vmatprep.mubr.f32.mxu0 0.0
        %957 = vmatmul.mubr.f32.gmra.mrb[0].mxu0 %v843
        %v958 = vpop.f32.mrb[0].mxu0
        %v959 = vadd.f32 0.0, %v958
        %v960 = vpop.f32.mrb[0].mxu0
        %961 = vmatprep.mubr.f32.mxu0 0.0
        %962 = vmatmul.mubr.f32.gmra.mrb[0].mxu0 %v846
        %v963 = vpop.f32.mrb[0].mxu0
        %v964 = vadd.f32 0.0, %v963
        %v965 = vpop.f32.mrb[0].mxu0
        %966 = vmatprep.mubr.f32.mxu0 0.0
        %967 = vmatmul.mubr.f32.gmra.mrb[0].mxu0 %v849
        %v968 = vpop.f32.mrb[0].mxu0
        %v969 = vadd.f32 0.0, %v968
        %v970 = vpop.f32.mrb[0].mxu0
        %971 = vmatprep.mubr.f32.mxu0 0.0
        %972 = vmatmul.mubr.f32.gmra.mrb[0].mxu0 %v852
        %v973 = vpop.f32.mrb[0].mxu0
        %v974 = vadd.f32 0.0, %v973
        %v975 = vpop.f32.mrb[0].mxu0
        %976 = vmatprep.mubr.f32.mxu0 0.0
        %977 = vmatmul.mubr.f32.gmra.mrb[0].mxu0 %v855
        %v978 = vpop.f32.mrb[0].mxu0
        %v979 = vadd.f32 0.0, %v978
        %v980 = vpop.f32.mrb[0].mxu0
        %981 = vmatprep.mubr.f32.mxu0 0.0
        %982 = vmatmul.mubr.f32.gmra.mrb[0].mxu0 %v858
        %v983 = vpop.f32.mrb[0].mxu0
        %v984 = vadd.f32 0.0, %v983
        %v985 = vpop.f32.mrb[0].mxu0
        %986 = vmatprep.mubr.f32.mxu0 0.0
        %987 = vmatmul.mubr.f32.gmra.mrb[0].mxu0 %v861
        %v988 = vpop.f32.mrb[0].mxu0
        %v989 = vadd.f32 0.0, %v988
        %v990 = vpop.f32.mrb[0].mxu0
        %991 = vmatprep.mubr.f32.mxu0 0.0
        %992 = vmatmul.mubr.f32.gmra.mrb[0].mxu0 %v864
        %v993 = vpop.f32.mrb[0].mxu0
        %v994 = vadd.f32 0.0, %v993
        %v995 = vpop.f32.mrb[0].mxu0
        %996 = vmatprep.mubr.f32.mxu0 0.0
        %997 = vmatmul.mubr.f32.gmra.mrb[0].mxu0 %v867
        %v998 = vpop.f32.mrb[0].mxu0
        %v999 = vadd.f32 0.0, %v998
        %v1000 = vpop.f32.mrb[0].mxu0
        %1001 = vmatprep.mubr.f32.mxu0 0.0
        %1002 = vmatmul.mubr.f32.gmra.mrb[0].mxu0 %v870
        %v1003 = vpop.f32.mrb[0].mxu0
        %v1004 = vadd.f32 0.0, %v1003
        %v1005 = vpop.f32.mrb[0].mxu0
        %1006 = vmatprep.mubr.f32.mxu0 0.0
        %1007 = vmatmul.mubr.f32.gmra.mrb[0].mxu0 %v873
        %v1008 = vpop.f32.mrb[0].mxu0
        %v1009 = vadd.f32 0.0, %v1008
        %v1010 = vpop.f32.mrb[0].mxu0
        %1011 = vmatprep.mubr.f32.mxu0 0.0
        %1012 = vmatmul.mubr.f32.gmra.mrb[0].mxu0 %v876
        %v1013 = vpop.f32.mrb[0].mxu0
        %v1014 = vadd.f32 0.0, %v1013
        %v1015 = vpop.f32.mrb[0].mxu0
        %1016 = vmatprep.mubr.f32.mxu0 0.0
        %1017 = vmatmul.mubr.f32.gmra.mrb[0].mxu0 %v879
        %v1018 = vpop.f32.mrb[0].mxu0
        %v1019 = vadd.f32 0.0, %v1018
        %v1020 = vpop.f32.mrb[0].mxu0
        %1021 = vmatprep.mubr.f32.mxu0 0.0
        %1022 = vmatmul.mubr.f32.gmra.mrb[0].mxu0 %v882
        %v1023 = vpop.f32.mrb[0].mxu0
        %v1024 = vadd.f32 0.0, %v1023
        %v1025 = vpop.f32.mrb[0].mxu0
        %1026 = vmatprep.mubr.f32.mxu0 0.0
        %1027 = vmatmul.mubr.f32.gmra.mrb[0].mxu0 %v885
        %v1028 = vpop.f32.mrb[0].mxu0
        %v1029 = vadd.f32 0.0, %v1028
        %v1030 = vpop.f32.mrb[0].mxu0
        %1031 = vdwg.mxu0
        %v1032 = vmul.f32 %v954, %v696
        %v1033 = vmul.f32 %v959, %v697
        %v1034 = vmul.f32 %v964, %v698
        %v1035 = vmul.f32 %v969, %v699
        %v1036 = vmul.f32 %v974, %v700
        %v1037 = vmul.f32 %v979, %v701
        %v1038 = vmul.f32 %v984, %v702
        %v1039 = vmul.f32 %v989, %v703
        %v1040 = vmul.f32 %v994, %v704
        %v1041 = vmul.f32 %v999, %v705
        %v1042 = vmul.f32 %v1004, %v706
        %v1043 = vmul.f32 %v1009, %v707
        %v1044 = vmul.f32 %v1014, %v708
        %v1045 = vmul.f32 %v1019, %v709
        %v1046 = vmul.f32 %v1024, %v710
        %v1047 = vmul.f32 %v1029, %v711
        %v1049 = vsel %vm728, %v1032, 0
        %v1052 = vsel %vm728, %v1033, 0
        %v1055 = vsel %vm728, %v1034, 0
        %v1058 = vsel %vm728, %v1035, 0
        %v1061 = vsel %vm728, %v1036, 0
        %v1064 = vsel %vm728, %v1037, 0
        %v1067 = vsel %vm728, %v1038, 0
        %v1070 = vsel %vm728, %v1039, 0
        %v1073 = vsel %vm728, %v1040, 0
        %v1076 = vsel %vm728, %v1041, 0
        %v1079 = vsel %vm728, %v1042, 0
        %v1082 = vsel %vm728, %v1043, 0
        %v1085 = vsel %vm728, %v1044, 0
        %v1088 = vsel %vm728, %v1045, 0
        %v1091 = vsel %vm728, %v1046, 0
        %v1094 = vsel %vm728, %v1047, 0
        %v1096 = vsel %vm728, %v808, 0
        %v1098 = vsel %vm728, %v814, 0
        %1100 = vmatprep.subr.mxu0 0.0
        %1101 = vmatpush1.xpose.msra.mxu0 %v1096
        %1102 = vmatprep.subr.mxu0 0.0
        %1103 = vmatpush1.xpose.msra.mxu0 %v1098
        %1104 = vmatprep.subr.mxu0 0.0
        %1105 = vmatpush1.xpose.msra.mxu0 0.0
        %1106 = vmatprep.subr.mxu0 0.0
        %1107 = vmatpush1.xpose.msra.mxu0 0.0
        %1108 = vmatprep.subr.mxu0 0.0
        %1109 = vmatpush1.xpose.msra.mxu0 0.0
        %1110 = vmatprep.subr.mxu0 0.0
        %1111 = vmatpush1.xpose.msra.mxu0 0.0
        %1112 = vmatprep.subr.mxu0 0.0
        %1113 = vmatpush1.xpose.msra.mxu0 0.0
        %1114 = vmatprep.subr.mxu0 0.0
        %1115 = vmatpush1.xpose.msra.mxu0 0.0
        %1116 = vmatprep.subr.mxu0 0.0
        %1117 = vmatpush1.xpose.msra.mxu0 0.0
        %1118 = vmatprep.subr.mxu0 0.0
        %1119 = vmatpush1.xpose.msra.mxu0 0.0
        %1120 = vmatprep.subr.mxu0 0.0
        %1121 = vmatpush1.xpose.msra.mxu0 0.0
        %1122 = vmatprep.subr.mxu0 0.0
        %1123 = vmatpush1.xpose.msra.mxu0 0.0
        %1124 = vmatprep.subr.mxu0 0.0
        %1125 = vmatpush1.xpose.msra.mxu0 0.0
        %1126 = vmatprep.subr.mxu0 0.0
        %1127 = vmatpush1.xpose.msra.mxu0 0.0
        %1128 = vmatprep.subr.mxu0 0.0
        %1129 = vmatpush1.xpose.msra.mxu0 0.0
        %1130 = vmatprep.subr.mxu0 0.0
        %1131 = vmatpush1.xpose.msra.mxu0 0.0
        %1132 = vmatprep.subr.mxu0 0.0
        %1133 = vmatpush1.xpose.msra.mxu0 0.0
        %1134 = vmatprep.subr.mxu0 0.0
        %1135 = vmatpush1.xpose.msra.mxu0 0.0
        %1136 = vmatprep.subr.mxu0 0.0
        %1137 = vmatpush1.xpose.msra.mxu0 0.0
        %1138 = vmatprep.subr.mxu0 0.0
        %1139 = vmatpush1.xpose.msra.mxu0 0.0
        %1140 = vmatprep.subr.mxu0 0.0
        %1141 = vmatpush1.xpose.msra.mxu0 0.0
        %1142 = vmatprep.subr.mxu0 0.0
        %1143 = vmatpush1.xpose.msra.mxu0 0.0
        %1144 = vmatprep.subr.mxu0 0.0
        %1145 = vmatpush1.xpose.msra.mxu0 0.0
        %1146 = vmatprep.subr.mxu0 0.0
        %1147 = vmatpush1.xpose.msra.mxu0 0.0
        %1148 = vmatprep.subr.mxu0 0.0
        %1149 = vmatpush1.xpose.msra.mxu0 0.0
        %1150 = vmatprep.subr.mxu0 0.0
        %1151 = vmatpush1.xpose.msra.mxu0 0.0
        %1152 = vmatprep.subr.mxu0 0.0
        %1153 = vmatpush1.xpose.msra.mxu0 0.0
        %1154 = vmatprep.subr.mxu0 0.0
        %1155 = vmatpush1.xpose.msra.mxu0 0.0
        %1156 = vmatprep.subr.mxu0 0.0
        %1157 = vmatpush1.xpose.msra.mxu0 0.0
        %1158 = vmatprep.subr.mxu0 0.0
        %1159 = vmatpush1.xpose.msra.mxu0 0.0
        %1160 = vmatprep.subr.mxu0 0.0
        %1161 = vmatpush1.xpose.msra.mxu0 0.0
        %1162 = vmatprep.subr.mxu0 0.0
        %1163 = vmatpush1.xpose.msra.mxu0 0.0
        %1164 = vmatprep.mubr.f32.mxu0 0.0
        %1165 = vmatmul.mubr.f32.gmra.mrb[0].mxu0 %v1049
        %v1166 = vpop.f32.mrb[0].mxu0
        %v1167 = vadd.f32 0.0, %v1166
        %v1168 = vpop.f32.mrb[0].mxu0
        %1169 = vmatprep.mubr.f32.mxu0 0.0
        %1170 = vmatmul.mubr.f32.gmra.mrb[0].mxu0 %v1052
        %v1171 = vpop.f32.mrb[0].mxu0
        %v1172 = vadd.f32 0.0, %v1171
        %v1173 = vpop.f32.mrb[0].mxu0
        %1174 = vmatprep.mubr.f32.mxu0 0.0
        %1175 = vmatmul.mubr.f32.gmra.mrb[0].mxu0 %v1055
        %v1176 = vpop.f32.mrb[0].mxu0
        %v1177 = vadd.f32 0.0, %v1176
        %v1178 = vpop.f32.mrb[0].mxu0
        %1179 = vmatprep.mubr.f32.mxu0 0.0
        %1180 = vmatmul.mubr.f32.gmra.mrb[0].mxu0 %v1058
        %v1181 = vpop.f32.mrb[0].mxu0
        %v1182 = vadd.f32 0.0, %v1181
        %v1183 = vpop.f32.mrb[0].mxu0
        %1184 = vmatprep.mubr.f32.mxu0 0.0
        %1185 = vmatmul.mubr.f32.gmra.mrb[0].mxu0 %v1061
        %v1186 = vpop.f32.mrb[0].mxu0
        %v1187 = vadd.f32 0.0, %v1186
        %v1188 = vpop.f32.mrb[0].mxu0
        %1189 = vmatprep.mubr.f32.mxu0 0.0
        %1190 = vmatmul.mubr.f32.gmra.mrb[0].mxu0 %v1064
        %v1191 = vpop.f32.mrb[0].mxu0
        %v1192 = vadd.f32 0.0, %v1191
        %v1193 = vpop.f32.mrb[0].mxu0
        %1194 = vmatprep.mubr.f32.mxu0 0.0
        %1195 = vmatmul.mubr.f32.gmra.mrb[0].mxu0 %v1067
        %v1196 = vpop.f32.mrb[0].mxu0
        %v1197 = vadd.f32 0.0, %v1196
        %v1198 = vpop.f32.mrb[0].mxu0
        %1199 = vmatprep.mubr.f32.mxu0 0.0
        %1200 = vmatmul.mubr.f32.gmra.mrb[0].mxu0 %v1070
        %v1201 = vpop.f32.mrb[0].mxu0
        %v1202 = vadd.f32 0.0, %v1201
        %v1203 = vpop.f32.mrb[0].mxu0
        %1204 = vmatprep.mubr.f32.mxu0 0.0
        %1205 = vmatmul.mubr.f32.gmra.mrb[0].mxu0 %v1073
        %v1206 = vpop.f32.mrb[0].mxu0
        %v1207 = vadd.f32 0.0, %v1206
        %v1208 = vpop.f32.mrb[0].mxu0
        %1209 = vmatprep.mubr.f32.mxu0 0.0
        %1210 = vmatmul.mubr.f32.gmra.mrb[0].mxu0 %v1076
        %v1211 = vpop.f32.mrb[0].mxu0
        %v1212 = vadd.f32 0.0, %v1211
        %v1213 = vpop.f32.mrb[0].mxu0
        %1214 = vmatprep.mubr.f32.mxu0 0.0
        %1215 = vmatmul.mubr.f32.gmra.mrb[0].mxu0 %v1079
        %v1216 = vpop.f32.mrb[0].mxu0
        %v1217 = vadd.f32 0.0, %v1216
        %v1218 = vpop.f32.mrb[0].mxu0
        %1219 = vmatprep.mubr.f32.mxu0 0.0
        %1220 = vmatmul.mubr.f32.gmra.mrb[0].mxu0 %v1082
        %v1221 = vpop.f32.mrb[0].mxu0
        %v1222 = vadd.f32 0.0, %v1221
        %v1223 = vpop.f32.mrb[0].mxu0
        %1224 = vmatprep.mubr.f32.mxu0 0.0
        %1225 = vmatmul.mubr.f32.gmra.mrb[0].mxu0 %v1085
        %v1226 = vpop.f32.mrb[0].mxu0
        %v1227 = vadd.f32 0.0, %v1226
        %v1228 = vpop.f32.mrb[0].mxu0
        %1229 = vmatprep.mubr.f32.mxu0 0.0
        %1230 = vmatmul.mubr.f32.gmra.mrb[0].mxu0 %v1088
        %v1231 = vpop.f32.mrb[0].mxu0
        %v1232 = vadd.f32 0.0, %v1231
        %v1233 = vpop.f32.mrb[0].mxu0
        %1234 = vmatprep.mubr.f32.mxu0 0.0
        %1235 = vmatmul.mubr.f32.gmra.mrb[0].mxu0 %v1091
        %v1236 = vpop.f32.mrb[0].mxu0
        %v1237 = vadd.f32 0.0, %v1236
        %v1238 = vpop.f32.mrb[0].mxu0
        %1239 = vmatprep.mubr.f32.mxu0 0.0
        %1240 = vmatmul.mubr.f32.gmra.mrb[0].mxu0 %v1094
        %v1241 = vpop.f32.mrb[0].mxu0
        %v1242 = vadd.f32 0.0, %v1241
        %v1243 = vpop.f32.mrb[0].mxu0
        %1244 = vdwg.mxu0
        %v1245 = vmul.f32 %v1167, 0.35355338
        %v1246 = vmul.f32 %v1172, 0.35355338
        %v1247 = vmul.f32 %v1177, 0.35355338
        %v1248 = vmul.f32 %v1182, 0.35355338
        %v1249 = vmul.f32 %v1187, 0.35355338
        %v1250 = vmul.f32 %v1192, 0.35355338
        %v1251 = vmul.f32 %v1197, 0.35355338
        %v1252 = vmul.f32 %v1202, 0.35355338
        %v1253 = vmul.f32 %v1207, 0.35355338
        %v1254 = vmul.f32 %v1212, 0.35355338
        %v1255 = vmul.f32 %v1217, 0.35355338
        %v1256 = vmul.f32 %v1222, 0.35355338
        %v1257 = vmul.f32 %v1227, 0.35355338
        %v1258 = vmul.f32 %v1232, 0.35355338
        %v1259 = vmul.f32 %v1237, 0.35355338
        %v1260 = vmul.f32 %v1242, 0.35355338
        %v1261 = vld [vmem:[#allocation2] sm:$0xff]
        %v1262 = vld [vmem:[#allocation2 + $0x8] sm:$0xff]
        %v1263 = vld [vmem:[#allocation2 + $0x10] sm:$0xff]
        %v1264 = vld [vmem:[#allocation2 + $0x18] sm:$0xff]
        %v1265 = vld [vmem:[#allocation2 + $0x20] sm:$0xff]
        %v1266 = vld [vmem:[#allocation2 + $0x28] sm:$0xff]
        %v1267 = vld [vmem:[#allocation2 + $0x30] sm:$0xff]
        %v1268 = vld [vmem:[#allocation2 + $0x38] sm:$0xff]
        %v1269 = vld [vmem:[#allocation2 + $0x40] sm:$0xff]
        %v1270 = vld [vmem:[#allocation2 + $0x48] sm:$0xff]
        %v1271 = vld [vmem:[#allocation2 + $0x50] sm:$0xff]
        %v1272 = vld [vmem:[#allocation2 + $0x58] sm:$0xff]
        %v1273 = vld [vmem:[#allocation2 + $0x60] sm:$0xff]
        %v1274 = vld [vmem:[#allocation2 + $0x68] sm:$0xff]
        %v1275 = vld [vmem:[#allocation2 + $0x70] sm:$0xff]
        %v1276 = vld [vmem:[#allocation2 + $0x78] sm:$0xff]
        %v1277 = vadd.f32 %v1245, %v1261
        %v1278 = vadd.f32 %v1246, %v1262
        %v1279 = vadd.f32 %v1247, %v1263
        %v1280 = vadd.f32 %v1248, %v1264
        %v1281 = vadd.f32 %v1249, %v1265
        %v1282 = vadd.f32 %v1250, %v1266
        %v1283 = vadd.f32 %v1251, %v1267
        %v1284 = vadd.f32 %v1252, %v1268
        %v1285 = vadd.f32 %v1253, %v1269
        %v1286 = vadd.f32 %v1254, %v1270
        %v1287 = vadd.f32 %v1255, %v1271
        %v1288 = vadd.f32 %v1256, %v1272
        %v1289 = vadd.f32 %v1257, %v1273
        %v1290 = vadd.f32 %v1258, %v1274
        %v1291 = vadd.f32 %v1259, %v1275
        %v1292 = vadd.f32 %v1260, %v1276
        %1293 = vst.msk [vmem:[#allocation2] sm:$0xff] %vm838, %v1277
        %1294 = vst.msk [vmem:[#allocation2 + $0x8] sm:$0xff] %vm838, %v1278
        %1295 = vst.msk [vmem:[#allocation2 + $0x10] sm:$0xff] %vm838, %v1279
        %1296 = vst.msk [vmem:[#allocation2 + $0x18] sm:$0xff] %vm838, %v1280
        %1297 = vst.msk [vmem:[#allocation2 + $0x20] sm:$0xff] %vm838, %v1281
        %1298 = vst.msk [vmem:[#allocation2 + $0x28] sm:$0xff] %vm838, %v1282
        %1299 = vst.msk [vmem:[#allocation2 + $0x30] sm:$0xff] %vm838, %v1283
        %1300 = vst.msk [vmem:[#allocation2 + $0x38] sm:$0xff] %vm838, %v1284
        %1301 = vst.msk [vmem:[#allocation2 + $0x40] sm:$0xff] %vm838, %v1285
        %1302 = vst.msk [vmem:[#allocation2 + $0x48] sm:$0xff] %vm838, %v1286
        %1303 = vst.msk [vmem:[#allocation2 + $0x50] sm:$0xff] %vm838, %v1287
        %1304 = vst.msk [vmem:[#allocation2 + $0x58] sm:$0xff] %vm838, %v1288
        %1305 = vst.msk [vmem:[#allocation2 + $0x60] sm:$0xff] %vm838, %v1289
        %1306 = vst.msk [vmem:[#allocation2 + $0x68] sm:$0xff] %vm838, %v1290
        %1307 = vst.msk [vmem:[#allocation2 + $0x70] sm:$0xff] %vm838, %v1291
        %1308 = vst.msk [vmem:[#allocation2 + $0x78] sm:$0xff] %vm838, %v1292
        %v1309 = vld [vmem:[%s1] sm:$0x1]
        %v1311 = vlaneseq
        %v1312 = vshrl.u32 %v1311, 7
        %v1313 = vsub.s32 0, %v1312
        %v1314 = vrot.slane %v1309, %v1313
        %v1316 = vadd.f32 %v1277, %v1314
        %v1317 = vadd.f32 %v1278, %v1314
        %v1318 = vadd.f32 %v1279, %v1314
        %v1319 = vadd.f32 %v1280, %v1314
        %v1320 = vadd.f32 %v1281, %v1314
        %v1321 = vadd.f32 %v1282, %v1314
        %v1322 = vadd.f32 %v1283, %v1314
        %v1323 = vadd.f32 %v1284, %v1314
        %v1324 = vadd.f32 %v1285, %v1314
        %v1325 = vadd.f32 %v1286, %v1314
        %v1326 = vadd.f32 %v1287, %v1314
        %v1327 = vadd.f32 %v1288, %v1314
        %v1328 = vadd.f32 %v1289, %v1314
        %v1329 = vadd.f32 %v1290, %v1314
        %v1330 = vadd.f32 %v1291, %v1314
        %v1331 = vadd.f32 %v1292, %v1314
        %v1332 = vsel %vm838, %v1316, -inf
        %1333 = vmax.xlane.f32.xlu0 %v1332
        %v1334 = vpop.xlane.xlu0 %1333
        %v1335 = vsel %vm838, %v1317, -inf
        %1336 = vmax.xlane.f32.xlu0 %v1335
        %v1337 = vpop.xlane.xlu0 %1336
        %v1338 = vsel %vm838, %v1318, -inf
        %1339 = vmax.xlane.f32.xlu0 %v1338
        %v1340 = vpop.xlane.xlu0 %1339
        %v1341 = vsel %vm838, %v1319, -inf
        %1342 = vmax.xlane.f32.xlu0 %v1341
        %v1343 = vpop.xlane.xlu0 %1342
        %v1344 = vsel %vm838, %v1320, -inf
        %1345 = vmax.xlane.f32.xlu0 %v1344
        %v1346 = vpop.xlane.xlu0 %1345
        %v1347 = vsel %vm838, %v1321, -inf
        %1348 = vmax.xlane.f32.xlu0 %v1347
        %v1349 = vpop.xlane.xlu0 %1348
        %v1350 = vsel %vm838, %v1322, -inf
        %1351 = vmax.xlane.f32.xlu0 %v1350
        %v1352 = vpop.xlane.xlu0 %1351
        %v1353 = vsel %vm838, %v1323, -inf
        %1354 = vmax.xlane.f32.xlu0 %v1353
        %v1355 = vpop.xlane.xlu0 %1354
        %v1356 = vsel %vm838, %v1324, -inf
        %1357 = vmax.xlane.f32.xlu0 %v1356
        %v1358 = vpop.xlane.xlu0 %1357
        %v1359 = vsel %vm838, %v1325, -inf
        %1360 = vmax.xlane.f32.xlu0 %v1359
        %v1361 = vpop.xlane.xlu0 %1360
        %v1362 = vsel %vm838, %v1326, -inf
        %1363 = vmax.xlane.f32.xlu0 %v1362
        %v1364 = vpop.xlane.xlu0 %1363
        %v1365 = vsel %vm838, %v1327, -inf
        %1366 = vmax.xlane.f32.xlu0 %v1365
        %v1367 = vpop.xlane.xlu0 %1366
        %v1368 = vsel %vm838, %v1328, -inf
        %1369 = vmax.xlane.f32.xlu0 %v1368
        %v1370 = vpop.xlane.xlu0 %1369
        %v1371 = vsel %vm838, %v1329, -inf
        %1372 = vmax.xlane.f32.xlu0 %v1371
        %v1373 = vpop.xlane.xlu0 %1372
        %v1374 = vsel %vm838, %v1330, -inf
        %1375 = vmax.xlane.f32.xlu0 %v1374
        %v1376 = vpop.xlane.xlu0 %1375
        %v1377 = vsel %vm838, %v1331, -inf
        %1378 = vmax.xlane.f32.xlu0 %v1377
        %v1379 = vpop.xlane.xlu0 %1378
        %v1380 = vsub.f32 %v1316, %v1334
        %v1381 = vsub.f32 %v1317, %v1337
        %v1382 = vsub.f32 %v1318, %v1340
        %v1383 = vsub.f32 %v1319, %v1343
        %v1384 = vsub.f32 %v1320, %v1346
        %v1385 = vsub.f32 %v1321, %v1349
        %v1386 = vsub.f32 %v1322, %v1352
        %v1387 = vsub.f32 %v1323, %v1355
        %v1388 = vsub.f32 %v1324, %v1358
        %v1389 = vsub.f32 %v1325, %v1361
        %v1390 = vsub.f32 %v1326, %v1364
        %v1391 = vsub.f32 %v1327, %v1367
        %v1392 = vsub.f32 %v1328, %v1370
        %v1393 = vsub.f32 %v1329, %v1373
        %v1394 = vsub.f32 %v1330, %v1376
        %v1395 = vsub.f32 %v1331, %v1379
        %v1396 = vmul.f32 %v1380, 1.442695
        %v1397 = vpow.pop %v1396
        %v1398 = vmul.f32 %v1381, 1.442695
        %v1399 = vpow.pop %v1398
        %v1400 = vmul.f32 %v1382, 1.442695
        %v1401 = vpow.pop %v1400
        %v1402 = vmul.f32 %v1383, 1.442695
        %v1403 = vpow.pop %v1402
        %v1404 = vmul.f32 %v1384, 1.442695
        %v1405 = vpow.pop %v1404
        %v1406 = vmul.f32 %v1385, 1.442695
        %v1407 = vpow.pop %v1406
        %v1408 = vmul.f32 %v1386, 1.442695
        %v1409 = vpow.pop %v1408
        %v1410 = vmul.f32 %v1387, 1.442695
        %v1411 = vpow.pop %v1410
        %v1412 = vmul.f32 %v1388, 1.442695
        %v1413 = vpow.pop %v1412
        %v1414 = vmul.f32 %v1389, 1.442695
        %v1415 = vpow.pop %v1414
        %v1416 = vmul.f32 %v1390, 1.442695
        %v1417 = vpow.pop %v1416
        %v1418 = vmul.f32 %v1391, 1.442695
        %v1419 = vpow.pop %v1418
        %v1420 = vmul.f32 %v1392, 1.442695
        %v1421 = vpow.pop %v1420
        %v1422 = vmul.f32 %v1393, 1.442695
        %v1423 = vpow.pop %v1422
        %v1424 = vmul.f32 %v1394, 1.442695
        %v1425 = vpow.pop %v1424
        %v1426 = vmul.f32 %v1395, 1.442695
        %v1427 = vpow.pop %v1426
        %v1428 = vsel %vm838, %v1397, 0.0
        %1429 = vadd.xlane.f32.xlu0 %v1428
        %v1430 = vpop.xlane.xlu0 %1429
        %v1431 = vsel %vm838, %v1399, 0.0
        %1432 = vadd.xlane.f32.xlu0 %v1431
        %v1433 = vpop.xlane.xlu0 %1432
        %v1434 = vsel %vm838, %v1401, 0.0
        %1435 = vadd.xlane.f32.xlu0 %v1434
        %v1436 = vpop.xlane.xlu0 %1435
        %v1437 = vsel %vm838, %v1403, 0.0
        %1438 = vadd.xlane.f32.xlu0 %v1437
        %v1439 = vpop.xlane.xlu0 %1438
        %v1440 = vsel %vm838, %v1405, 0.0
        %1441 = vadd.xlane.f32.xlu0 %v1440
        %v1442 = vpop.xlane.xlu0 %1441
        %v1443 = vsel %vm838, %v1407, 0.0
        %1444 = vadd.xlane.f32.xlu0 %v1443
        %v1445 = vpop.xlane.xlu0 %1444
        %v1446 = vsel %vm838, %v1409, 0.0
        %1447 = vadd.xlane.f32.xlu0 %v1446
        %v1448 = vpop.xlane.xlu0 %1447
        %v1449 = vsel %vm838, %v1411, 0.0
        %1450 = vadd.xlane.f32.xlu0 %v1449
        %v1451 = vpop.xlane.xlu0 %1450
        %v1452 = vsel %vm838, %v1413, 0.0
        %1453 = vadd.xlane.f32.xlu0 %v1452
        %v1454 = vpop.xlane.xlu0 %1453
        %v1455 = vsel %vm838, %v1415, 0.0
        %1456 = vadd.xlane.f32.xlu0 %v1455
        %v1457 = vpop.xlane.xlu0 %1456
        %v1458 = vsel %vm838, %v1417, 0.0
        %1459 = vadd.xlane.f32.xlu0 %v1458
        %v1460 = vpop.xlane.xlu0 %1459
        %v1461 = vsel %vm838, %v1419, 0.0
        %1462 = vadd.xlane.f32.xlu0 %v1461
        %v1463 = vpop.xlane.xlu0 %1462
        %v1464 = vsel %vm838, %v1421, 0.0
        %1465 = vadd.xlane.f32.xlu0 %v1464
        %v1466 = vpop.xlane.xlu0 %1465
        %v1467 = vsel %vm838, %v1423, 0.0
        %1468 = vadd.xlane.f32.xlu0 %v1467
        %v1469 = vpop.xlane.xlu0 %1468
        %v1470 = vsel %vm838, %v1425, 0.0
        %1471 = vadd.xlane.f32.xlu0 %v1470
        %v1472 = vpop.xlane.xlu0 %1471
        %v1473 = vsel %vm838, %v1427, 0.0
        %1474 = vadd.xlane.f32.xlu0 %v1473
        %v1475 = vpop.xlane.xlu0 %1474
        %v1476 = vrcp.pop %v1430
        %v1477 = vmul.f32 %v1397, %v1476
        %v1478 = vrcp.pop %v1433
        %v1479 = vmul.f32 %v1399, %v1478
        %v1480 = vrcp.pop %v1436
        %v1481 = vmul.f32 %v1401, %v1480
        %v1482 = vrcp.pop %v1439
        %v1483 = vmul.f32 %v1403, %v1482
        %v1484 = vrcp.pop %v1442
        %v1485 = vmul.f32 %v1405, %v1484
        %v1486 = vrcp.pop %v1445
        %v1487 = vmul.f32 %v1407, %v1486
        %v1488 = vrcp.pop %v1448
        %v1489 = vmul.f32 %v1409, %v1488
        %v1490 = vrcp.pop %v1451
        %v1491 = vmul.f32 %v1411, %v1490
        %v1492 = vrcp.pop %v1454
        %v1493 = vmul.f32 %v1413, %v1492
        %v1494 = vrcp.pop %v1457
        %v1495 = vmul.f32 %v1415, %v1494
        %v1496 = vrcp.pop %v1460
        %v1497 = vmul.f32 %v1417, %v1496
        %v1498 = vrcp.pop %v1463
        %v1499 = vmul.f32 %v1419, %v1498
        %v1500 = vrcp.pop %v1466
        %v1501 = vmul.f32 %v1421, %v1500
        %v1502 = vrcp.pop %v1469
        %v1503 = vmul.f32 %v1423, %v1502
        %v1504 = vrcp.pop %v1472
        %v1505 = vmul.f32 %v1425, %v1504
        %v1506 = vrcp.pop %v1475
        %v1507 = vmul.f32 %v1427, %v1506
        %v1509 = vsel %vm838, %v1477, 0
        %v1512 = vsel %vm838, %v1479, 0
        %v1515 = vsel %vm838, %v1481, 0
        %v1518 = vsel %vm838, %v1483, 0
        %v1521 = vsel %vm838, %v1485, 0
        %v1524 = vsel %vm838, %v1487, 0
        %v1527 = vsel %vm838, %v1489, 0
        %v1530 = vsel %vm838, %v1491, 0
        %v1533 = vsel %vm838, %v1493, 0
        %v1536 = vsel %vm838, %v1495, 0
        %v1539 = vsel %vm838, %v1497, 0
        %v1542 = vsel %vm838, %v1499, 0
        %v1545 = vsel %vm838, %v1501, 0
        %v1548 = vsel %vm838, %v1503, 0
        %v1551 = vsel %vm838, %v1505, 0
        %v1554 = vsel %vm838, %v1507, 0
        %1556 = vmatprep.subr.mxu0 0.0
        %1557 = vmatpush1.msra.mxu0 %v810
        %1558 = vmatprep.subr.mxu0 0.0
        %1559 = vmatpush1.msra.mxu0 %v816
        %1560 = vmatprep.subr.mxu0 0.0
        %1561 = vmatpush1.msra.mxu0 0.0
        %1562 = vmatprep.subr.mxu0 0.0
        %1563 = vmatpush1.msra.mxu0 0.0
        %1564 = vmatprep.subr.mxu0 0.0
        %1565 = vmatpush1.msra.mxu0 0.0
        %1566 = vmatprep.subr.mxu0 0.0
        %1567 = vmatpush1.msra.mxu0 0.0
        %1568 = vmatprep.subr.mxu0 0.0
        %1569 = vmatpush1.msra.mxu0 0.0
        %1570 = vmatprep.subr.mxu0 0.0
        %1571 = vmatpush1.msra.mxu0 0.0
        %1572 = vmatprep.subr.mxu0 0.0
        %1573 = vmatpush1.msra.mxu0 0.0
        %1574 = vmatprep.subr.mxu0 0.0
        %1575 = vmatpush1.msra.mxu0 0.0
        %1576 = vmatprep.subr.mxu0 0.0
        %1577 = vmatpush1.msra.mxu0 0.0
        %1578 = vmatprep.subr.mxu0 0.0
        %1579 = vmatpush1.msra.mxu0 0.0
        %1580 = vmatprep.subr.mxu0 0.0
        %1581 = vmatpush1.msra.mxu0 0.0
        %1582 = vmatprep.subr.mxu0 0.0
        %1583 = vmatpush1.msra.mxu0 0.0
        %1584 = vmatprep.subr.mxu0 0.0
        %1585 = vmatpush1.msra.mxu0 0.0
        %1586 = vmatprep.subr.mxu0 0.0
        %1587 = vmatpush1.msra.mxu0 0.0
        %1588 = vmatprep.subr.mxu0 0.0
        %1589 = vmatpush1.msra.mxu0 0.0
        %1590 = vmatprep.subr.mxu0 0.0
        %1591 = vmatpush1.msra.mxu0 0.0
        %1592 = vmatprep.subr.mxu0 0.0
        %1593 = vmatpush1.msra.mxu0 0.0
        %1594 = vmatprep.subr.mxu0 0.0
        %1595 = vmatpush1.msra.mxu0 0.0
        %1596 = vmatprep.subr.mxu0 0.0
        %1597 = vmatpush1.msra.mxu0 0.0
        %1598 = vmatprep.subr.mxu0 0.0
        %1599 = vmatpush1.msra.mxu0 0.0
        %1600 = vmatprep.subr.mxu0 0.0
        %1601 = vmatpush1.msra.mxu0 0.0
        %1602 = vmatprep.subr.mxu0 0.0
        %1603 = vmatpush1.msra.mxu0 0.0
        %1604 = vmatprep.subr.mxu0 0.0
        %1605 = vmatpush1.msra.mxu0 0.0
        %1606 = vmatprep.subr.mxu0 0.0
        %1607 = vmatpush1.msra.mxu0 0.0
        %1608 = vmatprep.subr.mxu0 0.0
        %1609 = vmatpush1.msra.mxu0 0.0
        %1610 = vmatprep.subr.mxu0 0.0
        %1611 = vmatpush1.msra.mxu0 0.0
        %1612 = vmatprep.subr.mxu0 0.0
        %1613 = vmatpush1.msra.mxu0 0.0
        %1614 = vmatprep.subr.mxu0 0.0
        %1615 = vmatpush1.msra.mxu0 0.0
        %1616 = vmatprep.subr.mxu0 0.0
        %1617 = vmatpush1.msra.mxu0 0.0
        %1618 = vmatprep.subr.mxu0 0.0
        %1619 = vmatpush1.msra.mxu0 0.0
        %1620 = vmatprep.mubr.f32.mxu0 0.0
        %1621 = vmatmul.mubr.f32.gmra.mrb[0].mxu0 %v1509
        %v1622 = vpop.f32.mrb[0].mxu0
        %v1623 = vadd.f32 0.0, %v1622
        %v1624 = vpop.f32.mrb[0].mxu0
        %1625 = vmatprep.mubr.f32.mxu0 0.0
        %1626 = vmatmul.mubr.f32.gmra.mrb[0].mxu0 %v1512
        %v1627 = vpop.f32.mrb[0].mxu0
        %v1628 = vadd.f32 0.0, %v1627
        %v1629 = vpop.f32.mrb[0].mxu0
        %1630 = vmatprep.mubr.f32.mxu0 0.0
        %1631 = vmatmul.mubr.f32.gmra.mrb[0].mxu0 %v1515
        %v1632 = vpop.f32.mrb[0].mxu0
        %v1633 = vadd.f32 0.0, %v1632
        %v1634 = vpop.f32.mrb[0].mxu0
        %1635 = vmatprep.mubr.f32.mxu0 0.0
        %1636 = vmatmul.mubr.f32.gmra.mrb[0].mxu0 %v1518
        %v1637 = vpop.f32.mrb[0].mxu0
        %v1638 = vadd.f32 0.0, %v1637
        %v1639 = vpop.f32.mrb[0].mxu0
        %1640 = vmatprep.mubr.f32.mxu0 0.0
        %1641 = vmatmul.mubr.f32.gmra.mrb[0].mxu0 %v1521
        %v1642 = vpop.f32.mrb[0].mxu0
        %v1643 = vadd.f32 0.0, %v1642
        %v1644 = vpop.f32.mrb[0].mxu0
        %1645 = vmatprep.mubr.f32.mxu0 0.0
        %1646 = vmatmul.mubr.f32.gmra.mrb[0].mxu0 %v1524
        %v1647 = vpop.f32.mrb[0].mxu0
        %v1648 = vadd.f32 0.0, %v1647
        %v1649 = vpop.f32.mrb[0].mxu0
        %1650 = vmatprep.mubr.f32.mxu0 0.0
        %1651 = vmatmul.mubr.f32.gmra.mrb[0].mxu0 %v1527
        %v1652 = vpop.f32.mrb[0].mxu0
        %v1653 = vadd.f32 0.0, %v1652
        %v1654 = vpop.f32.mrb[0].mxu0
        %1655 = vmatprep.mubr.f32.mxu0 0.0
        %1656 = vmatmul.mubr.f32.gmra.mrb[0].mxu0 %v1530
        %v1657 = vpop.f32.mrb[0].mxu0
        %v1658 = vadd.f32 0.0, %v1657
        %v1659 = vpop.f32.mrb[0].mxu0
        %1660 = vmatprep.mubr.f32.mxu0 0.0
        %1661 = vmatmul.mubr.f32.gmra.mrb[0].mxu0 %v1533
        %v1662 = vpop.f32.mrb[0].mxu0
        %v1663 = vadd.f32 0.0, %v1662
        %v1664 = vpop.f32.mrb[0].mxu0
        %1665 = vmatprep.mubr.f32.mxu0 0.0
        %1666 = vmatmul.mubr.f32.gmra.mrb[0].mxu0 %v1536
        %v1667 = vpop.f32.mrb[0].mxu0
        %v1668 = vadd.f32 0.0, %v1667
        %v1669 = vpop.f32.mrb[0].mxu0
        %1670 = vmatprep.mubr.f32.mxu0 0.0
        %1671 = vmatmul.mubr.f32.gmra.mrb[0].mxu0 %v1539
        %v1672 = vpop.f32.mrb[0].mxu0
        %v1673 = vadd.f32 0.0, %v1672
        %v1674 = vpop.f32.mrb[0].mxu0
        %1675 = vmatprep.mubr.f32.mxu0 0.0
        %1676 = vmatmul.mubr.f32.gmra.mrb[0].mxu0 %v1542
        %v1677 = vpop.f32.mrb[0].mxu0
        %v1678 = vadd.f32 0.0, %v1677
        %v1679 = vpop.f32.mrb[0].mxu0
        %1680 = vmatprep.mubr.f32.mxu0 0.0
        %1681 = vmatmul.mubr.f32.gmra.mrb[0].mxu0 %v1545
        %v1682 = vpop.f32.mrb[0].mxu0
        %v1683 = vadd.f32 0.0, %v1682
        %v1684 = vpop.f32.mrb[0].mxu0
        %1685 = vmatprep.mubr.f32.mxu0 0.0
        %1686 = vmatmul.mubr.f32.gmra.mrb[0].mxu0 %v1548
        %v1687 = vpop.f32.mrb[0].mxu0
        %v1688 = vadd.f32 0.0, %v1687
        %v1689 = vpop.f32.mrb[0].mxu0
        %1690 = vmatprep.mubr.f32.mxu0 0.0
        %1691 = vmatmul.mubr.f32.gmra.mrb[0].mxu0 %v1551
        %v1692 = vpop.f32.mrb[0].mxu0
        %v1693 = vadd.f32 0.0, %v1692
        %v1694 = vpop.f32.mrb[0].mxu0
        %1695 = vmatprep.mubr.f32.mxu0 0.0
        %1696 = vmatmul.mubr.f32.gmra.mrb[0].mxu0 %v1554
        %v1697 = vpop.f32.mrb[0].mxu0
        %v1698 = vadd.f32 0.0, %v1697
        %v1699 = vpop.f32.mrb[0].mxu0
        %1700 = vdwg.mxu0
        %v1701 = vmul.f32 %v1623, %v696
        %v1702 = vmul.f32 %v1628, %v697
        %v1703 = vmul.f32 %v1633, %v698
        %v1704 = vmul.f32 %v1638, %v699
        %v1705 = vmul.f32 %v1643, %v700
        %v1706 = vmul.f32 %v1648, %v701
        %v1707 = vmul.f32 %v1653, %v702
        %v1708 = vmul.f32 %v1658, %v703
        %v1709 = vmul.f32 %v1663, %v704
        %v1710 = vmul.f32 %v1668, %v705
        %v1711 = vmul.f32 %v1673, %v706
        %v1712 = vmul.f32 %v1678, %v707
        %v1713 = vmul.f32 %v1683, %v708
        %v1714 = vmul.f32 %v1688, %v709
        %v1715 = vmul.f32 %v1693, %v710
        %v1716 = vmul.f32 %v1698, %v711
        %1717 = vmatprep.subr.mxu0 0.0
        %1718 = vmatpush1.msra.mxu0 %v1701
        %1719 = vmatprep.subr.mxu0 0.0
        %1720 = vmatpush1.msra.mxu0 %v1702
        %1721 = vmatprep.subr.mxu0 0.0
        %1722 = vmatpush1.msra.mxu0 %v1703
        %1723 = vmatprep.subr.mxu0 0.0
        %1724 = vmatpush1.msra.mxu0 %v1704
        %1725 = vmatprep.subr.mxu0 0.0
        %1726 = vmatpush1.msra.mxu0 %v1705
        %1727 = vmatprep.subr.mxu0 0.0
        %1728 = vmatpush1.msra.mxu0 %v1706
        %1729 = vmatprep.subr.mxu0 0.0
        %1730 = vmatpush1.msra.mxu0 %v1707
        %1731 = vmatprep.subr.mxu0 0.0
        %1732 = vmatpush1.msra.mxu0 %v1708
        %1733 = vmatprep.subr.mxu0 0.0
        %1734 = vmatpush1.msra.mxu0 %v1709
        %1735 = vmatprep.subr.mxu0 0.0
        %1736 = vmatpush1.msra.mxu0 %v1710
        %1737 = vmatprep.subr.mxu0 0.0
        %1738 = vmatpush1.msra.mxu0 %v1711
        %1739 = vmatprep.subr.mxu0 0.0
        %1740 = vmatpush1.msra.mxu0 %v1712
        %1741 = vmatprep.subr.mxu0 0.0
        %1742 = vmatpush1.msra.mxu0 %v1713
        %1743 = vmatprep.subr.mxu0 0.0
        %1744 = vmatpush1.msra.mxu0 %v1714
        %1745 = vmatprep.subr.mxu0 0.0
        %1746 = vmatpush1.msra.mxu0 %v1715
        %1747 = vmatprep.subr.mxu0 0.0
        %1748 = vmatpush1.msra.mxu0 %v1716
        %1749 = vmatprep.subr.mxu0 0.0
        %1750 = vmatpush1.msra.mxu0 0.0
        %1751 = vmatprep.subr.mxu0 0.0
        %1752 = vmatpush1.msra.mxu0 0.0
        %1753 = vmatprep.subr.mxu0 0.0
        %1754 = vmatpush1.msra.mxu0 0.0
        %1755 = vmatprep.subr.mxu0 0.0
        %1756 = vmatpush1.msra.mxu0 0.0
        %1757 = vmatprep.subr.mxu0 0.0
        %1758 = vmatpush1.msra.mxu0 0.0
        %1759 = vmatprep.subr.mxu0 0.0
        %1760 = vmatpush1.msra.mxu0 0.0
        %1761 = vmatprep.subr.mxu0 0.0
        %1762 = vmatpush1.msra.mxu0 0.0
        %1763 = vmatprep.subr.mxu0 0.0
        %1764 = vmatpush1.msra.mxu0 0.0
        %1765 = vmatprep.subr.mxu0 0.0
        %1766 = vmatpush1.msra.mxu0 0.0
        %1767 = vmatprep.subr.mxu0 0.0
        %1768 = vmatpush1.msra.mxu0 0.0
        %1769 = vmatprep.subr.mxu0 0.0
        %1770 = vmatpush1.msra.mxu0 0.0
        %1771 = vmatprep.subr.mxu0 0.0
        %1772 = vmatpush1.msra.mxu0 0.0
        %1773 = vmatprep.subr.mxu0 0.0
        %1774 = vmatpush1.msra.mxu0 0.0
        %1775 = vmatprep.subr.mxu0 0.0
        %1776 = vmatpush1.msra.mxu0 0.0
        %1777 = vmatprep.subr.mxu0 0.0
        %1778 = vmatpush1.msra.mxu0 0.0
        %1779 = vmatprep.subr.mxu0 0.0
        %1780 = vmatpush1.msra.mxu0 0.0
        %1781 = vmatprep.mubr.f32.mxu0 0.0
        %1782 = vmatmul.mubr.f32.gmra.mrb[0].mxu0 %v694
        %v1783 = vpop.f32.mrb[0].mxu0
        %v1784 = vadd.f32 0.0, %v1783
        %v1785 = vpop.f32.mrb[0].mxu0
        %1786 = vmatprep.mubr.f32.mxu0 0.0
        %1787 = vmatmul.mubr.f32.gmra.mrb[0].mxu0 %v695
        %v1788 = vpop.f32.mrb[0].mxu0
        %v1789 = vadd.f32 0.0, %v1788
        %v1790 = vpop.f32.mrb[0].mxu0
        %1791 = vdwg.mxu0
        %1792 = vst.msk [vmem:[#allocation3] sm:$0xff] %vm728, %v1784
        %1793 = vst.msk [vmem:[#allocation3 + $0x8] sm:$0xff] %vm728, %v1789
        %1796 = vrot.lane.b32.xlu0 %v820, 64
        %v1797 = vpop.permute.xlu0 %1796
        %1798 = vrot.lane.b32.xlu0 %v826, 64
        %v1799 = vpop.permute.xlu0 %1798
        %1802 = vmatprep.subr.mxu0 0.0
        %1803 = vmatpush1.msra.mxu0 %v1797
        %1804 = vmatprep.subr.mxu0 0.0
        %1805 = vmatpush1.msra.mxu0 %v1799
        %1806 = vmatprep.subr.mxu0 0.0
        %1807 = vmatpush1.msra.mxu0 0.0
        %1808 = vmatprep.subr.mxu0 0.0
        %1809 = vmatpush1.msra.mxu0 0.0
        %1810 = vmatprep.subr.mxu0 0.0
        %1811 = vmatpush1.msra.mxu0 0.0
        %1812 = vmatprep.subr.mxu0 0.0
        %1813 = vmatpush1.msra.mxu0 0.0
        %1814 = vmatprep.subr.mxu0 0.0
        %1815 = vmatpush1.msra.mxu0 0.0
        %1816 = vmatprep.subr.mxu0 0.0
        %1817 = vmatpush1.msra.mxu0 0.0
        %1818 = vmatprep.subr.mxu0 0.0
        %1819 = vmatpush1.msra.mxu0 0.0
        %1820 = vmatprep.subr.mxu0 0.0
        %1821 = vmatpush1.msra.mxu0 0.0
        %1822 = vmatprep.subr.mxu0 0.0
        %1823 = vmatpush1.msra.mxu0 0.0
        %1824 = vmatprep.subr.mxu0 0.0
        %1825 = vmatpush1.msra.mxu0 0.0
        %1826 = vmatprep.subr.mxu0 0.0
        %1827 = vmatpush1.msra.mxu0 0.0
        %1828 = vmatprep.subr.mxu0 0.0
        %1829 = vmatpush1.msra.mxu0 0.0
        %1830 = vmatprep.subr.mxu0 0.0
        %1831 = vmatpush1.msra.mxu0 0.0
        %1832 = vmatprep.subr.mxu0 0.0
        %1833 = vmatpush1.msra.mxu0 0.0
        %1834 = vmatprep.subr.mxu0 0.0
        %1835 = vmatpush1.msra.mxu0 0.0
        %1836 = vmatprep.subr.mxu0 0.0
        %1837 = vmatpush1.msra.mxu0 0.0
        %1838 = vmatprep.subr.mxu0 0.0
        %1839 = vmatpush1.msra.mxu0 0.0
        %1840 = vmatprep.subr.mxu0 0.0
        %1841 = vmatpush1.msra.mxu0 0.0
        %1842 = vmatprep.subr.mxu0 0.0
        %1843 = vmatpush1.msra.mxu0 0.0
        %1844 = vmatprep.subr.mxu0 0.0
        %1845 = vmatpush1.msra.mxu0 0.0
        %1846 = vmatprep.subr.mxu0 0.0
        %1847 = vmatpush1.msra.mxu0 0.0
        %1848 = vmatprep.subr.mxu0 0.0
        %1849 = vmatpush1.msra.mxu0 0.0
        %1850 = vmatprep.subr.mxu0 0.0
        %1851 = vmatpush1.msra.mxu0 0.0
        %1852 = vmatprep.subr.mxu0 0.0
        %1853 = vmatpush1.msra.mxu0 0.0
        %1854 = vmatprep.subr.mxu0 0.0
        %1855 = vmatpush1.msra.mxu0 0.0
        %1856 = vmatprep.subr.mxu0 0.0
        %1857 = vmatpush1.msra.mxu0 0.0
        %1858 = vmatprep.subr.mxu0 0.0
        %1859 = vmatpush1.msra.mxu0 0.0
        %1860 = vmatprep.subr.mxu0 0.0
        %1861 = vmatpush1.msra.mxu0 0.0
        %1862 = vmatprep.subr.mxu0 0.0
        %1863 = vmatpush1.msra.mxu0 0.0
        %1864 = vmatprep.subr.mxu0 0.0
        %1865 = vmatpush1.msra.mxu0 0.0
        %1866 = vmatprep.mubr.f32.mxu0 0.0
        %1867 = vmatmul.mubr.f32.gmra.mrb[0].mxu0 %v840
        %v1868 = vpop.f32.mrb[0].mxu0
        %v1869 = vadd.f32 0.0, %v1868
        %v1870 = vpop.f32.mrb[0].mxu0
        %1871 = vmatprep.mubr.f32.mxu0 0.0
        %1872 = vmatmul.mubr.f32.gmra.mrb[0].mxu0 %v843
        %v1873 = vpop.f32.mrb[0].mxu0
        %v1874 = vadd.f32 0.0, %v1873
        %v1875 = vpop.f32.mrb[0].mxu0
        %1876 = vmatprep.mubr.f32.mxu0 0.0
        %1877 = vmatmul.mubr.f32.gmra.mrb[0].mxu0 %v846
        %v1878 = vpop.f32.mrb[0].mxu0
        %v1879 = vadd.f32 0.0, %v1878
        %v1880 = vpop.f32.mrb[0].mxu0
        %1881 = vmatprep.mubr.f32.mxu0 0.0
        %1882 = vmatmul.mubr.f32.gmra.mrb[0].mxu0 %v849
        %v1883 = vpop.f32.mrb[0].mxu0
        %v1884 = vadd.f32 0.0, %v1883
        %v1885 = vpop.f32.mrb[0].mxu0
        %1886 = vmatprep.mubr.f32.mxu0 0.0
        %1887 = vmatmul.mubr.f32.gmra.mrb[0].mxu0 %v852
        %v1888 = vpop.f32.mrb[0].mxu0
        %v1889 = vadd.f32 0.0, %v1888
        %v1890 = vpop.f32.mrb[0].mxu0
        %1891 = vmatprep.mubr.f32.mxu0 0.0
        %1892 = vmatmul.mubr.f32.gmra.mrb[0].mxu0 %v855
        %v1893 = vpop.f32.mrb[0].mxu0
        %v1894 = vadd.f32 0.0, %v1893
        %v1895 = vpop.f32.mrb[0].mxu0
        %1896 = vmatprep.mubr.f32.mxu0 0.0
        %1897 = vmatmul.mubr.f32.gmra.mrb[0].mxu0 %v858
        %v1898 = vpop.f32.mrb[0].mxu0
        %v1899 = vadd.f32 0.0, %v1898
        %v1900 = vpop.f32.mrb[0].mxu0
        %1901 = vmatprep.mubr.f32.mxu0 0.0
        %1902 = vmatmul.mubr.f32.gmra.mrb[0].mxu0 %v861
        %v1903 = vpop.f32.mrb[0].mxu0
        %v1904 = vadd.f32 0.0, %v1903
        %v1905 = vpop.f32.mrb[0].mxu0
        %1906 = vmatprep.mubr.f32.mxu0 0.0
        %1907 = vmatmul.mubr.f32.gmra.mrb[0].mxu0 %v864
        %v1908 = vpop.f32.mrb[0].mxu0
        %v1909 = vadd.f32 0.0, %v1908
        %v1910 = vpop.f32.mrb[0].mxu0
        %1911 = vmatprep.mubr.f32.mxu0 0.0
        %1912 = vmatmul.mubr.f32.gmra.mrb[0].mxu0 %v867
        %v1913 = vpop.f32.mrb[0].mxu0
        %v1914 = vadd.f32 0.0, %v1913
        %v1915 = vpop.f32.mrb[0].mxu0
        %1916 = vmatprep.mubr.f32.mxu0 0.0
        %1917 = vmatmul.mubr.f32.gmra.mrb[0].mxu0 %v870
        %v1918 = vpop.f32.mrb[0].mxu0
        %v1919 = vadd.f32 0.0, %v1918
        %v1920 = vpop.f32.mrb[0].mxu0
        %1921 = vmatprep.mubr.f32.mxu0 0.0
        %1922 = vmatmul.mubr.f32.gmra.mrb[0].mxu0 %v873
        %v1923 = vpop.f32.mrb[0].mxu0
        %v1924 = vadd.f32 0.0, %v1923
        %v1925 = vpop.f32.mrb[0].mxu0
        %1926 = vmatprep.mubr.f32.mxu0 0.0
        %1927 = vmatmul.mubr.f32.gmra.mrb[0].mxu0 %v876
        %v1928 = vpop.f32.mrb[0].mxu0
        %v1929 = vadd.f32 0.0, %v1928
        %v1930 = vpop.f32.mrb[0].mxu0
        %1931 = vmatprep.mubr.f32.mxu0 0.0
        %1932 = vmatmul.mubr.f32.gmra.mrb[0].mxu0 %v879
        %v1933 = vpop.f32.mrb[0].mxu0
        %v1934 = vadd.f32 0.0, %v1933
        %v1935 = vpop.f32.mrb[0].mxu0
        %1936 = vmatprep.mubr.f32.mxu0 0.0
        %1937 = vmatmul.mubr.f32.gmra.mrb[0].mxu0 %v882
        %v1938 = vpop.f32.mrb[0].mxu0
        %v1939 = vadd.f32 0.0, %v1938
        %v1940 = vpop.f32.mrb[0].mxu0
        %1941 = vmatprep.mubr.f32.mxu0 0.0
        %1942 = vmatmul.mubr.f32.gmra.mrb[0].mxu0 %v885
        %v1943 = vpop.f32.mrb[0].mxu0
        %v1944 = vadd.f32 0.0, %v1943
        %v1945 = vpop.f32.mrb[0].mxu0
        %1946 = vdwg.mxu0
        %v1947 = vmul.f32 %v1869, %v696
        %v1948 = vmul.f32 %v1874, %v697
        %v1949 = vmul.f32 %v1879, %v698
        %v1950 = vmul.f32 %v1884, %v699
        %v1951 = vmul.f32 %v1889, %v700
        %v1952 = vmul.f32 %v1894, %v701
        %v1953 = vmul.f32 %v1899, %v702
        %v1954 = vmul.f32 %v1904, %v703
        %v1955 = vmul.f32 %v1909, %v704
        %v1956 = vmul.f32 %v1914, %v705
        %v1957 = vmul.f32 %v1919, %v706
        %v1958 = vmul.f32 %v1924, %v707
        %v1959 = vmul.f32 %v1929, %v708
        %v1960 = vmul.f32 %v1934, %v709
        %v1961 = vmul.f32 %v1939, %v710
        %v1962 = vmul.f32 %v1944, %v711
        %v1964 = vsel %vm728, %v1947, 0
        %v1967 = vsel %vm728, %v1948, 0
        %v1970 = vsel %vm728, %v1949, 0
        %v1973 = vsel %vm728, %v1950, 0
        %v1976 = vsel %vm728, %v1951, 0
        %v1979 = vsel %vm728, %v1952, 0
        %v1982 = vsel %vm728, %v1953, 0
        %v1985 = vsel %vm728, %v1954, 0
        %v1988 = vsel %vm728, %v1955, 0
        %v1991 = vsel %vm728, %v1956, 0
        %v1994 = vsel %vm728, %v1957, 0
        %v1997 = vsel %vm728, %v1958, 0
        %v2000 = vsel %vm728, %v1959, 0
        %v2003 = vsel %vm728, %v1960, 0
        %v2006 = vsel %vm728, %v1961, 0
        %v2009 = vsel %vm728, %v1962, 0
        %v2011 = vsel %vm728, %v820, 0
        %v2013 = vsel %vm728, %v826, 0
        %2015 = vmatprep.subr.mxu0 0.0
        %2016 = vmatpush1.xpose.msra.mxu0 %v2011
        %2017 = vmatprep.subr.mxu0 0.0
        %2018 = vmatpush1.xpose.msra.mxu0 %v2013
        %2019 = vmatprep.subr.mxu0 0.0
        %2020 = vmatpush1.xpose.msra.mxu0 0.0
        %2021 = vmatprep.subr.mxu0 0.0
        %2022 = vmatpush1.xpose.msra.mxu0 0.0
        %2023 = vmatprep.subr.mxu0 0.0
        %2024 = vmatpush1.xpose.msra.mxu0 0.0
        %2025 = vmatprep.subr.mxu0 0.0
        %2026 = vmatpush1.xpose.msra.mxu0 0.0
        %2027 = vmatprep.subr.mxu0 0.0
        %2028 = vmatpush1.xpose.msra.mxu0 0.0
        %2029 = vmatprep.subr.mxu0 0.0
        %2030 = vmatpush1.xpose.msra.mxu0 0.0
        %2031 = vmatprep.subr.mxu0 0.0
        %2032 = vmatpush1.xpose.msra.mxu0 0.0
        %2033 = vmatprep.subr.mxu0 0.0
        %2034 = vmatpush1.xpose.msra.mxu0 0.0
        %2035 = vmatprep.subr.mxu0 0.0
        %2036 = vmatpush1.xpose.msra.mxu0 0.0
        %2037 = vmatprep.subr.mxu0 0.0
        %2038 = vmatpush1.xpose.msra.mxu0 0.0
        %2039 = vmatprep.subr.mxu0 0.0
        %2040 = vmatpush1.xpose.msra.mxu0 0.0
        %2041 = vmatprep.subr.mxu0 0.0
        %2042 = vmatpush1.xpose.msra.mxu0 0.0
        %2043 = vmatprep.subr.mxu0 0.0
        %2044 = vmatpush1.xpose.msra.mxu0 0.0
        %2045 = vmatprep.subr.mxu0 0.0
        %2046 = vmatpush1.xpose.msra.mxu0 0.0
        %2047 = vmatprep.subr.mxu0 0.0
        %2048 = vmatpush1.xpose.msra.mxu0 0.0
        %2049 = vmatprep.subr.mxu0 0.0
        %2050 = vmatpush1.xpose.msra.mxu0 0.0
        %2051 = vmatprep.subr.mxu0 0.0
        %2052 = vmatpush1.xpose.msra.mxu0 0.0
        %2053 = vmatprep.subr.mxu0 0.0
        %2054 = vmatpush1.xpose.msra.mxu0 0.0
        %2055 = vmatprep.subr.mxu0 0.0
        %2056 = vmatpush1.xpose.msra.mxu0 0.0
        %2057 = vmatprep.subr.mxu0 0.0
        %2058 = vmatpush1.xpose.msra.mxu0 0.0
        %2059 = vmatprep.subr.mxu0 0.0
        %2060 = vmatpush1.xpose.msra.mxu0 0.0
        %2061 = vmatprep.subr.mxu0 0.0
        %2062 = vmatpush1.xpose.msra.mxu0 0.0
        %2063 = vmatprep.subr.mxu0 0.0
        %2064 = vmatpush1.xpose.msra.mxu0 0.0
        %2065 = vmatprep.subr.mxu0 0.0
        %2066 = vmatpush1.xpose.msra.mxu0 0.0
        %2067 = vmatprep.subr.mxu0 0.0
        %2068 = vmatpush1.xpose.msra.mxu0 0.0
        %2069 = vmatprep.subr.mxu0 0.0
        %2070 = vmatpush1.xpose.msra.mxu0 0.0
        %2071 = vmatprep.subr.mxu0 0.0
        %2072 = vmatpush1.xpose.msra.mxu0 0.0
        %2073 = vmatprep.subr.mxu0 0.0
        %2074 = vmatpush1.xpose.msra.mxu0 0.0
        %2075 = vmatprep.subr.mxu0 0.0
        %2076 = vmatpush1.xpose.msra.mxu0 0.0
        %2077 = vmatprep.subr.mxu0 0.0
        %2078 = vmatpush1.xpose.msra.mxu0 0.0
        %2079 = vmatprep.mubr.f32.mxu0 0.0
        %2080 = vmatmul.mubr.f32.gmra.mrb[0].mxu0 %v1964
        %v2081 = vpop.f32.mrb[0].mxu0
        %v2082 = vadd.f32 0.0, %v2081
        %v2083 = vpop.f32.mrb[0].mxu0
        %2084 = vmatprep.mubr.f32.mxu0 0.0
        %2085 = vmatmul.mubr.f32.gmra.mrb[0].mxu0 %v1967
        %v2086 = vpop.f32.mrb[0].mxu0
        %v2087 = vadd.f32 0.0, %v2086
        %v2088 = vpop.f32.mrb[0].mxu0
        %2089 = vmatprep.mubr.f32.mxu0 0.0
        %2090 = vmatmul.mubr.f32.gmra.mrb[0].mxu0 %v1970
        %v2091 = vpop.f32.mrb[0].mxu0
        %v2092 = vadd.f32 0.0, %v2091
        %v2093 = vpop.f32.mrb[0].mxu0
        %2094 = vmatprep.mubr.f32.mxu0 0.0
        %2095 = vmatmul.mubr.f32.gmra.mrb[0].mxu0 %v1973
        %v2096 = vpop.f32.mrb[0].mxu0
        %v2097 = vadd.f32 0.0, %v2096
        %v2098 = vpop.f32.mrb[0].mxu0
        %2099 = vmatprep.mubr.f32.mxu0 0.0
        %2100 = vmatmul.mubr.f32.gmra.mrb[0].mxu0 %v1976
        %v2101 = vpop.f32.mrb[0].mxu0
        %v2102 = vadd.f32 0.0, %v2101
        %v2103 = vpop.f32.mrb[0].mxu0
        %2104 = vmatprep.mubr.f32.mxu0 0.0
        %2105 = vmatmul.mubr.f32.gmra.mrb[0].mxu0 %v1979
        %v2106 = vpop.f32.mrb[0].mxu0
        %v2107 = vadd.f32 0.0, %v2106
        %v2108 = vpop.f32.mrb[0].mxu0
        %2109 = vmatprep.mubr.f32.mxu0 0.0
        %2110 = vmatmul.mubr.f32.gmra.mrb[0].mxu0 %v1982
        %v2111 = vpop.f32.mrb[0].mxu0
        %v2112 = vadd.f32 0.0, %v2111
        %v2113 = vpop.f32.mrb[0].mxu0
        %2114 = vmatprep.mubr.f32.mxu0 0.0
        %2115 = vmatmul.mubr.f32.gmra.mrb[0].mxu0 %v1985
        %v2116 = vpop.f32.mrb[0].mxu0
        %v2117 = vadd.f32 0.0, %v2116
        %v2118 = vpop.f32.mrb[0].mxu0
        %2119 = vmatprep.mubr.f32.mxu0 0.0
        %2120 = vmatmul.mubr.f32.gmra.mrb[0].mxu0 %v1988
        %v2121 = vpop.f32.mrb[0].mxu0
        %v2122 = vadd.f32 0.0, %v2121
        %v2123 = vpop.f32.mrb[0].mxu0
        %2124 = vmatprep.mubr.f32.mxu0 0.0
        %2125 = vmatmul.mubr.f32.gmra.mrb[0].mxu0 %v1991
        %v2126 = vpop.f32.mrb[0].mxu0
        %v2127 = vadd.f32 0.0, %v2126
        %v2128 = vpop.f32.mrb[0].mxu0
        %2129 = vmatprep.mubr.f32.mxu0 0.0
        %2130 = vmatmul.mubr.f32.gmra.mrb[0].mxu0 %v1994
        %v2131 = vpop.f32.mrb[0].mxu0
        %v2132 = vadd.f32 0.0, %v2131
        %v2133 = vpop.f32.mrb[0].mxu0
        %2134 = vmatprep.mubr.f32.mxu0 0.0
        %2135 = vmatmul.mubr.f32.gmra.mrb[0].mxu0 %v1997
        %v2136 = vpop.f32.mrb[0].mxu0
        %v2137 = vadd.f32 0.0, %v2136
        %v2138 = vpop.f32.mrb[0].mxu0
        %2139 = vmatprep.mubr.f32.mxu0 0.0
        %2140 = vmatmul.mubr.f32.gmra.mrb[0].mxu0 %v2000
        %v2141 = vpop.f32.mrb[0].mxu0
        %v2142 = vadd.f32 0.0, %v2141
        %v2143 = vpop.f32.mrb[0].mxu0
        %2144 = vmatprep.mubr.f32.mxu0 0.0
        %2145 = vmatmul.mubr.f32.gmra.mrb[0].mxu0 %v2003
        %v2146 = vpop.f32.mrb[0].mxu0
        %v2147 = vadd.f32 0.0, %v2146
        %v2148 = vpop.f32.mrb[0].mxu0
        %2149 = vmatprep.mubr.f32.mxu0 0.0
        %2150 = vmatmul.mubr.f32.gmra.mrb[0].mxu0 %v2006
        %v2151 = vpop.f32.mrb[0].mxu0
        %v2152 = vadd.f32 0.0, %v2151
        %v2153 = vpop.f32.mrb[0].mxu0
        %2154 = vmatprep.mubr.f32.mxu0 0.0
        %2155 = vmatmul.mubr.f32.gmra.mrb[0].mxu0 %v2009
        %v2156 = vpop.f32.mrb[0].mxu0
        %v2157 = vadd.f32 0.0, %v2156
        %v2158 = vpop.f32.mrb[0].mxu0
        %2159 = vdwg.mxu0
        %v2160 = vmul.f32 %v2082, 0.35355338
        %v2161 = vmul.f32 %v2087, 0.35355338
        %v2162 = vmul.f32 %v2092, 0.35355338
        %v2163 = vmul.f32 %v2097, 0.35355338
        %v2164 = vmul.f32 %v2102, 0.35355338
        %v2165 = vmul.f32 %v2107, 0.35355338
        %v2166 = vmul.f32 %v2112, 0.35355338
        %v2167 = vmul.f32 %v2117, 0.35355338
        %v2168 = vmul.f32 %v2122, 0.35355338
        %v2169 = vmul.f32 %v2127, 0.35355338
        %v2170 = vmul.f32 %v2132, 0.35355338
        %v2171 = vmul.f32 %v2137, 0.35355338
        %v2172 = vmul.f32 %v2142, 0.35355338
        %v2173 = vmul.f32 %v2147, 0.35355338
        %v2174 = vmul.f32 %v2152, 0.35355338
        %v2175 = vmul.f32 %v2157, 0.35355338
        %s2176 = scalar_lea.vmem [#allocation2], 128
        %v2177 = vld [vmem:[%s2176] sm:$0xff]
        %v2178 = vld [vmem:[%s2176 + $0x8] sm:$0xff]
        %v2179 = vld [vmem:[%s2176 + $0x10] sm:$0xff]
        %v2180 = vld [vmem:[%s2176 + $0x18] sm:$0xff]
        %v2181 = vld [vmem:[%s2176 + $0x20] sm:$0xff]
        %v2182 = vld [vmem:[%s2176 + $0x28] sm:$0xff]
        %v2183 = vld [vmem:[%s2176 + $0x30] sm:$0xff]
        %v2184 = vld [vmem:[%s2176 + $0x38] sm:$0xff]
        %v2185 = vld [vmem:[%s2176 + $0x40] sm:$0xff]
        %v2186 = vld [vmem:[%s2176 + $0x48] sm:$0xff]
        %v2187 = vld [vmem:[%s2176 + $0x50] sm:$0xff]
        %v2188 = vld [vmem:[%s2176 + $0x58] sm:$0xff]
        %v2189 = vld [vmem:[%s2176 + $0x60] sm:$0xff]
        %v2190 = vld [vmem:[%s2176 + $0x68] sm:$0xff]
        %v2191 = vld [vmem:[%s2176 + $0x70] sm:$0xff]
        %v2192 = vld [vmem:[%s2176 + $0x78] sm:$0xff]
        %v2193 = vadd.f32 %v2160, %v2177
        %v2194 = vadd.f32 %v2161, %v2178
        %v2195 = vadd.f32 %v2162, %v2179
        %v2196 = vadd.f32 %v2163, %v2180
        %v2197 = vadd.f32 %v2164, %v2181
        %v2198 = vadd.f32 %v2165, %v2182
        %v2199 = vadd.f32 %v2166, %v2183
        %v2200 = vadd.f32 %v2167, %v2184
        %v2201 = vadd.f32 %v2168, %v2185
        %v2202 = vadd.f32 %v2169, %v2186
        %v2203 = vadd.f32 %v2170, %v2187
        %v2204 = vadd.f32 %v2171, %v2188
        %v2205 = vadd.f32 %v2172, %v2189
        %v2206 = vadd.f32 %v2173, %v2190
        %v2207 = vadd.f32 %v2174, %v2191
        %v2208 = vadd.f32 %v2175, %v2192
        %2209 = vst.msk [vmem:[%s2176] sm:$0xff] %vm838, %v2193
        %2210 = vst.msk [vmem:[%s2176 + $0x8] sm:$0xff] %vm838, %v2194
        %2211 = vst.msk [vmem:[%s2176 + $0x10] sm:$0xff] %vm838, %v2195
        %2212 = vst.msk [vmem:[%s2176 + $0x18] sm:$0xff] %vm838, %v2196
        %2213 = vst.msk [vmem:[%s2176 + $0x20] sm:$0xff] %vm838, %v2197
        %2214 = vst.msk [vmem:[%s2176 + $0x28] sm:$0xff] %vm838, %v2198
        %2215 = vst.msk [vmem:[%s2176 + $0x30] sm:$0xff] %vm838, %v2199
        %2216 = vst.msk [vmem:[%s2176 + $0x38] sm:$0xff] %vm838, %v2200
        %2217 = vst.msk [vmem:[%s2176 + $0x40] sm:$0xff] %vm838, %v2201
        %2218 = vst.msk [vmem:[%s2176 + $0x48] sm:$0xff] %vm838, %v2202
        %2219 = vst.msk [vmem:[%s2176 + $0x50] sm:$0xff] %vm838, %v2203
        %2220 = vst.msk [vmem:[%s2176 + $0x58] sm:$0xff] %vm838, %v2204
        %2221 = vst.msk [vmem:[%s2176 + $0x60] sm:$0xff] %vm838, %v2205
        %2222 = vst.msk [vmem:[%s2176 + $0x68] sm:$0xff] %vm838, %v2206
        %2223 = vst.msk [vmem:[%s2176 + $0x70] sm:$0xff] %vm838, %v2207
        %2224 = vst.msk [vmem:[%s2176 + $0x78] sm:$0xff] %vm838, %v2208
        %s2225 = scalar_lea.vmem %s1, 1
        %v2226 = vld [vmem:[%s2225] sm:$0x1]
        %v2228 = vlaneseq
        %v2229 = vshrl.u32 %v2228, 7
        %v2230 = vsub.s32 0, %v2229
        %v2231 = vrot.slane %v2226, %v2230
        %v2233 = vadd.f32 %v2193, %v2231
        %v2234 = vadd.f32 %v2194, %v2231
        %v2235 = vadd.f32 %v2195, %v2231
        %v2236 = vadd.f32 %v2196, %v2231
        %v2237 = vadd.f32 %v2197, %v2231
        %v2238 = vadd.f32 %v2198, %v2231
        %v2239 = vadd.f32 %v2199, %v2231
        %v2240 = vadd.f32 %v2200, %v2231
        %v2241 = vadd.f32 %v2201, %v2231
        %v2242 = vadd.f32 %v2202, %v2231
        %v2243 = vadd.f32 %v2203, %v2231
        %v2244 = vadd.f32 %v2204, %v2231
        %v2245 = vadd.f32 %v2205, %v2231
        %v2246 = vadd.f32 %v2206, %v2231
        %v2247 = vadd.f32 %v2207, %v2231
        %v2248 = vadd.f32 %v2208, %v2231
        %v2249 = vsel %vm838, %v2233, -inf
        %2250 = vmax.xlane.f32.xlu0 %v2249
        %v2251 = vpop.xlane.xlu0 %2250
        %v2252 = vsel %vm838, %v2234, -inf
        %2253 = vmax.xlane.f32.xlu0 %v2252
        %v2254 = vpop.xlane.xlu0 %2253
        %v2255 = vsel %vm838, %v2235, -inf
        %2256 = vmax.xlane.f32.xlu0 %v2255
        %v2257 = vpop.xlane.xlu0 %2256
        %v2258 = vsel %vm838, %v2236, -inf
        %2259 = vmax.xlane.f32.xlu0 %v2258
        %v2260 = vpop.xlane.xlu0 %2259
        %v2261 = vsel %vm838, %v2237, -inf
        %2262 = vmax.xlane.f32.xlu0 %v2261
        %v2263 = vpop.xlane.xlu0 %2262
        %v2264 = vsel %vm838, %v2238, -inf
        %2265 = vmax.xlane.f32.xlu0 %v2264
        %v2266 = vpop.xlane.xlu0 %2265
        %v2267 = vsel %vm838, %v2239, -inf
        %2268 = vmax.xlane.f32.xlu0 %v2267
        %v2269 = vpop.xlane.xlu0 %2268
        %v2270 = vsel %vm838, %v2240, -inf
        %2271 = vmax.xlane.f32.xlu0 %v2270
        %v2272 = vpop.xlane.xlu0 %2271
        %v2273 = vsel %vm838, %v2241, -inf
        %2274 = vmax.xlane.f32.xlu0 %v2273
        %v2275 = vpop.xlane.xlu0 %2274
        %v2276 = vsel %vm838, %v2242, -inf
        %2277 = vmax.xlane.f32.xlu0 %v2276
        %v2278 = vpop.xlane.xlu0 %2277
        %v2279 = vsel %vm838, %v2243, -inf
        %2280 = vmax.xlane.f32.xlu0 %v2279
        %v2281 = vpop.xlane.xlu0 %2280
        %v2282 = vsel %vm838, %v2244, -inf
        %2283 = vmax.xlane.f32.xlu0 %v2282
        %v2284 = vpop.xlane.xlu0 %2283
        %v2285 = vsel %vm838, %v2245, -inf
        %2286 = vmax.xlane.f32.xlu0 %v2285
        %v2287 = vpop.xlane.xlu0 %2286
        %v2288 = vsel %vm838, %v2246, -inf
        %2289 = vmax.xlane.f32.xlu0 %v2288
        %v2290 = vpop.xlane.xlu0 %2289
        %v2291 = vsel %vm838, %v2247, -inf
        %2292 = vmax.xlane.f32.xlu0 %v2291
        %v2293 = vpop.xlane.xlu0 %2292
        %v2294 = vsel %vm838, %v2248, -inf
        %2295 = vmax.xlane.f32.xlu0 %v2294
        %v2296 = vpop.xlane.xlu0 %2295
        %v2297 = vsub.f32 %v2233, %v2251
        %v2298 = vsub.f32 %v2234, %v2254
        %v2299 = vsub.f32 %v2235, %v2257
        %v2300 = vsub.f32 %v2236, %v2260
        %v2301 = vsub.f32 %v2237, %v2263
        %v2302 = vsub.f32 %v2238, %v2266
        %v2303 = vsub.f32 %v2239, %v2269
        %v2304 = vsub.f32 %v2240, %v2272
        %v2305 = vsub.f32 %v2241, %v2275
        %v2306 = vsub.f32 %v2242, %v2278
        %v2307 = vsub.f32 %v2243, %v2281
        %v2308 = vsub.f32 %v2244, %v2284
        %v2309 = vsub.f32 %v2245, %v2287
        %v2310 = vsub.f32 %v2246, %v2290
        %v2311 = vsub.f32 %v2247, %v2293
        %v2312 = vsub.f32 %v2248, %v2296
        %v2313 = vmul.f32 %v2297, 1.442695
        %v2314 = vpow.pop %v2313
        %v2315 = vmul.f32 %v2298, 1.442695
        %v2316 = vpow.pop %v2315
        %v2317 = vmul.f32 %v2299, 1.442695
        %v2318 = vpow.pop %v2317
        %v2319 = vmul.f32 %v2300, 1.442695
        %v2320 = vpow.pop %v2319
        %v2321 = vmul.f32 %v2301, 1.442695
        %v2322 = vpow.pop %v2321
        %v2323 = vmul.f32 %v2302, 1.442695
        %v2324 = vpow.pop %v2323
        %v2325 = vmul.f32 %v2303, 1.442695
        %v2326 = vpow.pop %v2325
        %v2327 = vmul.f32 %v2304, 1.442695
        %v2328 = vpow.pop %v2327
        %v2329 = vmul.f32 %v2305, 1.442695
        %v2330 = vpow.pop %v2329
        %v2331 = vmul.f32 %v2306, 1.442695
        %v2332 = vpow.pop %v2331
        %v2333 = vmul.f32 %v2307, 1.442695
        %v2334 = vpow.pop %v2333
        %v2335 = vmul.f32 %v2308, 1.442695
        %v2336 = vpow.pop %v2335
        %v2337 = vmul.f32 %v2309, 1.442695
        %v2338 = vpow.pop %v2337
        %v2339 = vmul.f32 %v2310, 1.442695
        %v2340 = vpow.pop %v2339
        %v2341 = vmul.f32 %v2311, 1.442695
        %v2342 = vpow.pop %v2341
        %v2343 = vmul.f32 %v2312, 1.442695
        %v2344 = vpow.pop %v2343
        %v2345 = vsel %vm838, %v2314, 0.0
        %2346 = vadd.xlane.f32.xlu0 %v2345
        %v2347 = vpop.xlane.xlu0 %2346
        %v2348 = vsel %vm838, %v2316, 0.0
        %2349 = vadd.xlane.f32.xlu0 %v2348
        %v2350 = vpop.xlane.xlu0 %2349
        %v2351 = vsel %vm838, %v2318, 0.0
        %2352 = vadd.xlane.f32.xlu0 %v2351
        %v2353 = vpop.xlane.xlu0 %2352
        %v2354 = vsel %vm838, %v2320, 0.0
        %2355 = vadd.xlane.f32.xlu0 %v2354
        %v2356 = vpop.xlane.xlu0 %2355
        %v2357 = vsel %vm838, %v2322, 0.0
        %2358 = vadd.xlane.f32.xlu0 %v2357
        %v2359 = vpop.xlane.xlu0 %2358
        %v2360 = vsel %vm838, %v2324, 0.0
        %2361 = vadd.xlane.f32.xlu0 %v2360
        %v2362 = vpop.xlane.xlu0 %2361
        %v2363 = vsel %vm838, %v2326, 0.0
        %2364 = vadd.xlane.f32.xlu0 %v2363
        %v2365 = vpop.xlane.xlu0 %2364
        %v2366 = vsel %vm838, %v2328, 0.0
        %2367 = vadd.xlane.f32.xlu0 %v2366
        %v2368 = vpop.xlane.xlu0 %2367
        %v2369 = vsel %vm838, %v2330, 0.0
        %2370 = vadd.xlane.f32.xlu0 %v2369
        %v2371 = vpop.xlane.xlu0 %2370
        %v2372 = vsel %vm838, %v2332, 0.0
        %2373 = vadd.xlane.f32.xlu0 %v2372
        %v2374 = vpop.xlane.xlu0 %2373
        %v2375 = vsel %vm838, %v2334, 0.0
        %2376 = vadd.xlane.f32.xlu0 %v2375
        %v2377 = vpop.xlane.xlu0 %2376
        %v2378 = vsel %vm838, %v2336, 0.0
        %2379 = vadd.xlane.f32.xlu0 %v2378
        %v2380 = vpop.xlane.xlu0 %2379
        %v2381 = vsel %vm838, %v2338, 0.0
        %2382 = vadd.xlane.f32.xlu0 %v2381
        %v2383 = vpop.xlane.xlu0 %2382
        %v2384 = vsel %vm838, %v2340, 0.0
        %2385 = vadd.xlane.f32.xlu0 %v2384
        %v2386 = vpop.xlane.xlu0 %2385
        %v2387 = vsel %vm838, %v2342, 0.0
        %2388 = vadd.xlane.f32.xlu0 %v2387
        %v2389 = vpop.xlane.xlu0 %2388
        %v2390 = vsel %vm838, %v2344, 0.0
        %2391 = vadd.xlane.f32.xlu0 %v2390
        %v2392 = vpop.xlane.xlu0 %2391
        %v2393 = vrcp.pop %v2347
        %v2394 = vmul.f32 %v2314, %v2393
        %v2395 = vrcp.pop %v2350
        %v2396 = vmul.f32 %v2316, %v2395
        %v2397 = vrcp.pop %v2353
        %v2398 = vmul.f32 %v2318, %v2397
        %v2399 = vrcp.pop %v2356
        %v2400 = vmul.f32 %v2320, %v2399
        %v2401 = vrcp.pop %v2359
        %v2402 = vmul.f32 %v2322, %v2401
        %v2403 = vrcp.pop %v2362
        %v2404 = vmul.f32 %v2324, %v2403
        %v2405 = vrcp.pop %v2365
        %v2406 = vmul.f32 %v2326, %v2405
        %v2407 = vrcp.pop %v2368
        %v2408 = vmul.f32 %v2328, %v2407
        %v2409 = vrcp.pop %v2371
        %v2410 = vmul.f32 %v2330, %v2409
        %v2411 = vrcp.pop %v2374
        %v2412 = vmul.f32 %v2332, %v2411
        %v2413 = vrcp.pop %v2377
        %v2414 = vmul.f32 %v2334, %v2413
        %v2415 = vrcp.pop %v2380
        %v2416 = vmul.f32 %v2336, %v2415
        %v2417 = vrcp.pop %v2383
        %v2418 = vmul.f32 %v2338, %v2417
        %v2419 = vrcp.pop %v2386
        %v2420 = vmul.f32 %v2340, %v2419
        %v2421 = vrcp.pop %v2389
        %v2422 = vmul.f32 %v2342, %v2421
        %v2423 = vrcp.pop %v2392
        %v2424 = vmul.f32 %v2344, %v2423
        %v2426 = vsel %vm838, %v2394, 0
        %v2429 = vsel %vm838, %v2396, 0
        %v2432 = vsel %vm838, %v2398, 0
        %v2435 = vsel %vm838, %v2400, 0
        %v2438 = vsel %vm838, %v2402, 0
        %v2441 = vsel %vm838, %v2404, 0
        %v2444 = vsel %vm838, %v2406, 0
        %v2447 = vsel %vm838, %v2408, 0
        %v2450 = vsel %vm838, %v2410, 0
        %v2453 = vsel %vm838, %v2412, 0
        %v2456 = vsel %vm838, %v2414, 0
        %v2459 = vsel %vm838, %v2416, 0
        %v2462 = vsel %vm838, %v2418, 0
        %v2465 = vsel %vm838, %v2420, 0
        %v2468 = vsel %vm838, %v2422, 0
        %v2471 = vsel %vm838, %v2424, 0
        %2473 = vmatprep.subr.mxu0 0.0
        %2474 = vmatpush1.msra.mxu0 %v822
        %2475 = vmatprep.subr.mxu0 0.0
        %2476 = vmatpush1.msra.mxu0 %v828
        %2477 = vmatprep.subr.mxu0 0.0
        %2478 = vmatpush1.msra.mxu0 0.0
        %2479 = vmatprep.subr.mxu0 0.0
        %2480 = vmatpush1.msra.mxu0 0.0
        %2481 = vmatprep.subr.mxu0 0.0
        %2482 = vmatpush1.msra.mxu0 0.0
        %2483 = vmatprep.subr.mxu0 0.0
        %2484 = vmatpush1.msra.mxu0 0.0
        %2485 = vmatprep.subr.mxu0 0.0
        %2486 = vmatpush1.msra.mxu0 0.0
        %2487 = vmatprep.subr.mxu0 0.0
        %2488 = vmatpush1.msra.mxu0 0.0
        %2489 = vmatprep.subr.mxu0 0.0
        %2490 = vmatpush1.msra.mxu0 0.0
        %2491 = vmatprep.subr.mxu0 0.0
        %2492 = vmatpush1.msra.mxu0 0.0
        %2493 = vmatprep.subr.mxu0 0.0
        %2494 = vmatpush1.msra.mxu0 0.0
        %2495 = vmatprep.subr.mxu0 0.0
        %2496 = vmatpush1.msra.mxu0 0.0
        %2497 = vmatprep.subr.mxu0 0.0
        %2498 = vmatpush1.msra.mxu0 0.0
        %2499 = vmatprep.subr.mxu0 0.0
        %2500 = vmatpush1.msra.mxu0 0.0
        %2501 = vmatprep.subr.mxu0 0.0
        %2502 = vmatpush1.msra.mxu0 0.0
        %2503 = vmatprep.subr.mxu0 0.0
        %2504 = vmatpush1.msra.mxu0 0.0
        %2505 = vmatprep.subr.mxu0 0.0
        %2506 = vmatpush1.msra.mxu0 0.0
        %2507 = vmatprep.subr.mxu0 0.0
        %2508 = vmatpush1.msra.mxu0 0.0
        %2509 = vmatprep.subr.mxu0 0.0
        %2510 = vmatpush1.msra.mxu0 0.0
        %2511 = vmatprep.subr.mxu0 0.0
        %2512 = vmatpush1.msra.mxu0 0.0
        %2513 = vmatprep.subr.mxu0 0.0
        %2514 = vmatpush1.msra.mxu0 0.0
        %2515 = vmatprep.subr.mxu0 0.0
        %2516 = vmatpush1.msra.mxu0 0.0
        %2517 = vmatprep.subr.mxu0 0.0
        %2518 = vmatpush1.msra.mxu0 0.0
        %2519 = vmatprep.subr.mxu0 0.0
        %2520 = vmatpush1.msra.mxu0 0.0
        %2521 = vmatprep.subr.mxu0 0.0
        %2522 = vmatpush1.msra.mxu0 0.0
        %2523 = vmatprep.subr.mxu0 0.0
        %2524 = vmatpush1.msra.mxu0 0.0
        %2525 = vmatprep.subr.mxu0 0.0
        %2526 = vmatpush1.msra.mxu0 0.0
        %2527 = vmatprep.subr.mxu0 0.0
        %2528 = vmatpush1.msra.mxu0 0.0
        %2529 = vmatprep.subr.mxu0 0.0
        %2530 = vmatpush1.msra.mxu0 0.0
        %2531 = vmatprep.subr.mxu0 0.0
        %2532 = vmatpush1.msra.mxu0 0.0
        %2533 = vmatprep.subr.mxu0 0.0
        %2534 = vmatpush1.msra.mxu0 0.0
        %2535 = vmatprep.subr.mxu0 0.0
        %2536 = vmatpush1.msra.mxu0 0.0
        %2537 = vmatprep.mubr.f32.mxu0 0.0
        %2538 = vmatmul.mubr.f32.gmra.mrb[0].mxu0 %v2426
        %v2539 = vpop.f32.mrb[0].mxu0
        %v2540 = vadd.f32 0.0, %v2539
        %v2541 = vpop.f32.mrb[0].mxu0
        %2542 = vmatprep.mubr.f32.mxu0 0.0
        %2543 = vmatmul.mubr.f32.gmra.mrb[0].mxu0 %v2429
        %v2544 = vpop.f32.mrb[0].mxu0
        %v2545 = vadd.f32 0.0, %v2544
        %v2546 = vpop.f32.mrb[0].mxu0
        %2547 = vmatprep.mubr.f32.mxu0 0.0
        %2548 = vmatmul.mubr.f32.gmra.mrb[0].mxu0 %v2432
        %v2549 = vpop.f32.mrb[0].mxu0
        %v2550 = vadd.f32 0.0, %v2549
        %v2551 = vpop.f32.mrb[0].mxu0
        %2552 = vmatprep.mubr.f32.mxu0 0.0
        %2553 = vmatmul.mubr.f32.gmra.mrb[0].mxu0 %v2435
        %v2554 = vpop.f32.mrb[0].mxu0
        %v2555 = vadd.f32 0.0, %v2554
        %v2556 = vpop.f32.mrb[0].mxu0
        %2557 = vmatprep.mubr.f32.mxu0 0.0
        %2558 = vmatmul.mubr.f32.gmra.mrb[0].mxu0 %v2438
        %v2559 = vpop.f32.mrb[0].mxu0
        %v2560 = vadd.f32 0.0, %v2559
        %v2561 = vpop.f32.mrb[0].mxu0
        %2562 = vmatprep.mubr.f32.mxu0 0.0
        %2563 = vmatmul.mubr.f32.gmra.mrb[0].mxu0 %v2441
        %v2564 = vpop.f32.mrb[0].mxu0
        %v2565 = vadd.f32 0.0, %v2564
        %v2566 = vpop.f32.mrb[0].mxu0
        %2567 = vmatprep.mubr.f32.mxu0 0.0
        %2568 = vmatmul.mubr.f32.gmra.mrb[0].mxu0 %v2444
        %v2569 = vpop.f32.mrb[0].mxu0
        %v2570 = vadd.f32 0.0, %v2569
        %v2571 = vpop.f32.mrb[0].mxu0
        %2572 = vmatprep.mubr.f32.mxu0 0.0
        %2573 = vmatmul.mubr.f32.gmra.mrb[0].mxu0 %v2447
        %v2574 = vpop.f32.mrb[0].mxu0
        %v2575 = vadd.f32 0.0, %v2574
        %v2576 = vpop.f32.mrb[0].mxu0
        %2577 = vmatprep.mubr.f32.mxu0 0.0
        %2578 = vmatmul.mubr.f32.gmra.mrb[0].mxu0 %v2450
        %v2579 = vpop.f32.mrb[0].mxu0
        %v2580 = vadd.f32 0.0, %v2579
        %v2581 = vpop.f32.mrb[0].mxu0
        %2582 = vmatprep.mubr.f32.mxu0 0.0
        %2583 = vmatmul.mubr.f32.gmra.mrb[0].mxu0 %v2453
        %v2584 = vpop.f32.mrb[0].mxu0
        %v2585 = vadd.f32 0.0, %v2584
        %v2586 = vpop.f32.mrb[0].mxu0
        %2587 = vmatprep.mubr.f32.mxu0 0.0
        %2588 = vmatmul.mubr.f32.gmra.mrb[0].mxu0 %v2456
        %v2589 = vpop.f32.mrb[0].mxu0
        %v2590 = vadd.f32 0.0, %v2589
        %v2591 = vpop.f32.mrb[0].mxu0
        %2592 = vmatprep.mubr.f32.mxu0 0.0
        %2593 = vmatmul.mubr.f32.gmra.mrb[0].mxu0 %v2459
        %v2594 = vpop.f32.mrb[0].mxu0
        %v2595 = vadd.f32 0.0, %v2594
        %v2596 = vpop.f32.mrb[0].mxu0
        %2597 = vmatprep.mubr.f32.mxu0 0.0
        %2598 = vmatmul.mubr.f32.gmra.mrb[0].mxu0 %v2462
        %v2599 = vpop.f32.mrb[0].mxu0
        %v2600 = vadd.f32 0.0, %v2599
        %v2601 = vpop.f32.mrb[0].mxu0
        %2602 = vmatprep.mubr.f32.mxu0 0.0
        %2603 = vmatmul.mubr.f32.gmra.mrb[0].mxu0 %v2465
        %v2604 = vpop.f32.mrb[0].mxu0
        %v2605 = vadd.f32 0.0, %v2604
        %v2606 = vpop.f32.mrb[0].mxu0
        %2607 = vmatprep.mubr.f32.mxu0 0.0
        %2608 = vmatmul.mubr.f32.gmra.mrb[0].mxu0 %v2468
        %v2609 = vpop.f32.mrb[0].mxu0
        %v2610 = vadd.f32 0.0, %v2609
        %v2611 = vpop.f32.mrb[0].mxu0
        %2612 = vmatprep.mubr.f32.mxu0 0.0
        %2613 = vmatmul.mubr.f32.gmra.mrb[0].mxu0 %v2471
        %v2614 = vpop.f32.mrb[0].mxu0
        %v2615 = vadd.f32 0.0, %v2614
        %v2616 = vpop.f32.mrb[0].mxu0
        %2617 = vdwg.mxu0
        %v2618 = vmul.f32 %v2540, %v696
        %v2619 = vmul.f32 %v2545, %v697
        %v2620 = vmul.f32 %v2550, %v698
        %v2621 = vmul.f32 %v2555, %v699
        %v2622 = vmul.f32 %v2560, %v700
        %v2623 = vmul.f32 %v2565, %v701
        %v2624 = vmul.f32 %v2570, %v702
        %v2625 = vmul.f32 %v2575, %v703
        %v2626 = vmul.f32 %v2580, %v704
        %v2627 = vmul.f32 %v2585, %v705
        %v2628 = vmul.f32 %v2590, %v706
        %v2629 = vmul.f32 %v2595, %v707
        %v2630 = vmul.f32 %v2600, %v708
        %v2631 = vmul.f32 %v2605, %v709
        %v2632 = vmul.f32 %v2610, %v710
        %v2633 = vmul.f32 %v2615, %v711
        %2634 = vmatprep.subr.mxu0 0.0
        %2635 = vmatpush1.msra.mxu0 %v2618
        %2636 = vmatprep.subr.mxu0 0.0
        %2637 = vmatpush1.msra.mxu0 %v2619
        %2638 = vmatprep.subr.mxu0 0.0
        %2639 = vmatpush1.msra.mxu0 %v2620
        %2640 = vmatprep.subr.mxu0 0.0
        %2641 = vmatpush1.msra.mxu0 %v2621
        %2642 = vmatprep.subr.mxu0 0.0
        %2643 = vmatpush1.msra.mxu0 %v2622
        %2644 = vmatprep.subr.mxu0 0.0
        %2645 = vmatpush1.msra.mxu0 %v2623
        %2646 = vmatprep.subr.mxu0 0.0
        %2647 = vmatpush1.msra.mxu0 %v2624
        %2648 = vmatprep.subr.mxu0 0.0
        %2649 = vmatpush1.msra.mxu0 %v2625
        %2650 = vmatprep.subr.mxu0 0.0
        %2651 = vmatpush1.msra.mxu0 %v2626
        %2652 = vmatprep.subr.mxu0 0.0
        %2653 = vmatpush1.msra.mxu0 %v2627
        %2654 = vmatprep.subr.mxu0 0.0
        %2655 = vmatpush1.msra.mxu0 %v2628
        %2656 = vmatprep.subr.mxu0 0.0
        %2657 = vmatpush1.msra.mxu0 %v2629
        %2658 = vmatprep.subr.mxu0 0.0
        %2659 = vmatpush1.msra.mxu0 %v2630
        %2660 = vmatprep.subr.mxu0 0.0
        %2661 = vmatpush1.msra.mxu0 %v2631
        %2662 = vmatprep.subr.mxu0 0.0
        %2663 = vmatpush1.msra.mxu0 %v2632
        %2664 = vmatprep.subr.mxu0 0.0
        %2665 = vmatpush1.msra.mxu0 %v2633
        %2666 = vmatprep.subr.mxu0 0.0
        %2667 = vmatpush1.msra.mxu0 0.0
        %2668 = vmatprep.subr.mxu0 0.0
        %2669 = vmatpush1.msra.mxu0 0.0
        %2670 = vmatprep.subr.mxu0 0.0
        %2671 = vmatpush1.msra.mxu0 0.0
        %2672 = vmatprep.subr.mxu0 0.0
        %2673 = vmatpush1.msra.mxu0 0.0
        %2674 = vmatprep.subr.mxu0 0.0
        %2675 = vmatpush1.msra.mxu0 0.0
        %2676 = vmatprep.subr.mxu0 0.0
        %2677 = vmatpush1.msra.mxu0 0.0
        %2678 = vmatprep.subr.mxu0 0.0
        %2679 = vmatpush1.msra.mxu0 0.0
        %2680 = vmatprep.subr.mxu0 0.0
        %2681 = vmatpush1.msra.mxu0 0.0
        %2682 = vmatprep.subr.mxu0 0.0
        %2683 = vmatpush1.msra.mxu0 0.0
        %2684 = vmatprep.subr.mxu0 0.0
        %2685 = vmatpush1.msra.mxu0 0.0
        %2686 = vmatprep.subr.mxu0 0.0
        %2687 = vmatpush1.msra.mxu0 0.0
        %2688 = vmatprep.subr.mxu0 0.0
        %2689 = vmatpush1.msra.mxu0 0.0
        %2690 = vmatprep.subr.mxu0 0.0
        %2691 = vmatpush1.msra.mxu0 0.0
        %2692 = vmatprep.subr.mxu0 0.0
        %2693 = vmatpush1.msra.mxu0 0.0
        %2694 = vmatprep.subr.mxu0 0.0
        %2695 = vmatpush1.msra.mxu0 0.0
        %2696 = vmatprep.subr.mxu0 0.0
        %2697 = vmatpush1.msra.mxu0 0.0
        %2698 = vmatprep.mubr.f32.mxu0 0.0
        %2699 = vmatmul.mubr.f32.gmra.mrb[0].mxu0 %v694
        %v2700 = vpop.f32.mrb[0].mxu0
        %v2701 = vadd.f32 0.0, %v2700
        %v2702 = vpop.f32.mrb[0].mxu0
        %2703 = vmatprep.mubr.f32.mxu0 0.0
        %2704 = vmatmul.mubr.f32.gmra.mrb[0].mxu0 %v695
        %v2705 = vpop.f32.mrb[0].mxu0
        %v2706 = vadd.f32 0.0, %v2705
        %v2707 = vpop.f32.mrb[0].mxu0
        %2708 = vdwg.mxu0
        %2709 = vst.msk [vmem:[#allocation3 + $0x10] sm:$0xff] %vm728, %v2701
        %2710 = vst.msk [vmem:[#allocation3 + $0x18] sm:$0xff] %vm728, %v2706
        %v2711 = vld [vmem:[#allocation3] sm:$0xff]
        %v2712 = vld [vmem:[#allocation3 + $0x8] sm:$0xff]
        %v2713 = vld [vmem:[#allocation3 + $0x10] sm:$0xff]
        %v2714 = vld [vmem:[#allocation3 + $0x18] sm:$0xff]
        %v2715 = vld [vmem:[%s598] sm:$0xff]
        %v2716 = vld [vmem:[%s598 + $0x8] sm:$0xff]
        %v2717 = vld [vmem:[%s598 + $0x10] sm:$0xff]
        %v2718 = vld [vmem:[%s598 + $0x18] sm:$0xff]
        %v2719 = vld [vmem:[%s598 + $0x20] sm:$0xff]
        %v2720 = vld [vmem:[%s598 + $0x28] sm:$0xff]
        %v2721 = vld [vmem:[%s598 + $0x30] sm:$0xff]
        %v2722 = vld [vmem:[%s598 + $0x38] sm:$0xff]
        %v2724 = vsel %vm728, %v2711, 0
        %v2727 = vsel %vm728, %v2712, 0
        %v2730 = vsel %vm728, %v2713, 0
        %v2733 = vsel %vm728, %v2714, 0
        %2735 = vmatprep.subr.mxu0 0.0
        %2736 = vmatpush1.msra.mxu0 %v2715
        %2737 = vmatprep.subr.mxu0 0.0
        %2738 = vmatpush1.msra.mxu0 %v2716
        %2739 = vmatprep.subr.mxu0 0.0
        %2740 = vmatpush1.msra.mxu0 %v2717
        %2741 = vmatprep.subr.mxu0 0.0
        %2742 = vmatpush1.msra.mxu0 %v2718
        %2743 = vmatprep.subr.mxu0 0.0
        %2744 = vmatpush1.msra.mxu0 %v2719
        %2745 = vmatprep.subr.mxu0 0.0
        %2746 = vmatpush1.msra.mxu0 %v2720
        %2747 = vmatprep.subr.mxu0 0.0
        %2748 = vmatpush1.msra.mxu0 %v2721
        %2749 = vmatprep.subr.mxu0 0.0
        %2750 = vmatpush1.msra.mxu0 %v2722
        %2751 = vmatprep.subr.mxu0 0.0
        %2752 = vmatpush1.msra.mxu0 0.0
        %2753 = vmatprep.subr.mxu0 0.0
        %2754 = vmatpush1.msra.mxu0 0.0
        %2755 = vmatprep.subr.mxu0 0.0
        %2756 = vmatpush1.msra.mxu0 0.0
        %2757 = vmatprep.subr.mxu0 0.0
        %2758 = vmatpush1.msra.mxu0 0.0
        %2759 = vmatprep.subr.mxu0 0.0
        %2760 = vmatpush1.msra.mxu0 0.0
        %2761 = vmatprep.subr.mxu0 0.0
        %2762 = vmatpush1.msra.mxu0 0.0
        %2763 = vmatprep.subr.mxu0 0.0
        %2764 = vmatpush1.msra.mxu0 0.0
        %2765 = vmatprep.subr.mxu0 0.0
        %2766 = vmatpush1.msra.mxu0 0.0
        %2767 = vmatprep.subr.mxu0 0.0
        %2768 = vmatpush1.msra.mxu0 0.0
        %2769 = vmatprep.subr.mxu0 0.0
        %2770 = vmatpush1.msra.mxu0 0.0
        %2771 = vmatprep.subr.mxu0 0.0
        %2772 = vmatpush1.msra.mxu0 0.0
        %2773 = vmatprep.subr.mxu0 0.0
        %2774 = vmatpush1.msra.mxu0 0.0
        %2775 = vmatprep.subr.mxu0 0.0
        %2776 = vmatpush1.msra.mxu0 0.0
        %2777 = vmatprep.subr.mxu0 0.0
        %2778 = vmatpush1.msra.mxu0 0.0
        %2779 = vmatprep.subr.mxu0 0.0
        %2780 = vmatpush1.msra.mxu0 0.0
        %2781 = vmatprep.subr.mxu0 0.0
        %2782 = vmatpush1.msra.mxu0 0.0
        %2783 = vmatprep.subr.mxu0 0.0
        %2784 = vmatpush1.msra.mxu0 0.0
        %2785 = vmatprep.subr.mxu0 0.0
        %2786 = vmatpush1.msra.mxu0 0.0
        %2787 = vmatprep.subr.mxu0 0.0
        %2788 = vmatpush1.msra.mxu0 0.0
        %2789 = vmatprep.subr.mxu0 0.0
        %2790 = vmatpush1.msra.mxu0 0.0
        %2791 = vmatprep.subr.mxu0 0.0
        %2792 = vmatpush1.msra.mxu0 0.0
        %2793 = vmatprep.subr.mxu0 0.0
        %2794 = vmatpush1.msra.mxu0 0.0
        %2795 = vmatprep.subr.mxu0 0.0
        %2796 = vmatpush1.msra.mxu0 0.0
        %2797 = vmatprep.subr.mxu0 0.0
        %2798 = vmatpush1.msra.mxu0 0.0
        %2799 = vmatprep.mubr.f32.mxu0 0.0
        %2800 = vmatmul.mubr.f32.gmra.mrb[0].mxu0 %v2724
        %v2801 = vpop.f32.mrb[0].mxu0
        %v2802 = vadd.f32 0.0, %v2801
        %v2803 = vpop.f32.mrb[0].mxu0
        %2804 = vmatprep.mubr.f32.mxu0 0.0
        %2805 = vmatmul.mubr.f32.gmra.mrb[0].mxu0 %v2727
        %v2806 = vpop.f32.mrb[0].mxu0
        %v2807 = vadd.f32 0.0, %v2806
        %v2808 = vpop.f32.mrb[0].mxu0
        %2809 = vmatprep.mubr.f32.mxu0 0.0
        %2810 = vmatmul.mubr.f32.gmra.mrb[0].mxu0 %v2730
        %v2811 = vpop.f32.mrb[0].mxu0
        %v2812 = vadd.f32 0.0, %v2811
        %v2813 = vpop.f32.mrb[0].mxu0
        %2814 = vmatprep.mubr.f32.mxu0 0.0
        %2815 = vmatmul.mubr.f32.gmra.mrb[0].mxu0 %v2733
        %v2816 = vpop.f32.mrb[0].mxu0
        %v2817 = vadd.f32 0.0, %v2816
        %v2818 = vpop.f32.mrb[0].mxu0
        %2819 = vdwg.mxu0
        %v2820 = vadd.f32 %v674, %v2802
        %v2821 = vadd.f32 %v675, %v2807
        %v2822 = vadd.f32 %v676, %v2812
        %v2823 = vadd.f32 %v677, %v2817
        %v2824 = vld [vmem:[%s601] sm:$0x1]
        %v2825 = vld [vmem:[%s604] sm:$0x1]
        %v2826 = vsel %vm728, %v2820, 0.0
        %2827 = vadd.xlane.f32.xlu0 %v2826
        %v2828 = vpop.xlane.xlu0 %2827
        %v2829 = vsel %vm728, %v2821, 0.0
        %2830 = vadd.xlane.f32.xlu0 %v2829
        %v2831 = vpop.xlane.xlu0 %2830
        %v2832 = vsel %vm728, %v2822, 0.0
        %2833 = vadd.xlane.f32.xlu0 %v2832
        %v2834 = vpop.xlane.xlu0 %2833
        %v2835 = vsel %vm728, %v2823, 0.0
        %2836 = vadd.xlane.f32.xlu0 %v2835
        %v2837 = vpop.xlane.xlu0 %2836
        %v2838 = vrcp.pop 64.0
        %v2839 = vmul.f32 %v2828, %v2838
        %v2840 = vmul.f32 %v2831, %v2838
        %v2841 = vmul.f32 %v2834, %v2838
        %v2842 = vmul.f32 %v2837, %v2838
        %v2843 = vsub.f32 %v2820, %v2839
        %v2844 = vsub.f32 %v2821, %v2840
        %v2845 = vsub.f32 %v2822, %v2841
        %v2846 = vsub.f32 %v2823, %v2842
        %v2847 = vmul.f32 %v2843, %v2843
        %v2848 = vmul.f32 %v2844, %v2844
        %v2849 = vmul.f32 %v2845, %v2845
        %v2850 = vmul.f32 %v2846, %v2846
        %v2851 = vsel %vm728, %v2847, 0.0
        %2852 = vadd.xlane.f32.xlu0 %v2851
        %v2853 = vpop.xlane.xlu0 %2852
        %v2854 = vsel %vm728, %v2848, 0.0
        %2855 = vadd.xlane.f32.xlu0 %v2854
        %v2856 = vpop.xlane.xlu0 %2855
        %v2857 = vsel %vm728, %v2849, 0.0
        %2858 = vadd.xlane.f32.xlu0 %v2857
        %v2859 = vpop.xlane.xlu0 %2858
        %v2860 = vsel %vm728, %v2850, 0.0
        %2861 = vadd.xlane.f32.xlu0 %v2860
        %v2862 = vpop.xlane.xlu0 %2861
        %v2863 = vmul.f32 %v2853, %v2838
        %v2864 = vmul.f32 %v2856, %v2838
        %v2865 = vmul.f32 %v2859, %v2838
        %v2866 = vmul.f32 %v2862, %v2838
        %v2867 = vadd.f32 %v2863, 1e-05
        %v2868 = vadd.f32 %v2864, 1e-05
        %v2869 = vadd.f32 %v2865, 1e-05
        %v2870 = vadd.f32 %v2866, 1e-05
        %v2871 = vrsqrt.pop %v2867
        %v2872 = vrsqrt.pop %v2868
        %v2873 = vrsqrt.pop %v2869
        %v2874 = vrsqrt.pop %v2870
        %v2875 = vmul.f32 %v2843, %v2871
        %v2876 = vmul.f32 %v2844, %v2872
        %v2877 = vmul.f32 %v2845, %v2873
        %v2878 = vmul.f32 %v2846, %v2874
        %v2880 = vlaneseq
        %v2881 = vshrl.u32 %v2880, 7
        %v2882 = vsub.s32 0, %v2881
        %v2883 = vrot.slane %v2824, %v2882
        %v2885 = vmul.f32 %v2875, %v2883
        %v2886 = vmul.f32 %v2876, %v2883
        %v2887 = vmul.f32 %v2877, %v2883
        %v2888 = vmul.f32 %v2878, %v2883
        %v2890 = vlaneseq
        %v2891 = vshrl.u32 %v2890, 7
        %v2892 = vsub.s32 0, %v2891
        %v2893 = vrot.slane %v2825, %v2892
        %v2895 = vadd.f32 %v2885, %v2893
        %v2896 = vadd.f32 %v2886, %v2893
        %v2897 = vadd.f32 %v2887, %v2893
        %v2898 = vadd.f32 %v2888, %v2893
        %v2899 = vld [vmem:[%s609] sm:$0xff]
        %v2900 = vld [vmem:[%s609 + $0x8] sm:$0xff]
        %v2901 = vld [vmem:[%s609 + $0x10] sm:$0xff]
        %v2902 = vld [vmem:[%s609 + $0x18] sm:$0xff]
        %v2903 = vld [vmem:[%s609 + $0x20] sm:$0xff]
        %v2904 = vld [vmem:[%s609 + $0x28] sm:$0xff]
        %v2905 = vld [vmem:[%s609 + $0x30] sm:$0xff]
        %v2906 = vld [vmem:[%s609 + $0x38] sm:$0xff]
        %v2907 = vld [vmem:[%s609 + $0x40] sm:$0xff]
        %v2908 = vld [vmem:[%s609 + $0x48] sm:$0xff]
        %v2909 = vld [vmem:[%s609 + $0x50] sm:$0xff]
        %v2910 = vld [vmem:[%s609 + $0x58] sm:$0xff]
        %v2911 = vld [vmem:[%s609 + $0x60] sm:$0xff]
        %v2912 = vld [vmem:[%s609 + $0x68] sm:$0xff]
        %v2913 = vld [vmem:[%s609 + $0x70] sm:$0xff]
        %v2914 = vld [vmem:[%s609 + $0x78] sm:$0xff]
        %v2915 = vld [vmem:[%s613] sm:$0x3]
        %v2917 = vlaneseq
        %v2918 = vshrl.u32 %v2917, 7
        %v2919 = vsub.s32 0, %v2918
        %v2920 = vrot.slane %v2915, %v2919
        %v2921 = vlaneseq
        %v2922 = vshrl.u32 %v2921, 7
        %v2923 = vsub.s32 1, %v2922
        %v2924 = vrot.slane %v2915, %v2923
        %v2928 = vsel %vm728, %v2895, 0
        %v2931 = vsel %vm728, %v2896, 0
        %v2934 = vsel %vm728, %v2897, 0
        %v2937 = vsel %vm728, %v2898, 0
        %2939 = vmatprep.subr.mxu0 %v2900
        %2940 = vmatpush1.msra.mxu0 %v2899
        %2941 = vmatprep.subr.mxu0 %v2902
        %2942 = vmatpush1.msra.mxu0 %v2901
        %2943 = vmatprep.subr.mxu0 %v2904
        %2944 = vmatpush1.msra.mxu0 %v2903
        %2945 = vmatprep.subr.mxu0 %v2906
        %2946 = vmatpush1.msra.mxu0 %v2905
        %2947 = vmatprep.subr.mxu0 %v2908
        %2948 = vmatpush1.msra.mxu0 %v2907
        %2949 = vmatprep.subr.mxu0 %v2910
        %2950 = vmatpush1.msra.mxu0 %v2909
        %2951 = vmatprep.subr.mxu0 %v2912
        %2952 = vmatpush1.msra.mxu0 %v2911
        %2953 = vmatprep.subr.mxu0 %v2914
        %2954 = vmatpush1.msra.mxu0 %v2913
        %2955 = vmatprep.subr.mxu0 0.0
        %2956 = vmatpush1.msra.mxu0 0.0
        %2957 = vmatprep.subr.mxu0 0.0
        %2958 = vmatpush1.msra.mxu0 0.0
        %2959 = vmatprep.subr.mxu0 0.0
        %2960 = vmatpush1.msra.mxu0 0.0
        %2961 = vmatprep.subr.mxu0 0.0
        %2962 = vmatpush1.msra.mxu0 0.0
        %2963 = vmatprep.subr.mxu0 0.0
        %2964 = vmatpush1.msra.mxu0 0.0
        %2965 = vmatprep.subr.mxu0 0.0
        %2966 = vmatpush1.msra.mxu0 0.0
        %2967 = vmatprep.subr.mxu0 0.0
        %2968 = vmatpush1.msra.mxu0 0.0
        %2969 = vmatprep.subr.mxu0 0.0
        %2970 = vmatpush1.msra.mxu0 0.0
        %2971 = vmatprep.subr.mxu0 0.0
        %2972 = vmatpush1.msra.mxu0 0.0
        %2973 = vmatprep.subr.mxu0 0.0
        %2974 = vmatpush1.msra.mxu0 0.0
        %2975 = vmatprep.subr.mxu0 0.0
        %2976 = vmatpush1.msra.mxu0 0.0
        %2977 = vmatprep.subr.mxu0 0.0
        %2978 = vmatpush1.msra.mxu0 0.0
        %2979 = vmatprep.subr.mxu0 0.0
        %2980 = vmatpush1.msra.mxu0 0.0
        %2981 = vmatprep.subr.mxu0 0.0
        %2982 = vmatpush1.msra.mxu0 0.0
        %2983 = vmatprep.subr.mxu0 0.0
        %2984 = vmatpush1.msra.mxu0 0.0
        %2985 = vmatprep.subr.mxu0 0.0
        %2986 = vmatpush1.msra.mxu0 0.0
        %2987 = vmatprep.subr.mxu0 0.0
        %2988 = vmatpush1.msra.mxu0 0.0
        %2989 = vmatprep.subr.mxu0 0.0
        %2990 = vmatpush1.msra.mxu0 0.0
        %2991 = vmatprep.subr.mxu0 0.0
        %2992 = vmatpush1.msra.mxu0 0.0
        %2993 = vmatprep.subr.mxu0 0.0
        %2994 = vmatpush1.msra.mxu0 0.0
        %2995 = vmatprep.subr.mxu0 0.0
        %2996 = vmatpush1.msra.mxu0 0.0
        %2997 = vmatprep.subr.mxu0 0.0
        %2998 = vmatpush1.msra.mxu0 0.0
        %2999 = vmatprep.subr.mxu0 0.0
        %3000 = vmatpush1.msra.mxu0 0.0
        %3001 = vmatprep.subr.mxu0 0.0
        %3002 = vmatpush1.msra.mxu0 0.0
        %3003 = vmatprep.mubr.f32.mxu0 0.0
        %3004 = vmatmul.mubr.f32.gmra.mrb[0].mxu0 %v2928
        %v3005 = vpop.f32.mrb[0].mxu0
        %v3006 = vadd.f32 %v2920, %v3005
        %v3007 = vpop.f32.mrb[0].mxu0
        %v3008 = vadd.f32 %v2924, %v3007
        %3009 = vmatprep.mubr.f32.mxu0 0.0
        %3010 = vmatmul.mubr.f32.gmra.mrb[0].mxu0 %v2931
        %v3011 = vpop.f32.mrb[0].mxu0
        %v3012 = vadd.f32 %v2920, %v3011
        %v3013 = vpop.f32.mrb[0].mxu0
        %v3014 = vadd.f32 %v2924, %v3013
        %3015 = vmatprep.mubr.f32.mxu0 0.0
        %3016 = vmatmul.mubr.f32.gmra.mrb[0].mxu0 %v2934
        %v3017 = vpop.f32.mrb[0].mxu0
        %v3018 = vadd.f32 %v2920, %v3017
        %v3019 = vpop.f32.mrb[0].mxu0
        %v3020 = vadd.f32 %v2924, %v3019
        %3021 = vmatprep.mubr.f32.mxu0 0.0
        %3022 = vmatmul.mubr.f32.gmra.mrb[0].mxu0 %v2937
        %v3023 = vpop.f32.mrb[0].mxu0
        %v3024 = vadd.f32 %v2920, %v3023
        %v3025 = vpop.f32.mrb[0].mxu0
        %v3026 = vadd.f32 %v2924, %v3025
        %3027 = vdwg.mxu0
        %v3028 = vmul.f32 %v3006, 0.5
        %v3029 = vmul.f32 %v3008, 0.5
        %v3030 = vmul.f32 %v3012, 0.5
        %v3031 = vmul.f32 %v3014, 0.5
        %v3032 = vmul.f32 %v3018, 0.5
        %v3033 = vmul.f32 %v3020, 0.5
        %v3034 = vmul.f32 %v3024, 0.5
        %v3035 = vmul.f32 %v3026, 0.5
        %v3036 = vmul.f32 %v3006, 0.70710677
        %v3037 = vmul.f32 %v3008, 0.70710677
        %v3038 = vmul.f32 %v3012, 0.70710677
        %v3039 = vmul.f32 %v3014, 0.70710677
        %v3040 = vmul.f32 %v3018, 0.70710677
        %v3041 = vmul.f32 %v3020, 0.70710677
        %v3042 = vmul.f32 %v3024, 0.70710677
        %v3043 = vmul.f32 %v3026, 0.70710677
        %vm3044 = vcmp.ge.f32.partialorder %v3036, 0.0
        %vm3045 = vcmp.ge.f32.partialorder %v3037, 0.0
        %vm3046 = vcmp.ge.f32.partialorder %v3038, 0.0
        %vm3047 = vcmp.ge.f32.partialorder %v3039, 0.0
        %vm3048 = vcmp.ge.f32.partialorder %v3040, 0.0
        %vm3049 = vcmp.ge.f32.partialorder %v3041, 0.0
        %vm3050 = vcmp.ge.f32.partialorder %v3042, 0.0
        %vm3051 = vcmp.ge.f32.partialorder %v3043, 0.0
        %v3052 = vsel %vm3044, 1.0, -1.0
        %v3053 = vsel %vm3045, 1.0, -1.0
        %v3054 = vsel %vm3046, 1.0, -1.0
        %v3055 = vsel %vm3047, 1.0, -1.0
        %v3056 = vsel %vm3048, 1.0, -1.0
        %v3057 = vsel %vm3049, 1.0, -1.0
        %v3058 = vsel %vm3050, 1.0, -1.0
        %v3059 = vsel %vm3051, 1.0, -1.0
        %v3060 = vand.u32 2147483647, %v3036
        %v3061 = vand.u32 2147483647, %v3037
        %v3062 = vand.u32 2147483647, %v3038
        %v3063 = vand.u32 2147483647, %v3039
        %v3064 = vand.u32 2147483647, %v3040
        %v3065 = vand.u32 2147483647, %v3041
        %v3066 = vand.u32 2147483647, %v3042
        %v3067 = vand.u32 2147483647, %v3043
        %v3068 = vmul.f32 %v3060, 0.3275911
        %v3069 = vmul.f32 %v3061, 0.3275911
        %v3070 = vmul.f32 %v3062, 0.3275911
        %v3071 = vmul.f32 %v3063, 0.3275911
        %v3072 = vmul.f32 %v3064, 0.3275911
        %v3073 = vmul.f32 %v3065, 0.3275911
        %v3074 = vmul.f32 %v3066, 0.3275911
        %v3075 = vmul.f32 %v3067, 0.3275911
        %v3076 = vadd.f32 %v3068, 1.0
        %v3077 = vadd.f32 %v3069, 1.0
        %v3078 = vadd.f32 %v3070, 1.0
        %v3079 = vadd.f32 %v3071, 1.0
        %v3080 = vadd.f32 %v3072, 1.0
        %v3081 = vadd.f32 %v3073, 1.0
        %v3082 = vadd.f32 %v3074, 1.0
        %v3083 = vadd.f32 %v3075, 1.0
        %v3084 = vrcp.pop %v3076
        %v3085 = vmul.f32 1.0, %v3084
        %v3086 = vrcp.pop %v3077
        %v3087 = vmul.f32 1.0, %v3086
        %v3088 = vrcp.pop %v3078
        %v3089 = vmul.f32 1.0, %v3088
        %v3090 = vrcp.pop %v3079
        %v3091 = vmul.f32 1.0, %v3090
        %v3092 = vrcp.pop %v3080
        %v3093 = vmul.f32 1.0, %v3092
        %v3094 = vrcp.pop %v3081
        %v3095 = vmul.f32 1.0, %v3094
        %v3096 = vrcp.pop %v3082
        %v3097 = vmul.f32 1.0, %v3096
        %v3098 = vrcp.pop %v3083
        %v3099 = vmul.f32 1.0, %v3098
        %v3100 = vmul.f32 %v3085, 1.0614054
        %v3101 = vmul.f32 %v3087, 1.0614054
        %v3102 = vmul.f32 %v3089, 1.0614054
        %v3103 = vmul.f32 %v3091, 1.0614054
        %v3104 = vmul.f32 %v3093, 1.0614054
        %v3105 = vmul.f32 %v3095, 1.0614054
        %v3106 = vmul.f32 %v3097, 1.0614054
        %v3107 = vmul.f32 %v3099, 1.0614054
        %v3108 = vadd.f32 %v3100, -1.4531521
        %v3109 = vadd.f32 %v3101, -1.4531521
        %v3110 = vadd.f32 %v3102, -1.4531521
        %v3111 = vadd.f32 %v3103, -1.4531521
        %v3112 = vadd.f32 %v3104, -1.4531521
        %v3113 = vadd.f32 %v3105, -1.4531521
        %v3114 = vadd.f32 %v3106, -1.4531521
        %v3115 = vadd.f32 %v3107, -1.4531521
        %v3116 = vmul.f32 %v3108, %v3085
        %v3117 = vmul.f32 %v3109, %v3087
        %v3118 = vmul.f32 %v3110, %v3089
        %v3119 = vmul.f32 %v3111, %v3091
        %v3120 = vmul.f32 %v3112, %v3093
        %v3121 = vmul.f32 %v3113, %v3095
        %v3122 = vmul.f32 %v3114, %v3097
        %v3123 = vmul.f32 %v3115, %v3099
        %v3124 = vadd.f32 %v3116, 1.4214138
        %v3125 = vadd.f32 %v3117, 1.4214138
        %v3126 = vadd.f32 %v3118, 1.4214138
        %v3127 = vadd.f32 %v3119, 1.4214138
        %v3128 = vadd.f32 %v3120, 1.4214138
        %v3129 = vadd.f32 %v3121, 1.4214138
        %v3130 = vadd.f32 %v3122, 1.4214138
        %v3131 = vadd.f32 %v3123, 1.4214138
        %v3132 = vmul.f32 %v3124, %v3085
        %v3133 = vmul.f32 %v3125, %v3087
        %v3134 = vmul.f32 %v3126, %v3089
        %v3135 = vmul.f32 %v3127, %v3091
        %v3136 = vmul.f32 %v3128, %v3093
        %v3137 = vmul.f32 %v3129, %v3095
        %v3138 = vmul.f32 %v3130, %v3097
        %v3139 = vmul.f32 %v3131, %v3099
        %v3140 = vadd.f32 %v3132, -0.28449672
        %v3141 = vadd.f32 %v3133, -0.28449672
        %v3142 = vadd.f32 %v3134, -0.28449672
        %v3143 = vadd.f32 %v3135, -0.28449672
        %v3144 = vadd.f32 %v3136, -0.28449672
        %v3145 = vadd.f32 %v3137, -0.28449672
        %v3146 = vadd.f32 %v3138, -0.28449672
        %v3147 = vadd.f32 %v3139, -0.28449672
        %v3148 = vmul.f32 %v3140, %v3085
        %v3149 = vmul.f32 %v3141, %v3087
        %v3150 = vmul.f32 %v3142, %v3089
        %v3151 = vmul.f32 %v3143, %v3091
        %v3152 = vmul.f32 %v3144, %v3093
        %v3153 = vmul.f32 %v3145, %v3095
        %v3154 = vmul.f32 %v3146, %v3097
        %v3155 = vmul.f32 %v3147, %v3099
        %v3156 = vadd.f32 %v3148, 0.2548296
        %v3157 = vadd.f32 %v3149, 0.2548296
        %v3158 = vadd.f32 %v3150, 0.2548296
        %v3159 = vadd.f32 %v3151, 0.2548296
        %v3160 = vadd.f32 %v3152, 0.2548296
        %v3161 = vadd.f32 %v3153, 0.2548296
        %v3162 = vadd.f32 %v3154, 0.2548296
        %v3163 = vadd.f32 %v3155, 0.2548296
        %v3164 = vmul.f32 %v3156, %v3085
        %v3165 = vmul.f32 %v3157, %v3087
        %v3166 = vmul.f32 %v3158, %v3089
        %v3167 = vmul.f32 %v3159, %v3091
        %v3168 = vmul.f32 %v3160, %v3093
        %v3169 = vmul.f32 %v3161, %v3095
        %v3170 = vmul.f32 %v3162, %v3097
        %v3171 = vmul.f32 %v3163, %v3099
        %v3172 = vsub.f32 0.0, %v3060
        %v3173 = vsub.f32 0.0, %v3061
        %v3174 = vsub.f32 0.0, %v3062
        %v3175 = vsub.f32 0.0, %v3063
        %v3176 = vsub.f32 0.0, %v3064
        %v3177 = vsub.f32 0.0, %v3065
        %v3178 = vsub.f32 0.0, %v3066
        %v3179 = vsub.f32 0.0, %v3067
        %v3180 = vmul.f32 %v3172, %v3060
        %v3181 = vmul.f32 %v3173, %v3061
        %v3182 = vmul.f32 %v3174, %v3062
        %v3183 = vmul.f32 %v3175, %v3063
        %v3184 = vmul.f32 %v3176, %v3064
        %v3185 = vmul.f32 %v3177, %v3065
        %v3186 = vmul.f32 %v3178, %v3066
        %v3187 = vmul.f32 %v3179, %v3067
        %v3188 = vmul.f32 %v3180, 1.442695
        %v3189 = vpow.pop %v3188
        %v3190 = vmul.f32 %v3181, 1.442695
        %v3191 = vpow.pop %v3190
        %v3192 = vmul.f32 %v3182, 1.442695
        %v3193 = vpow.pop %v3192
        %v3194 = vmul.f32 %v3183, 1.442695
        %v3195 = vpow.pop %v3194
        %v3196 = vmul.f32 %v3184, 1.442695
        %v3197 = vpow.pop %v3196
        %v3198 = vmul.f32 %v3185, 1.442695
        %v3199 = vpow.pop %v3198
        %v3200 = vmul.f32 %v3186, 1.442695
        %v3201 = vpow.pop %v3200
        %v3202 = vmul.f32 %v3187, 1.442695
        %v3203 = vpow.pop %v3202
        %v3204 = vmul.f32 %v3164, %v3189
        %v3205 = vmul.f32 %v3165, %v3191
        %v3206 = vmul.f32 %v3166, %v3193
        %v3207 = vmul.f32 %v3167, %v3195
        %v3208 = vmul.f32 %v3168, %v3197
        %v3209 = vmul.f32 %v3169, %v3199
        %v3210 = vmul.f32 %v3170, %v3201
        %v3211 = vmul.f32 %v3171, %v3203
        %v3212 = vsub.f32 1.0, %v3204
        %v3213 = vsub.f32 1.0, %v3205
        %v3214 = vsub.f32 1.0, %v3206
        %v3215 = vsub.f32 1.0, %v3207
        %v3216 = vsub.f32 1.0, %v3208
        %v3217 = vsub.f32 1.0, %v3209
        %v3218 = vsub.f32 1.0, %v3210
        %v3219 = vsub.f32 1.0, %v3211
        %v3220 = vmul.f32 %v3052, %v3212
        %v3221 = vmul.f32 %v3053, %v3213
        %v3222 = vmul.f32 %v3054, %v3214
        %v3223 = vmul.f32 %v3055, %v3215
        %v3224 = vmul.f32 %v3056, %v3216
        %v3225 = vmul.f32 %v3057, %v3217
        %v3226 = vmul.f32 %v3058, %v3218
        %v3227 = vmul.f32 %v3059, %v3219
        %v3228 = vadd.f32 %v3220, 1.0
        %v3229 = vadd.f32 %v3221, 1.0
        %v3230 = vadd.f32 %v3222, 1.0
        %v3231 = vadd.f32 %v3223, 1.0
        %v3232 = vadd.f32 %v3224, 1.0
        %v3233 = vadd.f32 %v3225, 1.0
        %v3234 = vadd.f32 %v3226, 1.0
        %v3235 = vadd.f32 %v3227, 1.0
        %v3236 = vmul.f32 %v3028, %v3228
        %v3237 = vmul.f32 %v3029, %v3229
        %v3238 = vmul.f32 %v3030, %v3230
        %v3239 = vmul.f32 %v3031, %v3231
        %v3240 = vmul.f32 %v3032, %v3232
        %v3241 = vmul.f32 %v3033, %v3233
        %v3242 = vmul.f32 %v3034, %v3234
        %v3243 = vmul.f32 %v3035, %v3235
        %v3244 = vld [vmem:[%s618] sm:$0xff]
        %v3245 = vld [vmem:[%s618 + $0x8] sm:$0xff]
        %v3246 = vld [vmem:[%s618 + $0x10] sm:$0xff]
        %v3247 = vld [vmem:[%s618 + $0x18] sm:$0xff]
        %v3248 = vld [vmem:[%s618 + $0x20] sm:$0xff]
        %v3249 = vld [vmem:[%s618 + $0x28] sm:$0xff]
        %v3250 = vld [vmem:[%s618 + $0x30] sm:$0xff]
        %v3251 = vld [vmem:[%s618 + $0x38] sm:$0xff]
        %v3252 = vld [vmem:[%s618 + $0x40] sm:$0xff]
        %v3253 = vld [vmem:[%s618 + $0x48] sm:$0xff]
        %v3254 = vld [vmem:[%s618 + $0x50] sm:$0xff]
        %v3255 = vld [vmem:[%s618 + $0x58] sm:$0xff]
        %v3256 = vld [vmem:[%s618 + $0x60] sm:$0xff]
        %v3257 = vld [vmem:[%s618 + $0x68] sm:$0xff]
        %v3258 = vld [vmem:[%s618 + $0x70] sm:$0xff]
        %v3259 = vld [vmem:[%s618 + $0x78] sm:$0xff]
        %v3260 = vld [vmem:[%s618 + $0x80] sm:$0xff]
        %v3261 = vld [vmem:[%s618 + $0x88] sm:$0xff]
        %v3262 = vld [vmem:[%s618 + $0x90] sm:$0xff]
        %v3263 = vld [vmem:[%s618 + $0x98] sm:$0xff]
        %v3264 = vld [vmem:[%s618 + $0xa0] sm:$0xff]
        %v3265 = vld [vmem:[%s618 + $0xa8] sm:$0xff]
        %v3266 = vld [vmem:[%s618 + $0xb0] sm:$0xff]
        %v3267 = vld [vmem:[%s618 + $0xb8] sm:$0xff]
        %v3268 = vld [vmem:[%s618 + $0xc0] sm:$0xff]
        %v3269 = vld [vmem:[%s618 + $0xc8] sm:$0xff]
        %v3270 = vld [vmem:[%s618 + $0xd0] sm:$0xff]
        %v3271 = vld [vmem:[%s618 + $0xd8] sm:$0xff]
        %v3272 = vld [vmem:[%s618 + $0xe0] sm:$0xff]
        %v3273 = vld [vmem:[%s618 + $0xe8] sm:$0xff]
        %v3274 = vld [vmem:[%s618 + $0xf0] sm:$0xff]
        %v3275 = vld [vmem:[%s618 + $0xf8] sm:$0xff]
        %v3276 = vld [vmem:[%s621] sm:$0x1]
        %v3278 = vlaneseq
        %v3279 = vshrl.u32 %v3278, 7
        %v3280 = vsub.s32 0, %v3279
        %v3281 = vrot.slane %v3276, %v3280
        %3283 = vmatprep.subr.mxu0 0.0
        %3284 = vmatpush1.msra.mxu0 %v3244
        %3285 = vmatprep.subr.mxu0 0.0
        %3286 = vmatpush1.msra.mxu0 %v3245
        %3287 = vmatprep.subr.mxu0 0.0
        %3288 = vmatpush1.msra.mxu0 %v3246
        %3289 = vmatprep.subr.mxu0 0.0
        %3290 = vmatpush1.msra.mxu0 %v3247
        %3291 = vmatprep.subr.mxu0 0.0
        %3292 = vmatpush1.msra.mxu0 %v3248
        %3293 = vmatprep.subr.mxu0 0.0
        %3294 = vmatpush1.msra.mxu0 %v3249
        %3295 = vmatprep.subr.mxu0 0.0
        %3296 = vmatpush1.msra.mxu0 %v3250
        %3297 = vmatprep.subr.mxu0 0.0
        %3298 = vmatpush1.msra.mxu0 %v3251
        %3299 = vmatprep.subr.mxu0 0.0
        %3300 = vmatpush1.msra.mxu0 %v3252
        %3301 = vmatprep.subr.mxu0 0.0
        %3302 = vmatpush1.msra.mxu0 %v3253
        %3303 = vmatprep.subr.mxu0 0.0
        %3304 = vmatpush1.msra.mxu0 %v3254
        %3305 = vmatprep.subr.mxu0 0.0
        %3306 = vmatpush1.msra.mxu0 %v3255
        %3307 = vmatprep.subr.mxu0 0.0
        %3308 = vmatpush1.msra.mxu0 %v3256
        %3309 = vmatprep.subr.mxu0 0.0
        %3310 = vmatpush1.msra.mxu0 %v3257
        %3311 = vmatprep.subr.mxu0 0.0
        %3312 = vmatpush1.msra.mxu0 %v3258
        %3313 = vmatprep.subr.mxu0 0.0
        %3314 = vmatpush1.msra.mxu0 %v3259
        %3315 = vmatprep.subr.mxu0 0.0
        %3316 = vmatpush1.msra.mxu0 %v3260
        %3317 = vmatprep.subr.mxu0 0.0
        %3318 = vmatpush1.msra.mxu0 %v3261
        %3319 = vmatprep.subr.mxu0 0.0
        %3320 = vmatpush1.msra.mxu0 %v3262
        %3321 = vmatprep.subr.mxu0 0.0
        %3322 = vmatpush1.msra.mxu0 %v3263
        %3323 = vmatprep.subr.mxu0 0.0
        %3324 = vmatpush1.msra.mxu0 %v3264
        %3325 = vmatprep.subr.mxu0 0.0
        %3326 = vmatpush1.msra.mxu0 %v3265
        %3327 = vmatprep.subr.mxu0 0.0
        %3328 = vmatpush1.msra.mxu0 %v3266
        %3329 = vmatprep.subr.mxu0 0.0
        %3330 = vmatpush1.msra.mxu0 %v3267
        %3331 = vmatprep.subr.mxu0 0.0
        %3332 = vmatpush1.msra.mxu0 %v3268
        %3333 = vmatprep.subr.mxu0 0.0
        %3334 = vmatpush1.msra.mxu0 %v3269
        %3335 = vmatprep.subr.mxu0 0.0
        %3336 = vmatpush1.msra.mxu0 %v3270
        %3337 = vmatprep.subr.mxu0 0.0
        %3338 = vmatpush1.msra.mxu0 %v3271
        %3339 = vmatprep.subr.mxu0 0.0
        %3340 = vmatpush1.msra.mxu0 %v3272
        %3341 = vmatprep.subr.mxu0 0.0
        %3342 = vmatpush1.msra.mxu0 %v3273
        %3343 = vmatprep.subr.mxu0 0.0
        %3344 = vmatpush1.msra.mxu0 %v3274
        %3345 = vmatprep.subr.mxu0 0.0
        %3346 = vmatpush1.msra.mxu0 %v3275
        %3347 = vmatprep.mubr.f32.mxu0 %v3237
        %3348 = vmatmul.mubr.f32.gmra.mrb[0].mxu0 %v3236
        %v3349 = vpop.f32.mrb[0].mxu0
        %v3350 = vadd.f32 %v3281, %v3349
        %v3351 = vpop.f32.mrb[0].mxu0
        %3352 = vmatprep.mubr.f32.mxu0 %v3239
        %3353 = vmatmul.mubr.f32.gmra.mrb[0].mxu0 %v3238
        %v3354 = vpop.f32.mrb[0].mxu0
        %v3355 = vadd.f32 %v3281, %v3354
        %v3356 = vpop.f32.mrb[0].mxu0
        %3357 = vmatprep.mubr.f32.mxu0 %v3241
        %3358 = vmatmul.mubr.f32.gmra.mrb[0].mxu0 %v3240
        %v3359 = vpop.f32.mrb[0].mxu0
        %v3360 = vadd.f32 %v3281, %v3359
        %v3361 = vpop.f32.mrb[0].mxu0
        %3362 = vmatprep.mubr.f32.mxu0 %v3243
        %3363 = vmatmul.mubr.f32.gmra.mrb[0].mxu0 %v3242
        %v3364 = vpop.f32.mrb[0].mxu0
        %v3365 = vadd.f32 %v3281, %v3364
        %v3366 = vpop.f32.mrb[0].mxu0
        %3367 = vdwg.mxu0
        %v3368 = vadd.f32 %v2895, %v3350
        %v3369 = vadd.f32 %v2896, %v3355
        %v3370 = vadd.f32 %v2897, %v3360
        %v3371 = vadd.f32 %v2898, %v3365
        %v3372 = vld [vmem:[%s624] sm:$0x1]
        %v3373 = vld [vmem:[%s627] sm:$0x1]
        %v3374 = vsel %vm728, %v3368, 0.0
        %3375 = vadd.xlane.f32.xlu0 %v3374
        %v3376 = vpop.xlane.xlu0 %3375
        %v3377 = vsel %vm728, %v3369, 0.0
        %3378 = vadd.xlane.f32.xlu0 %v3377
        %v3379 = vpop.xlane.xlu0 %3378
        %v3380 = vsel %vm728, %v3370, 0.0
        %3381 = vadd.xlane.f32.xlu0 %v3380
        %v3382 = vpop.xlane.xlu0 %3381
        %v3383 = vsel %vm728, %v3371, 0.0
        %3384 = vadd.xlane.f32.xlu0 %v3383
        %v3385 = vpop.xlane.xlu0 %3384
        %v3386 = vmul.f32 %v3376, %v2838
        %v3387 = vmul.f32 %v3379, %v2838
        %v3388 = vmul.f32 %v3382, %v2838
        %v3389 = vmul.f32 %v3385, %v2838
        %v3390 = vsub.f32 %v3368, %v3386
        %v3391 = vsub.f32 %v3369, %v3387
        %v3392 = vsub.f32 %v3370, %v3388
        %v3393 = vsub.f32 %v3371, %v3389
        %v3394 = vmul.f32 %v3390, %v3390
        %v3395 = vmul.f32 %v3391, %v3391
        %v3396 = vmul.f32 %v3392, %v3392
        %v3397 = vmul.f32 %v3393, %v3393
        %v3398 = vsel %vm728, %v3394, 0.0
        %3399 = vadd.xlane.f32.xlu0 %v3398
        %v3400 = vpop.xlane.xlu0 %3399
        %v3401 = vsel %vm728, %v3395, 0.0
        %3402 = vadd.xlane.f32.xlu0 %v3401
        %v3403 = vpop.xlane.xlu0 %3402
        %v3404 = vsel %vm728, %v3396, 0.0
        %3405 = vadd.xlane.f32.xlu0 %v3404
        %v3406 = vpop.xlane.xlu0 %3405
        %v3407 = vsel %vm728, %v3397, 0.0
        %3408 = vadd.xlane.f32.xlu0 %v3407
        %v3409 = vpop.xlane.xlu0 %3408
        %v3410 = vmul.f32 %v3400, %v2838
        %v3411 = vmul.f32 %v3403, %v2838
        %v3412 = vmul.f32 %v3406, %v2838
        %v3413 = vmul.f32 %v3409, %v2838
        %v3414 = vadd.f32 %v3410, 1e-05
        %v3415 = vadd.f32 %v3411, 1e-05
        %v3416 = vadd.f32 %v3412, 1e-05
        %v3417 = vadd.f32 %v3413, 1e-05
        %v3418 = vrsqrt.pop %v3414
        %v3419 = vrsqrt.pop %v3415
        %v3420 = vrsqrt.pop %v3416
        %v3421 = vrsqrt.pop %v3417
        %v3422 = vmul.f32 %v3390, %v3418
        %v3423 = vmul.f32 %v3391, %v3419
        %v3424 = vmul.f32 %v3392, %v3420
        %v3425 = vmul.f32 %v3393, %v3421
        %v3427 = vlaneseq
        %v3428 = vshrl.u32 %v3427, 7
        %v3429 = vsub.s32 0, %v3428
        %v3430 = vrot.slane %v3372, %v3429
        %v3432 = vmul.f32 %v3422, %v3430
        %v3433 = vmul.f32 %v3423, %v3430
        %v3434 = vmul.f32 %v3424, %v3430
        %v3435 = vmul.f32 %v3425, %v3430
        %v3437 = vlaneseq
        %v3438 = vshrl.u32 %v3437, 7
        %v3439 = vsub.s32 0, %v3438
        %v3440 = vrot.slane %v3373, %v3439
        %v3442 = vadd.f32 %v3432, %v3440
        %v3443 = vadd.f32 %v3433, %v3440
        %v3444 = vadd.f32 %v3434, %v3440
        %v3445 = vadd.f32 %v3435, %v3440
        %3446 = vst.msk [vmem:[#allocation4] sm:$0xff] %vm728, %v3442
        %3447 = vst.msk [vmem:[#allocation4 + $0x8] sm:$0xff] %vm728, %v3443
        %3448 = vst.msk [vmem:[#allocation4 + $0x10] sm:$0xff] %vm728, %v3444
        %3449 = vst.msk [vmem:[#allocation4 + $0x18] sm:$0xff] %vm728, %v3445
        // Predicated region
        $region85: #{realformer_forward.1} parent=79 // pred_check
          %p3450 = pneg %p405
        $region86: #{realformer_forward.1} parent=79 // pred_check_branch
          %3452 = sbr.rel (%p3450) target = $region88
        $region87: #{realformer_forward.1} parent=79 // pred_region
          %s3454 = ssub.s32 512, 512
          %3455 = vsyncadd [#allocation5], %s3454
          %s3456 = sshll.u32 [#allocation4], 4
          %s3457 = int_to_ptr.vmem [resolvable:$true] %s3456
          %3462 = dma.vmem_to_hbm [thread:$0]  %s3457, 512, %s15, [#allocation5], 128, 128, 8
        $region88: #{realformer_forward.1} parent=79 // pred_fallthru
          _
        // Predicated region
        $region89: #{realformer_forward.1} parent=79 // pred_check
          %p3463 = pneg %p405
        $region90: #{realformer_forward.1} parent=79 // pred_check_branch
          %3465 = sbr.rel (%p3463) target = $region92
        $region91: #{realformer_forward.1} parent=79 // pred_region
          %3466 = dma.done [#allocation5], 512
        $region92: #{realformer_forward.1} parent=79 // pred_fallthru
          _
      $region80: #{realformer_forward.1} parent=5 // pred_fallthru
        _
      %p3467 = scmp.le.s32.totalorder 2, %s22
      // Predicated region
      $region93: #{realformer_forward.1} parent=5 // pred_check
        %p3468 = pneg %p3467
      $region94: #{realformer_forward.1} parent=5 // pred_check_branch
        %3470 = sbr.rel (%p3468) target = $region96
      $region95: #{realformer_forward.1} parent=5 // pred_region
        %s3471 = ssub.s32 %s22, 2
      $region96: #{realformer_forward.1} parent=5 // pred_fallthru
        _
    $region6: #{realformer_forward.1} parent=1 // loop_footer
      %s26 = sadd.s32 1, %s22
    $region7: #{realformer_forward.1} parent=1 // loop_footer_branch
      %21 = sbr.rel target = $region3
    $region8: #{realformer_forward.1} parent=1 // loop_exit
      _
    %3472 = vsyncpa [#allocation5], 1
    %s3473 = scalar_lea.sflag [#allocation5], 1
    %3474 = vsyncpa %s3473, 1

</llo_original>
